<compile_context>
chip_gen: v7x
topology: tpu7x:2x2x1
jax: 0.10.0
libtpu: 0.0.40
codegen_flags: <defaults>
</compile_context>

<pallas_src>
import jax
import jax.numpy as jnp
from jax.experimental import pallas as pl
from jax.experimental.pallas import tpu as pltpu

BERT_H = 768          # BERT hidden size (pooler_output dim)
NUM_FEATS = 6         # numerical_features
HIDDEN = 256          # classifier hidden_size
SUB = 8               # sequence sub-chunk (sublane granule) for the VPU pool


def _round_up(x, m):
    return ((x + m - 1) // m) * m


def _round_down(x, m):
    return (x // m) * m


def _pick_vmem_limit_bytes():
    """~75% of physical VMEM: ~96 MiB on v5e/v6e (128 MiB), ~48 MiB on v7x (64 MiB)."""
    cap = 64 * 1024 * 1024
    try:
        info = pltpu.get_tpu_info()
        cap = int(getattr(info, "vmem_capacity_bytes", cap))
    except Exception:
        pass
    return min(cap * 3 // 4, 110 * 1024 * 1024)


def _pick_tiles(B, S, vmem_limit_bytes):
    """Derive (tile_b, b_pad, tile_s, S_pad) from the sequence length + VMEM budget."""
    S_pad0 = _round_up(S, SUB)
    if S_pad0 <= 512:
        tile_s, S_pad = S_pad0, S_pad0            # single seq step; full-dim block OK
    else:
        tile_s, S_pad = 512, _round_up(S, 512)    # 512 is a multiple of (8,128) granules

    b_pad0 = _round_up(B, 8)
    # streamed bytes per batch row per grid step (double-buffered emb + mask)
    per_row = (2 * tile_s * BERT_H * 2          # emb bf16, 2 buffers
               + 2 * tile_s * 4                 # mask f32, 2 buffers
               + BERT_H * 4                     # f32 pooled-sum scratch
               + 2 * 128 * 4)                   # output tile
    resident = 8 * 1024 * 1024                  # weights + head temps + compiler scratch
    budget = max(vmem_limit_bytes - resident, per_row * 8)
    tile_b = max(8, min(_round_down(budget // per_row, 8), 128, b_pad0))
    # guarantee >=2 batch grid steps when the batch allows it (v7x has 2 TensorCores)
    if b_pad0 >= 16:
        tile_b = min(tile_b, max(8, _round_down(b_pad0 // 2, 8)))
    b_pad = _round_up(B, tile_b)
    return tile_b, b_pad, tile_s, S_pad


def bot_detection_kernel(emb_ref, mask_ref, num_ref,     # streamed per (batch, seq) tile
                         wp_ref, bp_ref,                 # BERT pooler dense (bf16 / f32)
                         w1a_ref, w1b_ref, b1_ref,       # Linear(768+6 -> 256), split
                         w2_ref, b2_ref,                 # Linear(256 -> 128)
                         w3t_ref, b3_ref,                # Linear(128 -> 1), as a row
                         out_ref,                        # (tile_b, 128) lane-dense out
                         acc_ref, den_ref):              # f32 pooled-sum / denom scratch
    seq = pl.program_id(1)
    n_seq = pl.num_programs(1)

    @pl.when(seq == 0)
    def _():
        acc_ref[...] = jnp.zeros_like(acc_ref)
        den_ref[...] = jnp.zeros_like(den_ref)

    # ---- stand-in BERT encoder output: masked sum over this sequence tile ----
    # Sequence-chunked VPU multiply + f32 accumulate (no MXU matvec, no big temp).
    tile_s = emb_ref.shape[1]
    n_sub = tile_s // SUB

    def pool_body(c, acc):
        s0 = pl.multiple_of(c * SUB, SUB)
        e = emb_ref[:, pl.ds(s0, SUB), :].astype(jnp.float32)   # (TB, 8, 768)
        m = mask_ref[:, pl.ds(s0, SUB), :]                      # (TB, 8, 1) f32
        return acc + jnp.sum(e * m, axis=1)                     # (TB, 768)

    part = jax.lax.fori_loop(0, n_sub, pool_body,
                             jnp.zeros(acc_ref.shape, jnp.float32))
    acc_ref[...] += part
    den_ref[...] += jnp.sum(mask_ref[...], axis=1)              # (TB, 1)

    # ---- finalize: mean-pool -> pooler -> classifier head, once per batch tile ----
    @pl.when(seq == n_seq - 1)
    def _():
        denom = jnp.maximum(den_ref[...], 1.0)
        # approx reciprocal (EUP): ~2^-12 rel error, negligible through tanh/sigmoid.
        hidden = acc_ref[...] * pl.reciprocal(denom, approx=True)   # (TB, 768)

        # BERT pooler: tanh(hidden @ Wp + bp); bert_dropout(0.1) = identity.
        pooled = jnp.tanh(
            jnp.dot(hidden.astype(jnp.bfloat16), wp_ref[...],
                    preferred_element_type=jnp.float32) + bp_ref[...])   # (TB, 768)

        # Layer 1 on concat([pooled, numerical]):
        #   concat(x, n) @ W1 == x @ W1[:768] (MXU) + n @ W1[768:] (K=6 VPU MAC)
        h1 = (jnp.dot(pooled.astype(jnp.bfloat16), w1a_ref[...],
                      preferred_element_type=jnp.float32) + b1_ref[...])  # (TB, 256)
        num = num_ref[...]                                   # (TB, 6) f32
        w1b = w1b_ref[...]                                   # (6, 256) f32
        for k in range(NUM_FEATS):                           # unrolled 6-term MAC
            h1 = h1 + num[:, k:k + 1] * w1b[k:k + 1, :]
        h1 = jnp.maximum(h1, 0.0)                            # ReLU; Dropout(0.2) = id

        h2 = (jnp.dot(h1.astype(jnp.bfloat16), w2_ref[...],
                      preferred_element_type=jnp.float32) + b2_ref[...])  # (TB, 128)
        h2 = jnp.maximum(h2, 0.0)                            # ReLU; Dropout(0.2) = id

        # Final Linear(128 -> 1) as a lane reduction (no N=1 MXU pass).
        logit = jnp.sum(h2 * w3t_ref[...], axis=-1, keepdims=True) + b3_ref[...]
        prob = jax.nn.sigmoid(logit)                         # (TB, 1)
        # lane-dense store: broadcast across 128 lanes; wrapper slices column 0.
        out_ref[...] = jnp.broadcast_to(prob, out_ref.shape)


def bot_detection_forward(emb, attention_mask, numerical_features, params,
                          *, vmem_limit_bytes=None):
    """emb: (B, S, 768) token embeddings (already gathered),
       attention_mask: (B, S), numerical_features: (B, 6)."""
    B, S, H = emb.shape
    assert H == BERT_H

    if vmem_limit_bytes is None:
        vmem_limit_bytes = _pick_vmem_limit_bytes()
    tile_b, b_pad, tile_s, S_pad = _pick_tiles(B, S, vmem_limit_bytes)

    # Pad batch & sequence; padded mask entries are zero -> no pooling contribution.
    emb = jnp.pad(emb.astype(jnp.bfloat16),
                  ((0, b_pad - B), (0, S_pad - S), (0, 0)))
    mask3 = jnp.pad(attention_mask.astype(jnp.float32),
                    ((0, b_pad - B), (0, S_pad - S)))[:, :, None]   # (b_pad, S_pad, 1)
    num = jnp.pad(numerical_features.astype(jnp.float32),
                  ((0, b_pad - B), (0, 0)))

    # bf16 storage for the large weights; f32 elsewhere.
    wp = params["wp"].astype(jnp.bfloat16)
    w1a = params["w1a"].astype(jnp.bfloat16)
    w1b = params["w1b"].astype(jnp.float32)
    w2 = params["w2"].astype(jnp.bfloat16)
    w3t = params["w3"].T.astype(jnp.float32)                 # (1, 128) row

    bmap3 = lambda i, j: (i, j, 0)
    bmap2 = lambda i, j: (i, 0)
    fixed = lambda i, j: (0, 0)
    res = pl.Buffered(1)          # constant-index weights: single VMEM buffer

    in_specs = [
        pl.BlockSpec((tile_b, tile_s, BERT_H), bmap3),                   # emb   (streamed)
        pl.BlockSpec((tile_b, tile_s, 1), bmap3),                        # mask  (streamed)
        pl.BlockSpec((tile_b, NUM_FEATS), bmap2),                        # num
        pl.BlockSpec((BERT_H, BERT_H), fixed, pipeline_mode=res),        # wp    (resident)
        pl.BlockSpec((1, BERT_H), fixed, pipeline_mode=res),             # bp
        pl.BlockSpec((BERT_H, HIDDEN), fixed, pipeline_mode=res),        # w1a
        pl.BlockSpec((NUM_FEATS, HIDDEN), fixed, pipeline_mode=res),     # w1b
        pl.BlockSpec((1, HIDDEN), fixed, pipeline_mode=res),             # b1
        pl.BlockSpec((HIDDEN, HIDDEN // 2), fixed, pipeline_mode=res),   # w2
        pl.BlockSpec((1, HIDDEN // 2), fixed, pipeline_mode=res),        # b2
        pl.BlockSpec((1, HIDDEN // 2), fixed, pipeline_mode=res),        # w3t
        pl.BlockSpec((1, 1), fixed, pipeline_mode=res),                  # b3
    ]
    out_spec = pl.BlockSpec((tile_b, 128), bmap2)

    # Advisory cost estimate: this op is HBM-bound on the emb stream.
    weight_bytes = (wp.size * 2 + params["bp"].size * 4 + w1a.size * 2 +
                    w1b.size * 4 + params["b1"].size * 4 + w2.size * 2 +
                    params["b2"].size * 4 + w3t.size * 4 + params["b3"].size * 4)
    bytes_accessed = int(emb.size * 2 + mask3.size * 4 + num.size * 4 +
                         weight_bytes + b_pad * 128 * 4)
    flops = int(2 * b_pad * S_pad * BERT_H +
                2 * b_pad * (BERT_H * BERT_H + BERT_H * HIDDEN +
                             NUM_FEATS * HIDDEN + HIDDEN * (HIDDEN // 2) +
                             (HIDDEN // 2)))
    ce = pl.CostEstimate(flops=flops, transcendentals=int(b_pad * (BERT_H + 2)),
                         bytes_accessed=bytes_accessed)

    out = pl.pallas_call(
        bot_detection_kernel,
        out_shape=jax.ShapeDtypeStruct((b_pad, 128), jnp.float32),
        grid=(b_pad // tile_b, S_pad // tile_s),
        in_specs=in_specs,
        out_specs=out_spec,
        scratch_shapes=[pltpu.VMEM((tile_b, BERT_H), jnp.float32),   # pooled sum
                        pltpu.VMEM((tile_b, 1), jnp.float32)],       # mask denom
        compiler_params=pltpu.CompilerParams(
            dimension_semantics=("parallel", "arbitrary"),
            vmem_limit_bytes=int(vmem_limit_bytes)),
        cost_estimate=ce,
    )(emb, mask3, num, wp, params["bp"], w1a, w1b, params["b1"],
      w2, params["b2"], w3t, params["b3"])
    return out[:B, :1]


def init_params(key):
    ks = jax.random.split(key, 8)

    def dense(k, fan_in, fan_out):
        bound = 1.0 / jnp.sqrt(fan_in)
        return jax.random.uniform(k, (fan_in, fan_out), jnp.float32, -bound, bound)

    w1 = dense(ks[2], BERT_H + NUM_FEATS, HIDDEN)        # Linear(774 -> 256)
    return {
        "wp": dense(ks[0], BERT_H, BERT_H),              # BERT pooler dense
        "bp": jnp.zeros((1, BERT_H), jnp.float32),
        "w1a": w1[:BERT_H],                              # rows for pooled_output
        "w1b": w1[BERT_H:],                              # rows for numerical feats
        "b1": jnp.zeros((1, HIDDEN), jnp.float32),
        "w2": dense(ks[3], HIDDEN, HIDDEN // 2),         # Linear(256 -> 128)
        "b2": jnp.zeros((1, HIDDEN // 2), jnp.float32),
        "w3": dense(ks[4], HIDDEN // 2, 1),              # Linear(128 -> 1)
        "b3": jnp.zeros((1, 1), jnp.float32),
    }


def _reference_forward(emb, mask, num, params):
    """Pure-JAX f32 reference of the same forward (stand-in backbone + exact head)."""
    mask = mask.astype(jnp.float32)
    summed = jnp.sum(mask[:, :, None] * emb.astype(jnp.float32), axis=1)
    denom = jnp.maximum(jnp.sum(mask, axis=1, keepdims=True), 1.0)
    hidden = summed / denom
    pooled = jnp.tanh(hidden @ params["wp"] + params["bp"])
    w1 = jnp.concatenate([params["w1a"], params["w1b"]], axis=0)
    x = jnp.concatenate([pooled, num.astype(jnp.float32)], axis=1)
    h1 = jnp.maximum(x @ w1 + params["b1"], 0.0)
    h2 = jnp.maximum(h1 @ params["w2"] + params["b2"], 0.0)
    return jax.nn.sigmoid(h2 @ params["w3"] + params["b3"])


if __name__ == "__main__":
    B, S, VOCAB = 2, 8, 32
    key = jax.random.PRNGKey(0)
    k_emb, k_ids, k_num, k_params = jax.random.split(key, 4)

    # deterministic stand-in embedding table + inputs
    embed_table = jax.random.normal(k_emb, (VOCAB, BERT_H), jnp.float32) * 0.02
    input_ids = jax.random.randint(k_ids, (B, S), 0, VOCAB)
    attention_mask = jnp.ones((B, S), jnp.float32)
    numerical_features = jax.random.normal(k_num, (B, NUM_FEATS), jnp.float32)

    params = init_params(k_params)

    # glue: embedding lookup (gather) stays in plain JAX for now (see TODO above)
    emb = jnp.take(embed_table, input_ids, axis=0)       # (B, S, 768)

    out = bot_detection_forward(emb, attention_mask, numerical_features, params)
    out = jax.block_until_ready(out)
    assert out.shape == (B, 1)
    assert bool(jnp.all((out >= 0.0) & (out <= 1.0)))

    ref = _reference_forward(emb, attention_mask, numerical_features, params)
    assert bool(jnp.all(jnp.abs(out - ref) < 3e-2)), "kernel/reference mismatch"
    print("KERNEL_OK")
</pallas_src>

<mosaic_0001>
module attributes {stable_mosaic.version = 11 : i64} {
  func.func @bot_detection_kernel(%arg0: i32, %arg1: i32, %arg2: memref<8x8x768xbf16, #tpu.memory_space<vmem>>, %arg3: memref<8x8x1xf32, #tpu.memory_space<vmem>>, %arg4: memref<8x6xf32, #tpu.memory_space<vmem>>, %arg5: memref<768x768xbf16, #tpu.memory_space<vmem>>, %arg6: memref<1x768xf32, #tpu.memory_space<vmem>>, %arg7: memref<768x256xbf16, #tpu.memory_space<vmem>>, %arg8: memref<6x256xf32, #tpu.memory_space<vmem>>, %arg9: memref<1x256xf32, #tpu.memory_space<vmem>>, %arg10: memref<256x128xbf16, #tpu.memory_space<vmem>>, %arg11: memref<1x128xf32, #tpu.memory_space<vmem>>, %arg12: memref<1x128xf32, #tpu.memory_space<vmem>>, %arg13: memref<1x1xf32, #tpu.memory_space<vmem>>, %arg14: memref<8x128xf32, #tpu.memory_space<vmem>>, %arg15: memref<8x768xf32, #tpu.memory_space<vmem>>, %arg16: memref<8x1xf32, #tpu.memory_space<vmem>>) attributes {dimension_semantics = [#tpu.dimension_semantics<parallel>, #tpu.dimension_semantics<arbitrary>], iteration_bounds = array<i64: 1, 1>, scalar_prefetch = 0 : i64, scratch_operands = 2 : i64, tpu.core_type = #tpu.core_type<tc>, window_params = [{transform_indices = @transform_0, window_bounds = array<i64: 8, 8, 768>}, {transform_indices = @transform_1, window_bounds = array<i64: 8, 8, 1>}, {transform_indices = @transform_2, window_bounds = array<i64: 8, 6>}, {pipeline_mode = #tpu.pipeline_mode<synchronous>, transform_indices = @transform_3, window_bounds = array<i64: 768, 768>}, {pipeline_mode = #tpu.pipeline_mode<synchronous>, transform_indices = @transform_4, window_bounds = array<i64: 1, 768>}, {pipeline_mode = #tpu.pipeline_mode<synchronous>, transform_indices = @transform_5, window_bounds = array<i64: 768, 256>}, {pipeline_mode = #tpu.pipeline_mode<synchronous>, transform_indices = @transform_6, window_bounds = array<i64: 6, 256>}, {pipeline_mode = #tpu.pipeline_mode<synchronous>, transform_indices = @transform_7, window_bounds = array<i64: 1, 256>}, {pipeline_mode = #tpu.pipeline_mode<synchronous>, transform_indices = @transform_8, window_bounds = array<i64: 256, 128>}, {pipeline_mode = #tpu.pipeline_mode<synchronous>, transform_indices = @transform_9, window_bounds = array<i64: 1, 128>}, {pipeline_mode = #tpu.pipeline_mode<synchronous>, transform_indices = @transform_10, window_bounds = array<i64: 1, 128>}, {pipeline_mode = #tpu.pipeline_mode<synchronous>, transform_indices = @transform_11, window_bounds = array<i64: 1, 1>}, {transform_indices = @transform_12, window_bounds = array<i64: 8, 128>}]} {
    %c0_i32 = arith.constant 0 : i32
    %0 = arith.cmpi eq, %arg1, %c0_i32 : i32
    %1 = arith.extui %0 : i1 to i32
    %c0_i32_0 = arith.constant 0 : i32
    %2 = arith.cmpi ne, %1, %c0_i32_0 : i32
    scf.if %2 {
      %cst_20 = arith.constant 0.000000e+00 : f32
      %26 = vector.broadcast %cst_20 : f32 to vector<8x768xf32>
      %c0_21 = arith.constant 0 : index
      %c0_22 = arith.constant 0 : index
      %27 = vector.load %arg15[%c0_21, %c0_22] : memref<8x768xf32, #tpu.memory_space<vmem>>, vector<8x768xf32>
      tpu.vector_store %arg15[%c0_21, %c0_22], %26 {strides = array<i32>} : memref<8x768xf32, #tpu.memory_space<vmem>>, vector<8x768xf32>,
      %cst_23 = arith.constant 0.000000e+00 : f32
      %28 = vector.broadcast %cst_23 : f32 to vector<8x1xf32>
      %c0_24 = arith.constant 0 : index
      %c0_25 = arith.constant 0 : index
      %29 = vector.load %arg16[%c0_24, %c0_25] : memref<8x1xf32, #tpu.memory_space<vmem>>, vector<8x1xf32>
      tpu.vector_store %arg16[%c0_24, %c0_25], %28 {strides = array<i32>} : memref<8x1xf32, #tpu.memory_space<vmem>>, vector<8x1xf32>,
    } else {
    }
    %cst = arith.constant 0.000000e+00 : f32
    %3 = vector.broadcast %cst : f32 to vector<8x768xf32>
    %c0_i32_1 = arith.constant 0 : i32
    %c8_i32 = arith.constant 8 : i32
    %4 = arith.muli %c0_i32_1, %c8_i32 : i32
    %5 = tpu.assume_multiple %4, 8 : i32
    %c0 = arith.constant 0 : index
    %6 = arith.index_cast %5 : i32 to index
    %c0_2 = arith.constant 0 : index
    %7 = vector.load %arg2[%c0, %6, %c0_2] : memref<8x8x768xbf16, #tpu.memory_space<vmem>>, vector<8x8x768xbf16>
    %8 = arith.extf %7 : vector<8x8x768xbf16> to vector<8x8x768xf32>
    %c0_3 = arith.constant 0 : index
    %9 = arith.index_cast %5 : i32 to index
    %c0_4 = arith.constant 0 : index
    %10 = vector.load %arg3[%c0_3, %9, %c0_4] : memref<8x8x1xf32, #tpu.memory_space<vmem>>, vector<8x8x1xf32>
    %11 = vector.broadcast %10 : vector<8x8x1xf32> to vector<8x8x768xf32>
    %12 = arith.mulf %8, %11 : vector<8x8x768xf32>
    %cst_5 = arith.constant dense<0.000000e+00> : vector<8x768xf32>
    %13 = vector.multi_reduction <add>, %12, %cst_5 [1] : vector<8x8x768xf32> to vector<8x768xf32>
    %14 = arith.addf %3, %13 : vector<8x768xf32>
    %c1_i32 = arith.constant 1 : i32
    %c0_6 = arith.constant 0 : index
    %c0_7 = arith.constant 0 : index
    %15 = vector.load %arg15[%c0_6, %c0_7] : memref<8x768xf32, #tpu.memory_space<vmem>>, vector<8x768xf32>
    %16 = arith.addf %15, %14 : vector<8x768xf32>
    %c0_8 = arith.constant 0 : index
    %c0_9 = arith.constant 0 : index
    %17 = vector.load %arg15[%c0_8, %c0_9] : memref<8x768xf32, #tpu.memory_space<vmem>>, vector<8x768xf32>
    tpu.vector_store %arg15[%c0_8, %c0_9], %16 {strides = array<i32>} : memref<8x768xf32, #tpu.memory_space<vmem>>, vector<8x768xf32>,
    %c0_10 = arith.constant 0 : index
    %c0_11 = arith.constant 0 : index
    %18 = vector.load %arg16[%c0_10, %c0_11] : memref<8x1xf32, #tpu.memory_space<vmem>>, vector<8x1xf32>
    %c0_12 = arith.constant 0 : index
    %c0_13 = arith.constant 0 : index
    %c0_14 = arith.constant 0 : index
    %19 = vector.load %arg3[%c0_12, %c0_13, %c0_14] : memref<8x8x1xf32, #tpu.memory_space<vmem>>, vector<8x8x1xf32>
    %cst_15 = arith.constant dense<0.000000e+00> : vector<8x1xf32>
    %20 = vector.multi_reduction <add>, %19, %cst_15 [1] : vector<8x8x1xf32> to vector<8x1xf32>
    %21 = arith.addf %18, %20 : vector<8x1xf32>
    %c0_16 = arith.constant 0 : index
    %c0_17 = arith.constant 0 : index
    %22 = vector.load %arg16[%c0_16, %c0_17] : memref<8x1xf32, #tpu.memory_space<vmem>>, vector<8x1xf32>
    tpu.vector_store %arg16[%c0_16, %c0_17], %21 {strides = array<i32>} : memref<8x1xf32, #tpu.memory_space<vmem>>, vector<8x1xf32>,
    %c0_i32_18 = arith.constant 0 : i32
    %23 = arith.cmpi eq, %arg1, %c0_i32_18 : i32
    %24 = arith.extui %23 : i1 to i32
    %c0_i32_19 = arith.constant 0 : i32
    %25 = arith.cmpi ne, %24, %c0_i32_19 : i32
    scf.if %25 {
      %c0_20 = arith.constant 0 : index
      %c0_21 = arith.constant 0 : index
      %26 = vector.load %arg16[%c0_20, %c0_21] : memref<8x1xf32, #tpu.memory_space<vmem>>, vector<8x1xf32>
      %cst_22 = arith.constant 1.000000e+00 : f32
      %27 = vector.broadcast %cst_22 : f32 to vector<8x1xf32>
      %28 = arith.maximumf %26, %27 : vector<8x1xf32>
      %c0_23 = arith.constant 0 : index
      %c0_24 = arith.constant 0 : index
      %29 = vector.load %arg15[%c0_23, %c0_24] : memref<8x768xf32, #tpu.memory_space<vmem>>, vector<8x768xf32>
      %30 = tpu.reciprocal %28 {approx = true} : vector<8x1xf32> -> vector<8x1xf32>
      %31 = vector.broadcast %30 : vector<8x1xf32> to vector<8x768xf32>
      %32 = arith.mulf %29, %31 : vector<8x768xf32>
      %33 = arith.truncf %32 : vector<8x768xf32> to vector<8x768xbf16>
      %c0_25 = arith.constant 0 : index
      %c0_26 = arith.constant 0 : index
      %34 = vector.load %arg5[%c0_25, %c0_26] : memref<768x768xbf16, #tpu.memory_space<vmem>>, vector<768x768xbf16>
      %cst_27 = arith.constant dense<0.000000e+00> : vector<8x768xf32>
      %35 = tpu.matmul %33, %34, %cst_27 {dimension_numbers = #tpu.dot_dimension_numbers<[1], [0], [0], [1], [0, 0, 1, 1], [], []>} : vector<8x768xbf16>, vector<768x768xbf16>, vector<8x768xf32> -> vector<8x768xf32>
      %c0_28 = arith.constant 0 : index
      %c0_29 = arith.constant 0 : index
      %36 = vector.load %arg6[%c0_28, %c0_29] : memref<1x768xf32, #tpu.memory_space<vmem>>, vector<1x768xf32>
      %37 = vector.broadcast %36 : vector<1x768xf32> to vector<8x768xf32>
      %38 = arith.addf %35, %37 : vector<8x768xf32>
      %39 = math.tanh %38 : vector<8x768xf32>
      %40 = arith.truncf %39 : vector<8x768xf32> to vector<8x768xbf16>
      %c0_30 = arith.constant 0 : index
      %c0_31 = arith.constant 0 : index
      %41 = vector.load %arg7[%c0_30, %c0_31] : memref<768x256xbf16, #tpu.memory_space<vmem>>, vector<768x256xbf16>
      %cst_32 = arith.constant dense<0.000000e+00> : vector<8x256xf32>
      %42 = tpu.matmul %40, %41, %cst_32 {dimension_numbers = #tpu.dot_dimension_numbers<[1], [0], [0], [1], [0, 0, 1, 1], [], []>} : vector<8x768xbf16>, vector<768x256xbf16>, vector<8x256xf32> -> vector<8x256xf32>
      %c0_33 = arith.constant 0 : index
      %c0_34 = arith.constant 0 : index
      %43 = vector.load %arg9[%c0_33, %c0_34] : memref<1x256xf32, #tpu.memory_space<vmem>>, vector<1x256xf32>
      %44 = vector.broadcast %43 : vector<1x256xf32> to vector<8x256xf32>
      %45 = arith.addf %42, %44 : vector<8x256xf32>
      %c0_35 = arith.constant 0 : index
      %c0_36 = arith.constant 0 : index
      %46 = vector.load %arg4[%c0_35, %c0_36] : memref<8x6xf32, #tpu.memory_space<vmem>>, vector<8x6xf32>
      %c0_37 = arith.constant 0 : index
      %c0_38 = arith.constant 0 : index
      %47 = vector.load %arg8[%c0_37, %c0_38] : memref<6x256xf32, #tpu.memory_space<vmem>>, vector<6x256xf32>
      %48 = vector.extract_strided_slice %46 {offsets = [0, 0], sizes = [8, 1], strides = [1, 1]} : vector<8x6xf32> to vector<8x1xf32>
      %49 = vector.extract_strided_slice %47 {offsets = [0, 0], sizes = [1, 256], strides = [1, 1]} : vector<6x256xf32> to vector<1x256xf32>
      %50 = vector.broadcast %48 : vector<8x1xf32> to vector<8x256xf32>
      %51 = vector.broadcast %49 : vector<1x256xf32> to vector<8x256xf32>
      %52 = arith.mulf %50, %51 : vector<8x256xf32>
      %53 = arith.addf %45, %52 : vector<8x256xf32>
      %54 = vector.extract_strided_slice %46 {offsets = [0, 1], sizes = [8, 1], strides = [1, 1]} : vector<8x6xf32> to vector<8x1xf32>
      %55 = vector.extract_strided_slice %47 {offsets = [1, 0], sizes = [1, 256], strides = [1, 1]} : vector<6x256xf32> to vector<1x256xf32>
      %56 = vector.broadcast %54 : vector<8x1xf32> to vector<8x256xf32>
      %57 = vector.broadcast %55 : vector<1x256xf32> to vector<8x256xf32>
      %58 = arith.mulf %56, %57 : vector<8x256xf32>
      %59 = arith.addf %53, %58 : vector<8x256xf32>
      %60 = vector.extract_strided_slice %46 {offsets = [0, 2], sizes = [8, 1], strides = [1, 1]} : vector<8x6xf32> to vector<8x1xf32>
      %61 = vector.extract_strided_slice %47 {offsets = [2, 0], sizes = [1, 256], strides = [1, 1]} : vector<6x256xf32> to vector<1x256xf32>
      %62 = vector.broadcast %60 : vector<8x1xf32> to vector<8x256xf32>
      %63 = vector.broadcast %61 : vector<1x256xf32> to vector<8x256xf32>
      %64 = arith.mulf %62, %63 : vector<8x256xf32>
      %65 = arith.addf %59, %64 : vector<8x256xf32>
      %66 = vector.extract_strided_slice %46 {offsets = [0, 3], sizes = [8, 1], strides = [1, 1]} : vector<8x6xf32> to vector<8x1xf32>
      %67 = vector.extract_strided_slice %47 {offsets = [3, 0], sizes = [1, 256], strides = [1, 1]} : vector<6x256xf32> to vector<1x256xf32>
      %68 = vector.broadcast %66 : vector<8x1xf32> to vector<8x256xf32>
      %69 = vector.broadcast %67 : vector<1x256xf32> to vector<8x256xf32>
      %70 = arith.mulf %68, %69 : vector<8x256xf32>
      %71 = arith.addf %65, %70 : vector<8x256xf32>
      %72 = vector.extract_strided_slice %46 {offsets = [0, 4], sizes = [8, 1], strides = [1, 1]} : vector<8x6xf32> to vector<8x1xf32>
      %73 = vector.extract_strided_slice %47 {offsets = [4, 0], sizes = [1, 256], strides = [1, 1]} : vector<6x256xf32> to vector<1x256xf32>
      %74 = vector.broadcast %72 : vector<8x1xf32> to vector<8x256xf32>
      %75 = vector.broadcast %73 : vector<1x256xf32> to vector<8x256xf32>
      %76 = arith.mulf %74, %75 : vector<8x256xf32>
      %77 = arith.addf %71, %76 : vector<8x256xf32>
      %78 = vector.extract_strided_slice %46 {offsets = [0, 5], sizes = [8, 1], strides = [1, 1]} : vector<8x6xf32> to vector<8x1xf32>
      %79 = vector.extract_strided_slice %47 {offsets = [5, 0], sizes = [1, 256], strides = [1, 1]} : vector<6x256xf32> to vector<1x256xf32>
      %80 = vector.broadcast %78 : vector<8x1xf32> to vector<8x256xf32>
      %81 = vector.broadcast %79 : vector<1x256xf32> to vector<8x256xf32>
      %82 = arith.mulf %80, %81 : vector<8x256xf32>
      %83 = arith.addf %77, %82 : vector<8x256xf32>
      %cst_39 = arith.constant 0.000000e+00 : f32
      %84 = vector.broadcast %cst_39 : f32 to vector<8x256xf32>
      %85 = arith.maximumf %83, %84 : vector<8x256xf32>
      %86 = arith.truncf %85 : vector<8x256xf32> to vector<8x256xbf16>
      %c0_40 = arith.constant 0 : index
      %c0_41 = arith.constant 0 : index
      %87 = vector.load %arg10[%c0_40, %c0_41] : memref<256x128xbf16, #tpu.memory_space<vmem>>, vector<256x128xbf16>
      %cst_42 = arith.constant dense<0.000000e+00> : vector<8x128xf32>
      %88 = tpu.matmul %86, %87, %cst_42 {dimension_numbers = #tpu.dot_dimension_numbers<[1], [0], [0], [1], [0, 0, 1, 1], [], []>} : vector<8x256xbf16>, vector<256x128xbf16>, vector<8x128xf32> -> vector<8x128xf32>
      %c0_43 = arith.constant 0 : index
      %c0_44 = arith.constant 0 : index
      %89 = vector.load %arg11[%c0_43, %c0_44] : memref<1x128xf32, #tpu.memory_space<vmem>>, vector<1x128xf32>
      %90 = vector.broadcast %89 : vector<1x128xf32> to vector<8x128xf32>
      %91 = arith.addf %88, %90 : vector<8x128xf32>
      %cst_45 = arith.constant 0.000000e+00 : f32
      %92 = vector.broadcast %cst_45 : f32 to vector<8x128xf32>
      %93 = arith.maximumf %91, %92 : vector<8x128xf32>
      %c0_46 = arith.constant 0 : index
      %c0_47 = arith.constant 0 : index
      %94 = vector.load %arg12[%c0_46, %c0_47] : memref<1x128xf32, #tpu.memory_space<vmem>>, vector<1x128xf32>
      %95 = vector.broadcast %94 : vector<1x128xf32> to vector<8x128xf32>
      %96 = arith.mulf %93, %95 : vector<8x128xf32>
      %cst_48 = arith.constant dense<0.000000e+00> : vector<8xf32>
      %97 = vector.multi_reduction <add>, %96, %cst_48 [1] : vector<8x128xf32> to vector<8xf32>
      %98 = vector.shape_cast %97 : vector<8xf32> to vector<8x1xf32>
      %c0_49 = arith.constant 0 : index
      %c0_50 = arith.constant 0 : index
      %99 = vector.load %arg13[%c0_49, %c0_50] : memref<1x1xf32, #tpu.memory_space<vmem>>, vector<1x1xf32>
      %100 = vector.broadcast %99 : vector<1x1xf32> to vector<8x1xf32>
      %101 = arith.addf %98, %100 : vector<8x1xf32>
      %102 = arith.negf %101 : vector<8x1xf32>
      %103 = math.exp %102 : vector<8x1xf32>
      %cst_51 = arith.constant 1.000000e+00 : f32
      %104 = vector.broadcast %cst_51 : f32 to vector<8x1xf32>
      %105 = arith.addf %104, %103 : vector<8x1xf32>
      %106 = arith.divf %104, %105 : vector<8x1xf32>
      %107 = vector.shape_cast %106 : vector<8x1xf32> to vector<8x1xf32>
      %108 = vector.broadcast %107 : vector<8x1xf32> to vector<8x128xf32>
      %c0_52 = arith.constant 0 : index
      %c0_53 = arith.constant 0 : index
      %109 = vector.load %arg14[%c0_52, %c0_53] : memref<8x128xf32, #tpu.memory_space<vmem>>, vector<8x128xf32>
      tpu.vector_store %arg14[%c0_52, %c0_53], %108 {strides = array<i32>} : memref<8x128xf32, #tpu.memory_space<vmem>>, vector<8x128xf32>,
    } else {
    }
    return
  }
  func.func @transform_0(%arg0: i32, %arg1: i32) -> (i32, i32, i32) {
    %c0_i32 = arith.constant 0 : i32
    %c0_i32_0 = arith.constant 0 : i32
    return %arg0, %arg1, %c0_i32 : i32, i32, i32
  }
  func.func @transform_1(%arg0: i32, %arg1: i32) -> (i32, i32, i32) {
    %c0_i32 = arith.constant 0 : i32
    %c0_i32_0 = arith.constant 0 : i32
    return %arg0, %arg1, %c0_i32 : i32, i32, i32
  }
  func.func @transform_2(%arg0: i32, %arg1: i32) -> (i32, i32) {
    %c0_i32 = arith.constant 0 : i32
    %c0_i32_0 = arith.constant 0 : i32
    return %arg0, %c0_i32 : i32, i32
  }
  func.func @transform_3(%arg0: i32, %arg1: i32) -> (i32, i32) {
    %c0_i32 = arith.constant 0 : i32
    %c0_i32_0 = arith.constant 0 : i32
    %c0_i32_1 = arith.constant 0 : i32
    return %c0_i32, %c0_i32_0 : i32, i32
  }
  func.func @transform_4(%arg0: i32, %arg1: i32) -> (i32, i32) {
    %c0_i32 = arith.constant 0 : i32
    %c0_i32_0 = arith.constant 0 : i32
    %c0_i32_1 = arith.constant 0 : i32
    return %c0_i32, %c0_i32_0 : i32, i32
  }
  func.func @transform_5(%arg0: i32, %arg1: i32) -> (i32, i32) {
    %c0_i32 = arith.constant 0 : i32
    %c0_i32_0 = arith.constant 0 : i32
    %c0_i32_1 = arith.constant 0 : i32
    return %c0_i32, %c0_i32_0 : i32, i32
  }
  func.func @transform_6(%arg0: i32, %arg1: i32) -> (i32, i32) {
    %c0_i32 = arith.constant 0 : i32
    %c0_i32_0 = arith.constant 0 : i32
    %c0_i32_1 = arith.constant 0 : i32
    return %c0_i32, %c0_i32_0 : i32, i32
  }
  func.func @transform_7(%arg0: i32, %arg1: i32) -> (i32, i32) {
    %c0_i32 = arith.constant 0 : i32
    %c0_i32_0 = arith.constant 0 : i32
    %c0_i32_1 = arith.constant 0 : i32
    return %c0_i32, %c0_i32_0 : i32, i32
  }
  func.func @transform_8(%arg0: i32, %arg1: i32) -> (i32, i32) {
    %c0_i32 = arith.constant 0 : i32
    %c0_i32_0 = arith.constant 0 : i32
    %c0_i32_1 = arith.constant 0 : i32
    return %c0_i32, %c0_i32_0 : i32, i32
  }
  func.func @transform_9(%arg0: i32, %arg1: i32) -> (i32, i32) {
    %c0_i32 = arith.constant 0 : i32
    %c0_i32_0 = arith.constant 0 : i32
    %c0_i32_1 = arith.constant 0 : i32
    return %c0_i32, %c0_i32_0 : i32, i32
  }
  func.func @transform_10(%arg0: i32, %arg1: i32) -> (i32, i32) {
    %c0_i32 = arith.constant 0 : i32
    %c0_i32_0 = arith.constant 0 : i32
    %c0_i32_1 = arith.constant 0 : i32
    return %c0_i32, %c0_i32_0 : i32, i32
  }
  func.func @transform_11(%arg0: i32, %arg1: i32) -> (i32, i32) {
    %c0_i32 = arith.constant 0 : i32
    %c0_i32_0 = arith.constant 0 : i32
    %c0_i32_1 = arith.constant 0 : i32
    return %c0_i32, %c0_i32_0 : i32, i32
  }
  func.func @transform_12(%arg0: i32, %arg1: i32) -> (i32, i32) {
    %c0_i32 = arith.constant 0 : i32
    %c0_i32_0 = arith.constant 0 : i32
    return %arg0, %c0_i32 : i32, i32
  }
}

</mosaic_0001>

<llo_original>
// kernel: tpu_custom_call.1
$region0: #{tpu_custom_call.1}
  #allocation0 [shape = 'u32[]', space=smem, size = 0x4, offset = 0x4, fixed_abs, tag = 'smem constant byte address 0x4 - core index']
  #allocation1 [shape = 'u32[144,128]{1,0:T(1,128)}', space=vmem, size = 0x12000, scoped, tag = 'internal scratch']
  #allocation2 [shape = 'f32[8,768]{1,0:T(8,128)}', space=vmem, size = 0x6000, scoped, tag = 'scratch operand']
  #allocation3 [shape = 'f32[8,1]{1,0:T(8,128)}', space=vmem, size = 0x1000, scoped, tag = 'scratch operand']
  #allocation4 [shape = 'f32[1,1]{1,0:T(1,128)S(1)}', space=vmem, size = 0x200, scoped, tag = 'scoped memory for tpu_custom_call.1']
  %s0 = inlined_call_operand.hbm [shape: bf16[8,8,768], index: 0, kind: input, shape index: {}]
  %s1 = inlined_call_operand.vmem [shape: f32[8,8,1], index: 1, kind: input, shape index: {}]
  %s2 = inlined_call_operand.hbm [shape: f32[8,6], index: 2, kind: input, shape index: {}]
  %s3 = inlined_call_operand.hbm [shape: bf16[768,768], index: 3, kind: input, shape index: {}]
  %s4 = inlined_call_operand.hbm [shape: f32[1,768], index: 4, kind: input, shape index: {}]
  %s5 = inlined_call_operand.hbm [shape: bf16[768,256], index: 5, kind: input, shape index: {}]
  %s6 = inlined_call_operand.hbm [shape: f32[6,256], index: 6, kind: input, shape index: {}]
  %s7 = inlined_call_operand.hbm [shape: f32[1,256], index: 7, kind: input, shape index: {}]
  %s8 = inlined_call_operand.hbm [shape: bf16[256,128], index: 8, kind: input, shape index: {}]
  %s9 = inlined_call_operand.hbm [shape: f32[1,128], index: 9, kind: input, shape index: {}]
  %s10 = inlined_call_operand.hbm [shape: f32[1,128], index: 10, kind: input, shape index: {}]
  %s11 = inlined_call_operand.<no memory space> [shape: f32[1,1], index: 11, kind: input, shape index: {}]
  %s12 = inlined_call_operand.hbm [shape: f32[8,128], index: 12, kind: output, shape index: {}]
  %s13 = sld [smem:[#allocation0]]
  $region106: #{tpu_custom_call.1} parent=0
    _
  %s15 = ssub.s32 1, %s13
  %s16 = scalar_select 0, %s15, %s13
  %v17 = vstv %s11
  %18 = vst [vmem:[#allocation4] sm:$0x1] %v17
  $region1: #{tpu_custom_call.1} parent=0
    #allocation5 [shape = 'u8[98304]{0}', space=vmem, size = 0x18000, scoped, tag = 'input window, operand 0, single buffered']
    #allocation6 [shape = 's32[1]{0}', space=sflag, size = 0x4, scoped, tag = 'scoped memory for tpu_custom_call.1']
    #allocation7 [shape = 's32[1]{0}', space=sflag, size = 0x4, scoped, tag = 'scoped memory for tpu_custom_call.1']
    #allocation8 [shape = 'u8[4096]{0}', space=vmem, size = 0x1000, scoped, tag = 'input window, operand 2, single buffered']
    #allocation9 [shape = 's32[1]{0}', space=sflag, size = 0x4, scoped, tag = 'scoped memory for tpu_custom_call.1']
    #allocation10 [shape = 'u8[1179648]{0}', space=vmem, size = 0x120000, scoped, tag = 'input window, operand 3, single buffered']
    #allocation11 [shape = 'u8[3072]{0}', space=vmem, size = 0xc00, scoped, tag = 'input window, operand 4, single buffered']
    #allocation12 [shape = 's32[1]{0}', space=sflag, size = 0x4, scoped, tag = 'scoped memory for tpu_custom_call.1']
    #allocation13 [shape = 'u8[393216]{0}', space=vmem, size = 0x60000, scoped, tag = 'input window, operand 5, single buffered']
    #allocation14 [shape = 'u8[8192]{0}', space=vmem, size = 0x2000, scoped, tag = 'input window, operand 6, single buffered']
    #allocation15 [shape = 's32[1]{0}', space=sflag, size = 0x4, scoped, tag = 'scoped memory for tpu_custom_call.1']
    #allocation16 [shape = 'u8[1024]{0}', space=vmem, size = 0x400, scoped, tag = 'input window, operand 7, single buffered']
    #allocation17 [shape = 'u8[65536]{0}', space=vmem, size = 0x10000, scoped, tag = 'input window, operand 8, single buffered']
    #allocation18 [shape = 's32[1]{0}', space=sflag, size = 0x4, scoped, tag = 'scoped memory for tpu_custom_call.1']
    #allocation19 [shape = 'u8[512]{0}', space=vmem, size = 0x400, scoped, tag = 'input window, operand 9, single buffered']
    #allocation20 [shape = 'u8[512]{0}', space=vmem, size = 0x400, scoped, tag = 'input window, operand 10, single buffered']
    #allocation21 [shape = 's32[1]{0}', space=sflag, size = 0x4, scoped, tag = 'scoped memory for tpu_custom_call.1']
    #allocation22 [shape = 'u8[4096]{0}', space=vmem, size = 0x1000, scoped, tag = 'output window, operand 0, single buffered']
    %19 = vsyncpa [#allocation6], 0
    %20 = vsyncpa [#allocation9], 0
    %21 = vsyncpa [#allocation12], 0
    %22 = vsyncpa [#allocation15], 0
    %23 = vsyncpa [#allocation18], 0
    %24 = vsyncpa [#allocation21], 0
    %25 = vsyncpa [#allocation7], 0
    // Predicated region
    $region2: #{tpu_custom_call.1} parent=1 // pred_check
      _
    $region3: #{tpu_custom_call.1} parent=1 // pred_check_branch
      %27 = sbr.rel (0) target = $region5
    $region4: #{tpu_custom_call.1} parent=1 // pred_region
      %s29 = ssub.s32 3072, 3072
      %30 = vsyncadd [#allocation6], %s29
      %s31 = sshll.u32 [#allocation5], 4
      %s32 = int_to_ptr.vmem [resolvable:$true] %s31
      %37 = dma.hbm_to_vmem [thread:$0]  %s0, 3072, %s32, [#allocation6], 384, 384, 24
    $region5: #{tpu_custom_call.1} parent=1 // pred_fallthru
      _
    // Predicated region
    $region6: #{tpu_custom_call.1} parent=1 // pred_check
      _
    $region7: #{tpu_custom_call.1} parent=1 // pred_check_branch
      %39 = sbr.rel (0) target = $region9
    $region8: #{tpu_custom_call.1} parent=1 // pred_region
      _
    $region9: #{tpu_custom_call.1} parent=1 // pred_fallthru
      _
    // Predicated region
    $region10: #{tpu_custom_call.1} parent=1 // pred_check
      _
    $region11: #{tpu_custom_call.1} parent=1 // pred_check_branch
      %41 = sbr.rel (0) target = $region13
    $region12: #{tpu_custom_call.1} parent=1 // pred_region
      %s43 = ssub.s32 128, 128
      %44 = vsyncadd [#allocation9], %s43
      %s46 = sshll.u32 [#allocation8], 4
      %s47 = int_to_ptr.vmem [resolvable:$true] %s46
      %49 = dma.hbm_to_vmem [thread:$0]  %s2, 128, %s47, [#allocation9]
    $region13: #{tpu_custom_call.1} parent=1 // pred_fallthru
      _
    // Predicated region
    $region14: #{tpu_custom_call.1} parent=1 // pred_check
      _
    $region15: #{tpu_custom_call.1} parent=1 // pred_check_branch
      %51 = sbr.rel (0) target = $region17
    $region16: #{tpu_custom_call.1} parent=1 // pred_region
      %s53 = ssub.s32 36864, 36864
      %54 = vsyncadd [#allocation9], %s53
      %s55 = sshll.u32 [#allocation10], 4
      %s56 = int_to_ptr.vmem [resolvable:$true] %s55
      %61 = dma.hbm_to_vmem [thread:$0]  %s3, 36864, %s56, [#allocation9], 384, 384, 24
    $region17: #{tpu_custom_call.1} parent=1 // pred_fallthru
      _
    // Predicated region
    $region18: #{tpu_custom_call.1} parent=1 // pred_check
      _
    $region19: #{tpu_custom_call.1} parent=1 // pred_check_branch
      %63 = sbr.rel (0) target = $region21
    $region20: #{tpu_custom_call.1} parent=1 // pred_region
      %s65 = ssub.s32 96, 96
      %66 = vsyncadd [#allocation12], %s65
      %s68 = sshll.u32 [#allocation11], 4
      %s69 = int_to_ptr.vmem [resolvable:$true] %s68
      %71 = dma.hbm_to_vmem [thread:$0]  %s4, 96, %s69, [#allocation12]
    $region21: #{tpu_custom_call.1} parent=1 // pred_fallthru
      _
    // Predicated region
    $region22: #{tpu_custom_call.1} parent=1 // pred_check
      _
    $region23: #{tpu_custom_call.1} parent=1 // pred_check_branch
      %73 = sbr.rel (0) target = $region25
    $region24: #{tpu_custom_call.1} parent=1 // pred_region
      %s75 = ssub.s32 12288, 12288
      %76 = vsyncadd [#allocation12], %s75
      %s77 = sshll.u32 [#allocation13], 4
      %s78 = int_to_ptr.vmem [resolvable:$true] %s77
      %83 = dma.hbm_to_vmem [thread:$0]  %s5, 12288, %s78, [#allocation12], 128, 128, 8
    $region25: #{tpu_custom_call.1} parent=1 // pred_fallthru
      _
    // Predicated region
    $region26: #{tpu_custom_call.1} parent=1 // pred_check
      _
    $region27: #{tpu_custom_call.1} parent=1 // pred_check_branch
      %85 = sbr.rel (0) target = $region29
    $region28: #{tpu_custom_call.1} parent=1 // pred_region
      %s87 = ssub.s32 256, 256
      %88 = vsyncadd [#allocation15], %s87
      %s90 = sshll.u32 [#allocation14], 4
      %s91 = int_to_ptr.vmem [resolvable:$true] %s90
      %93 = dma.hbm_to_vmem [thread:$0]  %s6, 256, %s91, [#allocation15]
    $region29: #{tpu_custom_call.1} parent=1 // pred_fallthru
      _
    // Predicated region
    $region30: #{tpu_custom_call.1} parent=1 // pred_check
      _
    $region31: #{tpu_custom_call.1} parent=1 // pred_check_branch
      %95 = sbr.rel (0) target = $region33
    $region32: #{tpu_custom_call.1} parent=1 // pred_region
      %s97 = ssub.s32 32, 32
      %98 = vsyncadd [#allocation15], %s97
      %s100 = sshll.u32 [#allocation16], 4
      %s101 = int_to_ptr.vmem [resolvable:$true] %s100
      %103 = dma.hbm_to_vmem [thread:$0]  %s7, 32, %s101, [#allocation15]
    $region33: #{tpu_custom_call.1} parent=1 // pred_fallthru
      _
    // Predicated region
    $region34: #{tpu_custom_call.1} parent=1 // pred_check
      _
    $region35: #{tpu_custom_call.1} parent=1 // pred_check_branch
      %105 = sbr.rel (0) target = $region37
    $region36: #{tpu_custom_call.1} parent=1 // pred_region
      %s107 = ssub.s32 2048, 2048
      %108 = vsyncadd [#allocation18], %s107
      %s109 = sshll.u32 [#allocation17], 4
      %s110 = int_to_ptr.vmem [resolvable:$true] %s109
      %115 = dma.hbm_to_vmem [thread:$0]  %s8, 2048, %s110, [#allocation18], 64, 64, 4
    $region37: #{tpu_custom_call.1} parent=1 // pred_fallthru
      _
    // Predicated region
    $region38: #{tpu_custom_call.1} parent=1 // pred_check
      _
    $region39: #{tpu_custom_call.1} parent=1 // pred_check_branch
      %117 = sbr.rel (0) target = $region41
    $region40: #{tpu_custom_call.1} parent=1 // pred_region
      %s119 = ssub.s32 16, 16
      %120 = vsyncadd [#allocation18], %s119
      %s122 = sshll.u32 [#allocation19], 4
      %s123 = int_to_ptr.vmem [resolvable:$true] %s122
      %125 = dma.hbm_to_vmem [thread:$0]  %s9, 16, %s123, [#allocation18]
    $region41: #{tpu_custom_call.1} parent=1 // pred_fallthru
      _
    // Predicated region
    $region42: #{tpu_custom_call.1} parent=1 // pred_check
      _
    $region43: #{tpu_custom_call.1} parent=1 // pred_check_branch
      %127 = sbr.rel (0) target = $region45
    $region44: #{tpu_custom_call.1} parent=1 // pred_region
      %s129 = ssub.s32 16, 16
      %130 = vsyncadd [#allocation21], %s129
      %s132 = sshll.u32 [#allocation20], 4
      %s133 = int_to_ptr.vmem [resolvable:$true] %s132
      %135 = dma.hbm_to_vmem [thread:$0]  %s10, 16, %s133, [#allocation21]
    $region45: #{tpu_custom_call.1} parent=1 // pred_fallthru
      _
    // Predicated region
    $region46: #{tpu_custom_call.1} parent=1 // pred_check
      _
    $region47: #{tpu_custom_call.1} parent=1 // pred_check_branch
      %137 = sbr.rel (0) target = $region49
    $region48: #{tpu_custom_call.1} parent=1 // pred_region
      _
    $region49: #{tpu_custom_call.1} parent=1 // pred_fallthru
      _
    // Predicated region
    $region50: #{tpu_custom_call.1} parent=1 // pred_check
      _
    $region51: #{tpu_custom_call.1} parent=1 // pred_check_branch
      %139 = sbr.rel (0) target = $region53
    $region52: #{tpu_custom_call.1} parent=1 // pred_region
      %140 = dma.done [#allocation6], 3072
    $region53: #{tpu_custom_call.1} parent=1 // pred_fallthru
      _
    // Predicated region
    $region54: #{tpu_custom_call.1} parent=1 // pred_check
      _
    $region55: #{tpu_custom_call.1} parent=1 // pred_check_branch
      %142 = sbr.rel (0) target = $region57
    $region56: #{tpu_custom_call.1} parent=1 // pred_region
      %143 = dma.done [#allocation9], 128
    $region57: #{tpu_custom_call.1} parent=1 // pred_fallthru
      _
    // Predicated region
    $region58: #{tpu_custom_call.1} parent=1 // pred_check
      _
    $region59: #{tpu_custom_call.1} parent=1 // pred_check_branch
      %145 = sbr.rel (0) target = $region61
    $region60: #{tpu_custom_call.1} parent=1 // pred_region
      %146 = dma.done [#allocation9], 36864
    $region61: #{tpu_custom_call.1} parent=1 // pred_fallthru
      _
    // Predicated region
    $region62: #{tpu_custom_call.1} parent=1 // pred_check
      _
    $region63: #{tpu_custom_call.1} parent=1 // pred_check_branch
      %148 = sbr.rel (0) target = $region65
    $region64: #{tpu_custom_call.1} parent=1 // pred_region
      %149 = dma.done [#allocation12], 96
    $region65: #{tpu_custom_call.1} parent=1 // pred_fallthru
      _
    // Predicated region
    $region66: #{tpu_custom_call.1} parent=1 // pred_check
      _
    $region67: #{tpu_custom_call.1} parent=1 // pred_check_branch
      %151 = sbr.rel (0) target = $region69
    $region68: #{tpu_custom_call.1} parent=1 // pred_region
      %152 = dma.done [#allocation12], 12288
    $region69: #{tpu_custom_call.1} parent=1 // pred_fallthru
      _
    // Predicated region
    $region70: #{tpu_custom_call.1} parent=1 // pred_check
      _
    $region71: #{tpu_custom_call.1} parent=1 // pred_check_branch
      %154 = sbr.rel (0) target = $region73
    $region72: #{tpu_custom_call.1} parent=1 // pred_region
      %155 = dma.done [#allocation15], 256
    $region73: #{tpu_custom_call.1} parent=1 // pred_fallthru
      _
    // Predicated region
    $region74: #{tpu_custom_call.1} parent=1 // pred_check
      _
    $region75: #{tpu_custom_call.1} parent=1 // pred_check_branch
      %157 = sbr.rel (0) target = $region77
    $region76: #{tpu_custom_call.1} parent=1 // pred_region
      %158 = dma.done [#allocation15], 32
    $region77: #{tpu_custom_call.1} parent=1 // pred_fallthru
      _
    // Predicated region
    $region78: #{tpu_custom_call.1} parent=1 // pred_check
      _
    $region79: #{tpu_custom_call.1} parent=1 // pred_check_branch
      %160 = sbr.rel (0) target = $region81
    $region80: #{tpu_custom_call.1} parent=1 // pred_region
      %161 = dma.done [#allocation18], 2048
    $region81: #{tpu_custom_call.1} parent=1 // pred_fallthru
      _
    // Predicated region
    $region82: #{tpu_custom_call.1} parent=1 // pred_check
      _
    $region83: #{tpu_custom_call.1} parent=1 // pred_check_branch
      %163 = sbr.rel (0) target = $region85
    $region84: #{tpu_custom_call.1} parent=1 // pred_region
      %164 = dma.done [#allocation18], 16
    $region85: #{tpu_custom_call.1} parent=1 // pred_fallthru
      _
    // Predicated region
    $region86: #{tpu_custom_call.1} parent=1 // pred_check
      _
    $region87: #{tpu_custom_call.1} parent=1 // pred_check_branch
      %166 = sbr.rel (0) target = $region89
    $region88: #{tpu_custom_call.1} parent=1 // pred_region
      %167 = dma.done [#allocation21], 16
    $region89: #{tpu_custom_call.1} parent=1 // pred_fallthru
      _
    %p169 = scmp.eq.s32.totalorder 0, 0
    // Predicated region
    $region90: #{tpu_custom_call.1} parent=1 // pred_check
      %p170 = pneg %p169
    $region91: #{tpu_custom_call.1} parent=1 // pred_check_branch
      %172 = sbr.rel (%p170) target = $region93
    $region92: #{tpu_custom_call.1} parent=1 // pred_region
      %173 = vst [vmem:[#allocation2] sm:$0xff] 0.0
      %174 = vst [vmem:[#allocation2 + $0x8] sm:$0xff] 0.0
      %175 = vst [vmem:[#allocation2 + $0x10] sm:$0xff] 0.0
      %176 = vst [vmem:[#allocation2 + $0x18] sm:$0xff] 0.0
      %177 = vst [vmem:[#allocation2 + $0x20] sm:$0xff] 0.0
      %178 = vst [vmem:[#allocation2 + $0x28] sm:$0xff] 0.0
      %vm179 = vcmask 7168
      %180 = vst.msk [vmem:[#allocation3] sm:$0xff] %vm179, 0.0
    $region93: #{tpu_custom_call.1} parent=1 // pred_fallthru
      _
    %s181 = smul.u32 0, 6
    %s182 = smul.addr %s181, 4
    %s183 = scalar_lea.vmem [#allocation5], %s182
    %v184 = vld [vmem:[%s183] sm:$0xff]
    %v185 = vld [vmem:[%s183 + $0x8] sm:$0xff]
    %v186 = vld [vmem:[%s183 + $0x10] sm:$0xff]
    %v187 = vld [vmem:[%s183 + $0x18] sm:$0xff]
    %v188 = vld [vmem:[%s183 + $0x20] sm:$0xff]
    %v189 = vld [vmem:[%s183 + $0x28] sm:$0xff]
    %v190 = vld [vmem:[%s183 + $0x30] sm:$0xff]
    %v191 = vld [vmem:[%s183 + $0x38] sm:$0xff]
    %v192 = vld [vmem:[%s183 + $0x40] sm:$0xff]
    %v193 = vld [vmem:[%s183 + $0x48] sm:$0xff]
    %v194 = vld [vmem:[%s183 + $0x50] sm:$0xff]
    %v195 = vld [vmem:[%s183 + $0x58] sm:$0xff]
    %v196 = vld [vmem:[%s183 + $0x60] sm:$0xff]
    %v197 = vld [vmem:[%s183 + $0x68] sm:$0xff]
    %v198 = vld [vmem:[%s183 + $0x70] sm:$0xff]
    %v199 = vld [vmem:[%s183 + $0x78] sm:$0xff]
    %v200 = vld [vmem:[%s183 + $0x80] sm:$0xff]
    %v201 = vld [vmem:[%s183 + $0x88] sm:$0xff]
    %v202 = vld [vmem:[%s183 + $0x90] sm:$0xff]
    %v203 = vld [vmem:[%s183 + $0x98] sm:$0xff]
    %v204 = vld [vmem:[%s183 + $0xa0] sm:$0xff]
    %v205 = vld [vmem:[%s183 + $0xa8] sm:$0xff]
    %v206 = vld [vmem:[%s183 + $0xb0] sm:$0xff]
    %v207 = vld [vmem:[%s183 + $0xb8] sm:$0xff]
    %v208 = vunpack.c.l.bf16 %v184
    %v209 = vunpack.c.h.bf16 %v184
    %v210 = vunpack.c.l.bf16 %v185
    %v211 = vunpack.c.h.bf16 %v185
    %v212 = vunpack.c.l.bf16 %v186
    %v213 = vunpack.c.h.bf16 %v186
    %v214 = vunpack.c.l.bf16 %v187
    %v215 = vunpack.c.h.bf16 %v187
    %v216 = vunpack.c.l.bf16 %v188
    %v217 = vunpack.c.h.bf16 %v188
    %v218 = vunpack.c.l.bf16 %v189
    %v219 = vunpack.c.h.bf16 %v189
    %v220 = vunpack.c.l.bf16 %v190
    %v221 = vunpack.c.h.bf16 %v190
    %v222 = vunpack.c.l.bf16 %v191
    %v223 = vunpack.c.h.bf16 %v191
    %v224 = vunpack.c.l.bf16 %v192
    %v225 = vunpack.c.h.bf16 %v192
    %v226 = vunpack.c.l.bf16 %v193
    %v227 = vunpack.c.h.bf16 %v193
    %v228 = vunpack.c.l.bf16 %v194
    %v229 = vunpack.c.h.bf16 %v194
    %v230 = vunpack.c.l.bf16 %v195
    %v231 = vunpack.c.h.bf16 %v195
    %v232 = vunpack.c.l.bf16 %v196
    %v233 = vunpack.c.h.bf16 %v196
    %v234 = vunpack.c.l.bf16 %v197
    %v235 = vunpack.c.h.bf16 %v197
    %v236 = vunpack.c.l.bf16 %v198
    %v237 = vunpack.c.h.bf16 %v198
    %v238 = vunpack.c.l.bf16 %v199
    %v239 = vunpack.c.h.bf16 %v199
    %v240 = vunpack.c.l.bf16 %v200
    %v241 = vunpack.c.h.bf16 %v200
    %v242 = vunpack.c.l.bf16 %v201
    %v243 = vunpack.c.h.bf16 %v201
    %v244 = vunpack.c.l.bf16 %v202
    %v245 = vunpack.c.h.bf16 %v202
    %v246 = vunpack.c.l.bf16 %v203
    %v247 = vunpack.c.h.bf16 %v203
    %v248 = vunpack.c.l.bf16 %v204
    %v249 = vunpack.c.h.bf16 %v204
    %v250 = vunpack.c.l.bf16 %v205
    %v251 = vunpack.c.h.bf16 %v205
    %v252 = vunpack.c.l.bf16 %v206
    %v253 = vunpack.c.h.bf16 %v206
    %v254 = vunpack.c.l.bf16 %v207
    %v255 = vunpack.c.h.bf16 %v207
    %v256 = vld [vmem:[%s1] sm:$0xff]
    %v257 = vld [vmem:[%s1 + $0x8] sm:$0xff]
    %v258 = vld [vmem:[%s1 + $0x10] sm:$0xff]
    %v259 = vld [vmem:[%s1 + $0x18] sm:$0xff]
    %v260 = vld [vmem:[%s1 + $0x20] sm:$0xff]
    %v261 = vld [vmem:[%s1 + $0x28] sm:$0xff]
    %v262 = vld [vmem:[%s1 + $0x30] sm:$0xff]
    %v263 = vld [vmem:[%s1 + $0x38] sm:$0xff]
    %265 = vset.pattern.permute.xlu0 0
    %266 = vperm.xlu0 %265, %v256
    %v267 = vpop.permute.xlu0 %266
    %270 = vset.pattern.permute.xlu0 0
    %271 = vperm.xlu0 %270, %v257
    %v272 = vpop.permute.xlu0 %271
    %275 = vset.pattern.permute.xlu0 0
    %276 = vperm.xlu0 %275, %v258
    %v277 = vpop.permute.xlu0 %276
    %280 = vset.pattern.permute.xlu0 0
    %281 = vperm.xlu0 %280, %v259
    %v282 = vpop.permute.xlu0 %281
    %285 = vset.pattern.permute.xlu0 0
    %286 = vperm.xlu0 %285, %v260
    %v287 = vpop.permute.xlu0 %286
    %290 = vset.pattern.permute.xlu0 0
    %291 = vperm.xlu0 %290, %v261
    %v292 = vpop.permute.xlu0 %291
    %295 = vset.pattern.permute.xlu0 0
    %296 = vperm.xlu0 %295, %v262
    %v297 = vpop.permute.xlu0 %296
    %300 = vset.pattern.permute.xlu0 0
    %301 = vperm.xlu0 %300, %v263
    %v302 = vpop.permute.xlu0 %301
    %v304 = vmul.f32 %v208, %v267
    %v305 = vmul.f32 %v209, %v267
    %v306 = vmul.f32 %v210, %v267
    %v307 = vmul.f32 %v211, %v267
    %v308 = vmul.f32 %v212, %v267
    %v309 = vmul.f32 %v213, %v267
    %v310 = vmul.f32 %v214, %v272
    %v311 = vmul.f32 %v215, %v272
    %v312 = vmul.f32 %v216, %v272
    %v313 = vmul.f32 %v217, %v272
    %v314 = vmul.f32 %v218, %v272
    %v315 = vmul.f32 %v219, %v272
    %v316 = vmul.f32 %v220, %v277
    %v317 = vmul.f32 %v221, %v277
    %v318 = vmul.f32 %v222, %v277
    %v319 = vmul.f32 %v223, %v277
    %v320 = vmul.f32 %v224, %v277
    %v321 = vmul.f32 %v225, %v277
    %v322 = vmul.f32 %v226, %v282
    %v323 = vmul.f32 %v227, %v282
    %v324 = vmul.f32 %v228, %v282
    %v325 = vmul.f32 %v229, %v282
    %v326 = vmul.f32 %v230, %v282
    %v327 = vmul.f32 %v231, %v282
    %v328 = vmul.f32 %v232, %v287
    %v329 = vmul.f32 %v233, %v287
    %v330 = vmul.f32 %v234, %v287
    %v331 = vmul.f32 %v235, %v287
    %v332 = vmul.f32 %v236, %v287
    %v333 = vmul.f32 %v237, %v287
    %v334 = vmul.f32 %v238, %v292
    %v335 = vmul.f32 %v239, %v292
    %v336 = vmul.f32 %v240, %v292
    %v337 = vmul.f32 %v241, %v292
    %v338 = vmul.f32 %v242, %v292
    %v339 = vmul.f32 %v243, %v292
    %v340 = vmul.f32 %v244, %v297
    %v341 = vmul.f32 %v245, %v297
    %v342 = vmul.f32 %v246, %v297
    %v343 = vmul.f32 %v247, %v297
    %v344 = vmul.f32 %v248, %v297
    %v345 = vmul.f32 %v249, %v297
    %v346 = vmul.f32 %v250, %v302
    %v347 = vmul.f32 %v251, %v302
    %v348 = vmul.f32 %v252, %v302
    %v349 = vmul.f32 %v253, %v302
    %v350 = vmul.f32 %v254, %v302
    %v351 = vmul.f32 %v255, %v302
    %v352 = vrot.slane %v304, 4
    %v353 = vadd.f32 %v304, %v352
    %v354 = vrot.slane %v353, 2
    %v355 = vadd.f32 %v353, %v354
    %v356 = vrot.slane %v355, 1
    %v357 = vadd.f32 %v355, %v356
    %v358 = vrot.slane %v305, 4
    %v359 = vadd.f32 %v305, %v358
    %v360 = vrot.slane %v359, 2
    %v361 = vadd.f32 %v359, %v360
    %v362 = vrot.slane %v361, 1
    %v363 = vadd.f32 %v361, %v362
    %v364 = vrot.slane %v306, 4
    %v365 = vadd.f32 %v306, %v364
    %v366 = vrot.slane %v365, 2
    %v367 = vadd.f32 %v365, %v366
    %v368 = vrot.slane %v367, 1
    %v369 = vadd.f32 %v367, %v368
    %v370 = vrot.slane %v307, 4
    %v371 = vadd.f32 %v307, %v370
    %v372 = vrot.slane %v371, 2
    %v373 = vadd.f32 %v371, %v372
    %v374 = vrot.slane %v373, 1
    %v375 = vadd.f32 %v373, %v374
    %v376 = vrot.slane %v308, 4
    %v377 = vadd.f32 %v308, %v376
    %v378 = vrot.slane %v377, 2
    %v379 = vadd.f32 %v377, %v378
    %v380 = vrot.slane %v379, 1
    %v381 = vadd.f32 %v379, %v380
    %v382 = vrot.slane %v309, 4
    %v383 = vadd.f32 %v309, %v382
    %v384 = vrot.slane %v383, 2
    %v385 = vadd.f32 %v383, %v384
    %v386 = vrot.slane %v385, 1
    %v387 = vadd.f32 %v385, %v386
    %v388 = vrot.slane %v310, 4
    %v389 = vadd.f32 %v310, %v388
    %v390 = vrot.slane %v389, 2
    %v391 = vadd.f32 %v389, %v390
    %v392 = vrot.slane %v391, 1
    %v393 = vadd.f32 %v391, %v392
    %v394 = vrot.slane %v311, 4
    %v395 = vadd.f32 %v311, %v394
    %v396 = vrot.slane %v395, 2
    %v397 = vadd.f32 %v395, %v396
    %v398 = vrot.slane %v397, 1
    %v399 = vadd.f32 %v397, %v398
    %v400 = vrot.slane %v312, 4
    %v401 = vadd.f32 %v312, %v400
    %v402 = vrot.slane %v401, 2
    %v403 = vadd.f32 %v401, %v402
    %v404 = vrot.slane %v403, 1
    %v405 = vadd.f32 %v403, %v404
    %v406 = vrot.slane %v313, 4
    %v407 = vadd.f32 %v313, %v406
    %v408 = vrot.slane %v407, 2
    %v409 = vadd.f32 %v407, %v408
    %v410 = vrot.slane %v409, 1
    %v411 = vadd.f32 %v409, %v410
    %v412 = vrot.slane %v314, 4
    %v413 = vadd.f32 %v314, %v412
    %v414 = vrot.slane %v413, 2
    %v415 = vadd.f32 %v413, %v414
    %v416 = vrot.slane %v415, 1
    %v417 = vadd.f32 %v415, %v416
    %v418 = vrot.slane %v315, 4
    %v419 = vadd.f32 %v315, %v418
    %v420 = vrot.slane %v419, 2
    %v421 = vadd.f32 %v419, %v420
    %v422 = vrot.slane %v421, 1
    %v423 = vadd.f32 %v421, %v422
    %v424 = vrot.slane %v316, 4
    %v425 = vadd.f32 %v316, %v424
    %v426 = vrot.slane %v425, 2
    %v427 = vadd.f32 %v425, %v426
    %v428 = vrot.slane %v427, 1
    %v429 = vadd.f32 %v427, %v428
    %v430 = vrot.slane %v317, 4
    %v431 = vadd.f32 %v317, %v430
    %v432 = vrot.slane %v431, 2
    %v433 = vadd.f32 %v431, %v432
    %v434 = vrot.slane %v433, 1
    %v435 = vadd.f32 %v433, %v434
    %v436 = vrot.slane %v318, 4
    %v437 = vadd.f32 %v318, %v436
    %v438 = vrot.slane %v437, 2
    %v439 = vadd.f32 %v437, %v438
    %v440 = vrot.slane %v439, 1
    %v441 = vadd.f32 %v439, %v440
    %v442 = vrot.slane %v319, 4
    %v443 = vadd.f32 %v319, %v442
    %v444 = vrot.slane %v443, 2
    %v445 = vadd.f32 %v443, %v444
    %v446 = vrot.slane %v445, 1
    %v447 = vadd.f32 %v445, %v446
    %v448 = vrot.slane %v320, 4
    %v449 = vadd.f32 %v320, %v448
    %v450 = vrot.slane %v449, 2
    %v451 = vadd.f32 %v449, %v450
    %v452 = vrot.slane %v451, 1
    %v453 = vadd.f32 %v451, %v452
    %v454 = vrot.slane %v321, 4
    %v455 = vadd.f32 %v321, %v454
    %v456 = vrot.slane %v455, 2
    %v457 = vadd.f32 %v455, %v456
    %v458 = vrot.slane %v457, 1
    %v459 = vadd.f32 %v457, %v458
    %v460 = vrot.slane %v322, 4
    %v461 = vadd.f32 %v322, %v460
    %v462 = vrot.slane %v461, 2
    %v463 = vadd.f32 %v461, %v462
    %v464 = vrot.slane %v463, 1
    %v465 = vadd.f32 %v463, %v464
    %v466 = vrot.slane %v323, 4
    %v467 = vadd.f32 %v323, %v466
    %v468 = vrot.slane %v467, 2
    %v469 = vadd.f32 %v467, %v468
    %v470 = vrot.slane %v469, 1
    %v471 = vadd.f32 %v469, %v470
    %v472 = vrot.slane %v324, 4
    %v473 = vadd.f32 %v324, %v472
    %v474 = vrot.slane %v473, 2
    %v475 = vadd.f32 %v473, %v474
    %v476 = vrot.slane %v475, 1
    %v477 = vadd.f32 %v475, %v476
    %v478 = vrot.slane %v325, 4
    %v479 = vadd.f32 %v325, %v478
    %v480 = vrot.slane %v479, 2
    %v481 = vadd.f32 %v479, %v480
    %v482 = vrot.slane %v481, 1
    %v483 = vadd.f32 %v481, %v482
    %v484 = vrot.slane %v326, 4
    %v485 = vadd.f32 %v326, %v484
    %v486 = vrot.slane %v485, 2
    %v487 = vadd.f32 %v485, %v486
    %v488 = vrot.slane %v487, 1
    %v489 = vadd.f32 %v487, %v488
    %v490 = vrot.slane %v327, 4
    %v491 = vadd.f32 %v327, %v490
    %v492 = vrot.slane %v491, 2
    %v493 = vadd.f32 %v491, %v492
    %v494 = vrot.slane %v493, 1
    %v495 = vadd.f32 %v493, %v494
    %v496 = vrot.slane %v328, 4
    %v497 = vadd.f32 %v328, %v496
    %v498 = vrot.slane %v497, 2
    %v499 = vadd.f32 %v497, %v498
    %v500 = vrot.slane %v499, 1
    %v501 = vadd.f32 %v499, %v500
    %v502 = vrot.slane %v329, 4
    %v503 = vadd.f32 %v329, %v502
    %v504 = vrot.slane %v503, 2
    %v505 = vadd.f32 %v503, %v504
    %v506 = vrot.slane %v505, 1
    %v507 = vadd.f32 %v505, %v506
    %v508 = vrot.slane %v330, 4
    %v509 = vadd.f32 %v330, %v508
    %v510 = vrot.slane %v509, 2
    %v511 = vadd.f32 %v509, %v510
    %v512 = vrot.slane %v511, 1
    %v513 = vadd.f32 %v511, %v512
    %v514 = vrot.slane %v331, 4
    %v515 = vadd.f32 %v331, %v514
    %v516 = vrot.slane %v515, 2
    %v517 = vadd.f32 %v515, %v516
    %v518 = vrot.slane %v517, 1
    %v519 = vadd.f32 %v517, %v518
    %v520 = vrot.slane %v332, 4
    %v521 = vadd.f32 %v332, %v520
    %v522 = vrot.slane %v521, 2
    %v523 = vadd.f32 %v521, %v522
    %v524 = vrot.slane %v523, 1
    %v525 = vadd.f32 %v523, %v524
    %v526 = vrot.slane %v333, 4
    %v527 = vadd.f32 %v333, %v526
    %v528 = vrot.slane %v527, 2
    %v529 = vadd.f32 %v527, %v528
    %v530 = vrot.slane %v529, 1
    %v531 = vadd.f32 %v529, %v530
    %v532 = vrot.slane %v334, 4
    %v533 = vadd.f32 %v334, %v532
    %v534 = vrot.slane %v533, 2
    %v535 = vadd.f32 %v533, %v534
    %v536 = vrot.slane %v535, 1
    %v537 = vadd.f32 %v535, %v536
    %v538 = vrot.slane %v335, 4
    %v539 = vadd.f32 %v335, %v538
    %v540 = vrot.slane %v539, 2
    %v541 = vadd.f32 %v539, %v540
    %v542 = vrot.slane %v541, 1
    %v543 = vadd.f32 %v541, %v542
    %v544 = vrot.slane %v336, 4
    %v545 = vadd.f32 %v336, %v544
    %v546 = vrot.slane %v545, 2
    %v547 = vadd.f32 %v545, %v546
    %v548 = vrot.slane %v547, 1
    %v549 = vadd.f32 %v547, %v548
    %v550 = vrot.slane %v337, 4
    %v551 = vadd.f32 %v337, %v550
    %v552 = vrot.slane %v551, 2
    %v553 = vadd.f32 %v551, %v552
    %v554 = vrot.slane %v553, 1
    %v555 = vadd.f32 %v553, %v554
    %v556 = vrot.slane %v338, 4
    %v557 = vadd.f32 %v338, %v556
    %v558 = vrot.slane %v557, 2
    %v559 = vadd.f32 %v557, %v558
    %v560 = vrot.slane %v559, 1
    %v561 = vadd.f32 %v559, %v560
    %v562 = vrot.slane %v339, 4
    %v563 = vadd.f32 %v339, %v562
    %v564 = vrot.slane %v563, 2
    %v565 = vadd.f32 %v563, %v564
    %v566 = vrot.slane %v565, 1
    %v567 = vadd.f32 %v565, %v566
    %v568 = vrot.slane %v340, 4
    %v569 = vadd.f32 %v340, %v568
    %v570 = vrot.slane %v569, 2
    %v571 = vadd.f32 %v569, %v570
    %v572 = vrot.slane %v571, 1
    %v573 = vadd.f32 %v571, %v572
    %v574 = vrot.slane %v341, 4
    %v575 = vadd.f32 %v341, %v574
    %v576 = vrot.slane %v575, 2
    %v577 = vadd.f32 %v575, %v576
    %v578 = vrot.slane %v577, 1
    %v579 = vadd.f32 %v577, %v578
    %v580 = vrot.slane %v342, 4
    %v581 = vadd.f32 %v342, %v580
    %v582 = vrot.slane %v581, 2
    %v583 = vadd.f32 %v581, %v582
    %v584 = vrot.slane %v583, 1
    %v585 = vadd.f32 %v583, %v584
    %v586 = vrot.slane %v343, 4
    %v587 = vadd.f32 %v343, %v586
    %v588 = vrot.slane %v587, 2
    %v589 = vadd.f32 %v587, %v588
    %v590 = vrot.slane %v589, 1
    %v591 = vadd.f32 %v589, %v590
    %v592 = vrot.slane %v344, 4
    %v593 = vadd.f32 %v344, %v592
    %v594 = vrot.slane %v593, 2
    %v595 = vadd.f32 %v593, %v594
    %v596 = vrot.slane %v595, 1
    %v597 = vadd.f32 %v595, %v596
    %v598 = vrot.slane %v345, 4
    %v599 = vadd.f32 %v345, %v598
    %v600 = vrot.slane %v599, 2
    %v601 = vadd.f32 %v599, %v600
    %v602 = vrot.slane %v601, 1
    %v603 = vadd.f32 %v601, %v602
    %v604 = vrot.slane %v346, 4
    %v605 = vadd.f32 %v346, %v604
    %v606 = vrot.slane %v605, 2
    %v607 = vadd.f32 %v605, %v606
    %v608 = vrot.slane %v607, 1
    %v609 = vadd.f32 %v607, %v608
    %v610 = vrot.slane %v347, 4
    %v611 = vadd.f32 %v347, %v610
    %v612 = vrot.slane %v611, 2
    %v613 = vadd.f32 %v611, %v612
    %v614 = vrot.slane %v613, 1
    %v615 = vadd.f32 %v613, %v614
    %v616 = vrot.slane %v348, 4
    %v617 = vadd.f32 %v348, %v616
    %v618 = vrot.slane %v617, 2
    %v619 = vadd.f32 %v617, %v618
    %v620 = vrot.slane %v619, 1
    %v621 = vadd.f32 %v619, %v620
    %v622 = vrot.slane %v349, 4
    %v623 = vadd.f32 %v349, %v622
    %v624 = vrot.slane %v623, 2
    %v625 = vadd.f32 %v623, %v624
    %v626 = vrot.slane %v625, 1
    %v627 = vadd.f32 %v625, %v626
    %v628 = vrot.slane %v350, 4
    %v629 = vadd.f32 %v350, %v628
    %v630 = vrot.slane %v629, 2
    %v631 = vadd.f32 %v629, %v630
    %v632 = vrot.slane %v631, 1
    %v633 = vadd.f32 %v631, %v632
    %v634 = vrot.slane %v351, 4
    %v635 = vadd.f32 %v351, %v634
    %v636 = vrot.slane %v635, 2
    %v637 = vadd.f32 %v635, %v636
    %v638 = vrot.slane %v637, 1
    %v639 = vadd.f32 %v637, %v638
    %v640 = vadd.f32 %v357, 0.0
    %v641 = vadd.f32 %v363, 0.0
    %v642 = vadd.f32 %v369, 0.0
    %v643 = vadd.f32 %v375, 0.0
    %v644 = vadd.f32 %v381, 0.0
    %v645 = vadd.f32 %v387, 0.0
    %v646 = vadd.f32 %v393, 0.0
    %v647 = vadd.f32 %v399, 0.0
    %v648 = vadd.f32 %v405, 0.0
    %v649 = vadd.f32 %v411, 0.0
    %v650 = vadd.f32 %v417, 0.0
    %v651 = vadd.f32 %v423, 0.0
    %v652 = vadd.f32 %v429, 0.0
    %v653 = vadd.f32 %v435, 0.0
    %v654 = vadd.f32 %v441, 0.0
    %v655 = vadd.f32 %v447, 0.0
    %v656 = vadd.f32 %v453, 0.0
    %v657 = vadd.f32 %v459, 0.0
    %v658 = vadd.f32 %v465, 0.0
    %v659 = vadd.f32 %v471, 0.0
    %v660 = vadd.f32 %v477, 0.0
    %v661 = vadd.f32 %v483, 0.0
    %v662 = vadd.f32 %v489, 0.0
    %v663 = vadd.f32 %v495, 0.0
    %v664 = vadd.f32 %v501, 0.0
    %v665 = vadd.f32 %v507, 0.0
    %v666 = vadd.f32 %v513, 0.0
    %v667 = vadd.f32 %v519, 0.0
    %v668 = vadd.f32 %v525, 0.0
    %v669 = vadd.f32 %v531, 0.0
    %v670 = vadd.f32 %v537, 0.0
    %v671 = vadd.f32 %v543, 0.0
    %v672 = vadd.f32 %v549, 0.0
    %v673 = vadd.f32 %v555, 0.0
    %v674 = vadd.f32 %v561, 0.0
    %v675 = vadd.f32 %v567, 0.0
    %v676 = vadd.f32 %v573, 0.0
    %v677 = vadd.f32 %v579, 0.0
    %v678 = vadd.f32 %v585, 0.0
    %v679 = vadd.f32 %v591, 0.0
    %v680 = vadd.f32 %v597, 0.0
    %v681 = vadd.f32 %v603, 0.0
    %v682 = vadd.f32 %v609, 0.0
    %v683 = vadd.f32 %v615, 0.0
    %v684 = vadd.f32 %v621, 0.0
    %v685 = vadd.f32 %v627, 0.0
    %v686 = vadd.f32 %v633, 0.0
    %v687 = vadd.f32 %v639, 0.0
    %v688 = vld [vmem:[#allocation2] sm:$0xff]
    %v689 = vld [vmem:[#allocation2 + $0x8] sm:$0xff]
    %v690 = vld [vmem:[#allocation2 + $0x10] sm:$0xff]
    %v691 = vld [vmem:[#allocation2 + $0x18] sm:$0xff]
    %v692 = vld [vmem:[#allocation2 + $0x20] sm:$0xff]
    %v693 = vld [vmem:[#allocation2 + $0x28] sm:$0xff]
    %vm742 = vcmask 1041409
    %v743 = vsel %vm742, %v646, %v640
    %vm744 = vcmask 1042434
    %v745 = vsel %vm744, %v652, %v743
    %vm746 = vcmask 1043459
    %v747 = vsel %vm746, %v658, %v745
    %vm748 = vcmask 1044484
    %v749 = vsel %vm748, %v664, %v747
    %vm750 = vcmask 1045509
    %v751 = vsel %vm750, %v670, %v749
    %vm752 = vcmask 1046534
    %v753 = vsel %vm752, %v676, %v751
    %vm754 = vcmask 1047559
    %v755 = vsel %vm754, %v682, %v753
    %v756 = vsel %vm742, %v647, %v641
    %v757 = vsel %vm744, %v653, %v756
    %v758 = vsel %vm746, %v659, %v757
    %v759 = vsel %vm748, %v665, %v758
    %v760 = vsel %vm750, %v671, %v759
    %v761 = vsel %vm752, %v677, %v760
    %v762 = vsel %vm754, %v683, %v761
    %v763 = vsel %vm742, %v648, %v642
    %v764 = vsel %vm744, %v654, %v763
    %v765 = vsel %vm746, %v660, %v764
    %v766 = vsel %vm748, %v666, %v765
    %v767 = vsel %vm750, %v672, %v766
    %v768 = vsel %vm752, %v678, %v767
    %v769 = vsel %vm754, %v684, %v768
    %v770 = vsel %vm742, %v649, %v643
    %v771 = vsel %vm744, %v655, %v770
    %v772 = vsel %vm746, %v661, %v771
    %v773 = vsel %vm748, %v667, %v772
    %v774 = vsel %vm750, %v673, %v773
    %v775 = vsel %vm752, %v679, %v774
    %v776 = vsel %vm754, %v685, %v775
    %v777 = vsel %vm742, %v650, %v644
    %v778 = vsel %vm744, %v656, %v777
    %v779 = vsel %vm746, %v662, %v778
    %v780 = vsel %vm748, %v668, %v779
    %v781 = vsel %vm750, %v674, %v780
    %v782 = vsel %vm752, %v680, %v781
    %v783 = vsel %vm754, %v686, %v782
    %v784 = vsel %vm742, %v651, %v645
    %v785 = vsel %vm744, %v657, %v784
    %v786 = vsel %vm746, %v663, %v785
    %v787 = vsel %vm748, %v669, %v786
    %v788 = vsel %vm750, %v675, %v787
    %v789 = vsel %vm752, %v681, %v788
    %v790 = vsel %vm754, %v687, %v789
    %v797 = vadd.f32 %v688, %v755
    %v798 = vadd.f32 %v689, %v762
    %v799 = vadd.f32 %v690, %v769
    %v800 = vadd.f32 %v691, %v776
    %v801 = vadd.f32 %v692, %v783
    %v802 = vadd.f32 %v693, %v790
    %803 = vst [vmem:[#allocation2] sm:$0xff] %v797
    %804 = vst [vmem:[#allocation2 + $0x8] sm:$0xff] %v798
    %805 = vst [vmem:[#allocation2 + $0x10] sm:$0xff] %v799
    %806 = vst [vmem:[#allocation2 + $0x18] sm:$0xff] %v800
    %807 = vst [vmem:[#allocation2 + $0x20] sm:$0xff] %v801
    %808 = vst [vmem:[#allocation2 + $0x28] sm:$0xff] %v802
    %v809 = vld [vmem:[#allocation3] sm:$0xff]
    %v810 = vld [vmem:[%s1] sm:$0xff]
    %v811 = vld [vmem:[%s1 + $0x8] sm:$0xff]
    %v812 = vld [vmem:[%s1 + $0x10] sm:$0xff]
    %v813 = vld [vmem:[%s1 + $0x18] sm:$0xff]
    %v814 = vld [vmem:[%s1 + $0x20] sm:$0xff]
    %v815 = vld [vmem:[%s1 + $0x28] sm:$0xff]
    %v816 = vld [vmem:[%s1 + $0x30] sm:$0xff]
    %v817 = vld [vmem:[%s1 + $0x38] sm:$0xff]
    %vm818 = vcmask 7168
    %v819 = vsel %vm818, %v810, 0.0
    %v820 = vrot.slane %v819, 4
    %v821 = vadd.f32 %v819, %v820
    %v822 = vrot.slane %v821, 2
    %v823 = vadd.f32 %v821, %v822
    %v824 = vrot.slane %v823, 1
    %v825 = vadd.f32 %v823, %v824
    %v826 = vsel %vm818, %v811, 0.0
    %v827 = vrot.slane %v826, 4
    %v828 = vadd.f32 %v826, %v827
    %v829 = vrot.slane %v828, 2
    %v830 = vadd.f32 %v828, %v829
    %v831 = vrot.slane %v830, 1
    %v832 = vadd.f32 %v830, %v831
    %v833 = vsel %vm818, %v812, 0.0
    %v834 = vrot.slane %v833, 4
    %v835 = vadd.f32 %v833, %v834
    %v836 = vrot.slane %v835, 2
    %v837 = vadd.f32 %v835, %v836
    %v838 = vrot.slane %v837, 1
    %v839 = vadd.f32 %v837, %v838
    %v840 = vsel %vm818, %v813, 0.0
    %v841 = vrot.slane %v840, 4
    %v842 = vadd.f32 %v840, %v841
    %v843 = vrot.slane %v842, 2
    %v844 = vadd.f32 %v842, %v843
    %v845 = vrot.slane %v844, 1
    %v846 = vadd.f32 %v844, %v845
    %v847 = vsel %vm818, %v814, 0.0
    %v848 = vrot.slane %v847, 4
    %v849 = vadd.f32 %v847, %v848
    %v850 = vrot.slane %v849, 2
    %v851 = vadd.f32 %v849, %v850
    %v852 = vrot.slane %v851, 1
    %v853 = vadd.f32 %v851, %v852
    %v854 = vsel %vm818, %v815, 0.0
    %v855 = vrot.slane %v854, 4
    %v856 = vadd.f32 %v854, %v855
    %v857 = vrot.slane %v856, 2
    %v858 = vadd.f32 %v856, %v857
    %v859 = vrot.slane %v858, 1
    %v860 = vadd.f32 %v858, %v859
    %v861 = vsel %vm818, %v816, 0.0
    %v862 = vrot.slane %v861, 4
    %v863 = vadd.f32 %v861, %v862
    %v864 = vrot.slane %v863, 2
    %v865 = vadd.f32 %v863, %v864
    %v866 = vrot.slane %v865, 1
    %v867 = vadd.f32 %v865, %v866
    %v868 = vsel %vm818, %v817, 0.0
    %v869 = vrot.slane %v868, 4
    %v870 = vadd.f32 %v868, %v869
    %v871 = vrot.slane %v870, 2
    %v872 = vadd.f32 %v870, %v871
    %v873 = vrot.slane %v872, 1
    %v874 = vadd.f32 %v872, %v873
    %v883 = vsel %vm742, %v832, %v825
    %v884 = vsel %vm744, %v839, %v883
    %v885 = vsel %vm746, %v846, %v884
    %v886 = vsel %vm748, %v853, %v885
    %v887 = vsel %vm750, %v860, %v886
    %v888 = vsel %vm752, %v867, %v887
    %v889 = vsel %vm754, %v874, %v888
    %v891 = vadd.f32 %v809, %v889
    %892 = vst.msk [vmem:[#allocation3] sm:$0xff] %vm818, %v891
    // Predicated region
    $region94: #{tpu_custom_call.1} parent=1 // pred_check
      %p893 = pneg %p169
    $region95: #{tpu_custom_call.1} parent=1 // pred_check_branch
      %895 = sbr.rel (%p893) target = $region97
    $region96: #{tpu_custom_call.1} parent=1 // pred_region
      %v896 = vld [vmem:[#allocation3] sm:$0xff]
      %v897 = vmax.f32 %v896, 1.0
      %v898 = vld [vmem:[#allocation2] sm:$0xff]
      %v899 = vld [vmem:[#allocation2 + $0x8] sm:$0xff]
      %v900 = vld [vmem:[#allocation2 + $0x10] sm:$0xff]
      %v901 = vld [vmem:[#allocation2 + $0x18] sm:$0xff]
      %v902 = vld [vmem:[#allocation2 + $0x20] sm:$0xff]
      %v903 = vld [vmem:[#allocation2 + $0x28] sm:$0xff]
      %v904 = vrcp.pop %v897
      %906 = vset.pattern.permute.xlu0 0
      %907 = vperm.xlu0 %906, %v904
      %v908 = vpop.permute.xlu0 %907
      %v910 = vmul.f32 %v898, %v908
      %v911 = vmul.f32 %v899, %v908
      %v912 = vmul.f32 %v900, %v908
      %v913 = vmul.f32 %v901, %v908
      %v914 = vmul.f32 %v902, %v908
      %v915 = vmul.f32 %v903, %v908
      %v916 = vpack.c.bf16 %v910, %v910
      %v917 = vpack.c.bf16 %v911, %v911
      %v918 = vpack.c.bf16 %v912, %v912
      %v919 = vpack.c.bf16 %v913, %v913
      %v920 = vpack.c.bf16 %v914, %v914
      %v921 = vpack.c.bf16 %v915, %v915
      %v922 = vld [vmem:[#allocation10] sm:$0xff]
      %v923 = vld [vmem:[#allocation10 + $0x8] sm:$0xff]
      %v924 = vld [vmem:[#allocation10 + $0x10] sm:$0xff]
      %v925 = vld [vmem:[#allocation10 + $0x18] sm:$0xff]
      %v926 = vld [vmem:[#allocation10 + $0x20] sm:$0xff]
      %v927 = vld [vmem:[#allocation10 + $0x28] sm:$0xff]
      %v928 = vld [vmem:[#allocation10 + $0x30] sm:$0xff]
      %v929 = vld [vmem:[#allocation10 + $0x38] sm:$0xff]
      %v930 = vld [vmem:[#allocation10 + $0x40] sm:$0xff]
      %v931 = vld [vmem:[#allocation10 + $0x48] sm:$0xff]
      %v932 = vld [vmem:[#allocation10 + $0x50] sm:$0xff]
      %v933 = vld [vmem:[#allocation10 + $0x58] sm:$0xff]
      %v934 = vld [vmem:[#allocation10 + $0x60] sm:$0xff]
      %v935 = vld [vmem:[#allocation10 + $0x68] sm:$0xff]
      %v936 = vld [vmem:[#allocation10 + $0x70] sm:$0xff]
      %v937 = vld [vmem:[#allocation10 + $0x78] sm:$0xff]
      %v938 = vld [vmem:[#allocation10 + $0x80] sm:$0xff]
      %v939 = vld [vmem:[#allocation10 + $0x88] sm:$0xff]
      %v940 = vld [vmem:[#allocation10 + $0x90] sm:$0xff]
      %v941 = vld [vmem:[#allocation10 + $0x98] sm:$0xff]
      %v942 = vld [vmem:[#allocation10 + $0xa0] sm:$0xff]
      %v943 = vld [vmem:[#allocation10 + $0xa8] sm:$0xff]
      %v944 = vld [vmem:[#allocation10 + $0xb0] sm:$0xff]
      %v945 = vld [vmem:[#allocation10 + $0xb8] sm:$0xff]
      %v946 = vld [vmem:[#allocation10 + $0xc0] sm:$0xff]
      %v947 = vld [vmem:[#allocation10 + $0xc8] sm:$0xff]
      %v948 = vld [vmem:[#allocation10 + $0xd0] sm:$0xff]
      %v949 = vld [vmem:[#allocation10 + $0xd8] sm:$0xff]
      %v950 = vld [vmem:[#allocation10 + $0xe0] sm:$0xff]
      %v951 = vld [vmem:[#allocation10 + $0xe8] sm:$0xff]
      %v952 = vld [vmem:[#allocation10 + $0xf0] sm:$0xff]
      %v953 = vld [vmem:[#allocation10 + $0xf8] sm:$0xff]
      %v954 = vld [vmem:[#allocation10 + $0x100] sm:$0xff]
      %v955 = vld [vmem:[#allocation10 + $0x108] sm:$0xff]
      %v956 = vld [vmem:[#allocation10 + $0x110] sm:$0xff]
      %v957 = vld [vmem:[#allocation10 + $0x118] sm:$0xff]
      %v958 = vld [vmem:[#allocation10 + $0x120] sm:$0xff]
      %v959 = vld [vmem:[#allocation10 + $0x128] sm:$0xff]
      %v960 = vld [vmem:[#allocation10 + $0x130] sm:$0xff]
      %v961 = vld [vmem:[#allocation10 + $0x138] sm:$0xff]
      %v962 = vld [vmem:[#allocation10 + $0x140] sm:$0xff]
      %v963 = vld [vmem:[#allocation10 + $0x148] sm:$0xff]
      %v964 = vld [vmem:[#allocation10 + $0x150] sm:$0xff]
      %v965 = vld [vmem:[#allocation10 + $0x158] sm:$0xff]
      %v966 = vld [vmem:[#allocation10 + $0x160] sm:$0xff]
      %v967 = vld [vmem:[#allocation10 + $0x168] sm:$0xff]
      %v968 = vld [vmem:[#allocation10 + $0x170] sm:$0xff]
      %v969 = vld [vmem:[#allocation10 + $0x178] sm:$0xff]
      %v970 = vld [vmem:[#allocation10 + $0x180] sm:$0xff]
      %v971 = vld [vmem:[#allocation10 + $0x188] sm:$0xff]
      %v972 = vld [vmem:[#allocation10 + $0x190] sm:$0xff]
      %v973 = vld [vmem:[#allocation10 + $0x198] sm:$0xff]
      %v974 = vld [vmem:[#allocation10 + $0x1a0] sm:$0xff]
      %v975 = vld [vmem:[#allocation10 + $0x1a8] sm:$0xff]
      %v976 = vld [vmem:[#allocation10 + $0x1b0] sm:$0xff]
      %v977 = vld [vmem:[#allocation10 + $0x1b8] sm:$0xff]
      %v978 = vld [vmem:[#allocation10 + $0x1c0] sm:$0xff]
      %v979 = vld [vmem:[#allocation10 + $0x1c8] sm:$0xff]
      %v980 = vld [vmem:[#allocation10 + $0x1d0] sm:$0xff]
      %v981 = vld [vmem:[#allocation10 + $0x1d8] sm:$0xff]
      %v982 = vld [vmem:[#allocation10 + $0x1e0] sm:$0xff]
      %v983 = vld [vmem:[#allocation10 + $0x1e8] sm:$0xff]
      %v984 = vld [vmem:[#allocation10 + $0x1f0] sm:$0xff]
      %v985 = vld [vmem:[#allocation10 + $0x1f8] sm:$0xff]
      %v986 = vld [vmem:[#allocation10 + $0x200] sm:$0xff]
      %v987 = vld [vmem:[#allocation10 + $0x208] sm:$0xff]
      %v988 = vld [vmem:[#allocation10 + $0x210] sm:$0xff]
      %v989 = vld [vmem:[#allocation10 + $0x218] sm:$0xff]
      %v990 = vld [vmem:[#allocation10 + $0x220] sm:$0xff]
      %v991 = vld [vmem:[#allocation10 + $0x228] sm:$0xff]
      %v992 = vld [vmem:[#allocation10 + $0x230] sm:$0xff]
      %v993 = vld [vmem:[#allocation10 + $0x238] sm:$0xff]
      %v994 = vld [vmem:[#allocation10 + $0x240] sm:$0xff]
      %v995 = vld [vmem:[#allocation10 + $0x248] sm:$0xff]
      %v996 = vld [vmem:[#allocation10 + $0x250] sm:$0xff]
      %v997 = vld [vmem:[#allocation10 + $0x258] sm:$0xff]
      %v998 = vld [vmem:[#allocation10 + $0x260] sm:$0xff]
      %v999 = vld [vmem:[#allocation10 + $0x268] sm:$0xff]
      %v1000 = vld [vmem:[#allocation10 + $0x270] sm:$0xff]
      %v1001 = vld [vmem:[#allocation10 + $0x278] sm:$0xff]
      %v1002 = vld [vmem:[#allocation10 + $0x280] sm:$0xff]
      %v1003 = vld [vmem:[#allocation10 + $0x288] sm:$0xff]
      %v1004 = vld [vmem:[#allocation10 + $0x290] sm:$0xff]
      %v1005 = vld [vmem:[#allocation10 + $0x298] sm:$0xff]
      %v1006 = vld [vmem:[#allocation10 + $0x2a0] sm:$0xff]
      %v1007 = vld [vmem:[#allocation10 + $0x2a8] sm:$0xff]
      %v1008 = vld [vmem:[#allocation10 + $0x2b0] sm:$0xff]
      %v1009 = vld [vmem:[#allocation10 + $0x2b8] sm:$0xff]
      %v1010 = vld [vmem:[#allocation10 + $0x2c0] sm:$0xff]
      %v1011 = vld [vmem:[#allocation10 + $0x2c8] sm:$0xff]
      %v1012 = vld [vmem:[#allocation10 + $0x2d0] sm:$0xff]
      %v1013 = vld [vmem:[#allocation10 + $0x2d8] sm:$0xff]
      %v1014 = vld [vmem:[#allocation10 + $0x2e0] sm:$0xff]
      %v1015 = vld [vmem:[#allocation10 + $0x2e8] sm:$0xff]
      %v1016 = vld [vmem:[#allocation10 + $0x2f0] sm:$0xff]
      %v1017 = vld [vmem:[#allocation10 + $0x2f8] sm:$0xff]
      %v1018 = vld [vmem:[#allocation10 + $0x300] sm:$0xff]
      %v1019 = vld [vmem:[#allocation10 + $0x308] sm:$0xff]
      %v1020 = vld [vmem:[#allocation10 + $0x310] sm:$0xff]
      %v1021 = vld [vmem:[#allocation10 + $0x318] sm:$0xff]
      %v1022 = vld [vmem:[#allocation10 + $0x320] sm:$0xff]
      %v1023 = vld [vmem:[#allocation10 + $0x328] sm:$0xff]
      %v1024 = vld [vmem:[#allocation10 + $0x330] sm:$0xff]
      %v1025 = vld [vmem:[#allocation10 + $0x338] sm:$0xff]
      %v1026 = vld [vmem:[#allocation10 + $0x340] sm:$0xff]
      %v1027 = vld [vmem:[#allocation10 + $0x348] sm:$0xff]
      %v1028 = vld [vmem:[#allocation10 + $0x350] sm:$0xff]
      %v1029 = vld [vmem:[#allocation10 + $0x358] sm:$0xff]
      %v1030 = vld [vmem:[#allocation10 + $0x360] sm:$0xff]
      %v1031 = vld [vmem:[#allocation10 + $0x368] sm:$0xff]
      %v1032 = vld [vmem:[#allocation10 + $0x370] sm:$0xff]
      %v1033 = vld [vmem:[#allocation10 + $0x378] sm:$0xff]
      %v1034 = vld [vmem:[#allocation10 + $0x380] sm:$0xff]
      %v1035 = vld [vmem:[#allocation10 + $0x388] sm:$0xff]
      %v1036 = vld [vmem:[#allocation10 + $0x390] sm:$0xff]
      %v1037 = vld [vmem:[#allocation10 + $0x398] sm:$0xff]
      %v1038 = vld [vmem:[#allocation10 + $0x3a0] sm:$0xff]
      %v1039 = vld [vmem:[#allocation10 + $0x3a8] sm:$0xff]
      %v1040 = vld [vmem:[#allocation10 + $0x3b0] sm:$0xff]
      %v1041 = vld [vmem:[#allocation10 + $0x3b8] sm:$0xff]
      %v1042 = vld [vmem:[#allocation10 + $0x3c0] sm:$0xff]
      %v1043 = vld [vmem:[#allocation10 + $0x3c8] sm:$0xff]
      %v1044 = vld [vmem:[#allocation10 + $0x3d0] sm:$0xff]
      %v1045 = vld [vmem:[#allocation10 + $0x3d8] sm:$0xff]
      %v1046 = vld [vmem:[#allocation10 + $0x3e0] sm:$0xff]
      %v1047 = vld [vmem:[#allocation10 + $0x3e8] sm:$0xff]
      %v1048 = vld [vmem:[#allocation10 + $0x3f0] sm:$0xff]
      %v1049 = vld [vmem:[#allocation10 + $0x3f8] sm:$0xff]
      %v1050 = vld [vmem:[#allocation10 + $0x400] sm:$0xff]
      %v1051 = vld [vmem:[#allocation10 + $0x408] sm:$0xff]
      %v1052 = vld [vmem:[#allocation10 + $0x410] sm:$0xff]
      %v1053 = vld [vmem:[#allocation10 + $0x418] sm:$0xff]
      %v1054 = vld [vmem:[#allocation10 + $0x420] sm:$0xff]
      %v1055 = vld [vmem:[#allocation10 + $0x428] sm:$0xff]
      %v1056 = vld [vmem:[#allocation10 + $0x430] sm:$0xff]
      %v1057 = vld [vmem:[#allocation10 + $0x438] sm:$0xff]
      %v1058 = vld [vmem:[#allocation10 + $0x440] sm:$0xff]
      %v1059 = vld [vmem:[#allocation10 + $0x448] sm:$0xff]
      %v1060 = vld [vmem:[#allocation10 + $0x450] sm:$0xff]
      %v1061 = vld [vmem:[#allocation10 + $0x458] sm:$0xff]
      %v1062 = vld [vmem:[#allocation10 + $0x460] sm:$0xff]
      %v1063 = vld [vmem:[#allocation10 + $0x468] sm:$0xff]
      %v1064 = vld [vmem:[#allocation10 + $0x470] sm:$0xff]
      %v1065 = vld [vmem:[#allocation10 + $0x478] sm:$0xff]
      %v1066 = vld [vmem:[#allocation10 + $0x480] sm:$0xff]
      %v1067 = vld [vmem:[#allocation10 + $0x488] sm:$0xff]
      %v1068 = vld [vmem:[#allocation10 + $0x490] sm:$0xff]
      %v1069 = vld [vmem:[#allocation10 + $0x498] sm:$0xff]
      %v1070 = vld [vmem:[#allocation10 + $0x4a0] sm:$0xff]
      %v1071 = vld [vmem:[#allocation10 + $0x4a8] sm:$0xff]
      %v1072 = vld [vmem:[#allocation10 + $0x4b0] sm:$0xff]
      %v1073 = vld [vmem:[#allocation10 + $0x4b8] sm:$0xff]
      %v1074 = vld [vmem:[#allocation10 + $0x4c0] sm:$0xff]
      %v1075 = vld [vmem:[#allocation10 + $0x4c8] sm:$0xff]
      %v1076 = vld [vmem:[#allocation10 + $0x4d0] sm:$0xff]
      %v1077 = vld [vmem:[#allocation10 + $0x4d8] sm:$0xff]
      %v1078 = vld [vmem:[#allocation10 + $0x4e0] sm:$0xff]
      %v1079 = vld [vmem:[#allocation10 + $0x4e8] sm:$0xff]
      %v1080 = vld [vmem:[#allocation10 + $0x4f0] sm:$0xff]
      %v1081 = vld [vmem:[#allocation10 + $0x4f8] sm:$0xff]
      %v1082 = vld [vmem:[#allocation10 + $0x500] sm:$0xff]
      %v1083 = vld [vmem:[#allocation10 + $0x508] sm:$0xff]
      %v1084 = vld [vmem:[#allocation10 + $0x510] sm:$0xff]
      %v1085 = vld [vmem:[#allocation10 + $0x518] sm:$0xff]
      %v1086 = vld [vmem:[#allocation10 + $0x520] sm:$0xff]
      %v1087 = vld [vmem:[#allocation10 + $0x528] sm:$0xff]
      %v1088 = vld [vmem:[#allocation10 + $0x530] sm:$0xff]
      %v1089 = vld [vmem:[#allocation10 + $0x538] sm:$0xff]
      %v1090 = vld [vmem:[#allocation10 + $0x540] sm:$0xff]
      %v1091 = vld [vmem:[#allocation10 + $0x548] sm:$0xff]
      %v1092 = vld [vmem:[#allocation10 + $0x550] sm:$0xff]
      %v1093 = vld [vmem:[#allocation10 + $0x558] sm:$0xff]
      %v1094 = vld [vmem:[#allocation10 + $0x560] sm:$0xff]
      %v1095 = vld [vmem:[#allocation10 + $0x568] sm:$0xff]
      %v1096 = vld [vmem:[#allocation10 + $0x570] sm:$0xff]
      %v1097 = vld [vmem:[#allocation10 + $0x578] sm:$0xff]
      %v1098 = vld [vmem:[#allocation10 + $0x580] sm:$0xff]
      %v1099 = vld [vmem:[#allocation10 + $0x588] sm:$0xff]
      %v1100 = vld [vmem:[#allocation10 + $0x590] sm:$0xff]
      %v1101 = vld [vmem:[#allocation10 + $0x598] sm:$0xff]
      %v1102 = vld [vmem:[#allocation10 + $0x5a0] sm:$0xff]
      %v1103 = vld [vmem:[#allocation10 + $0x5a8] sm:$0xff]
      %v1104 = vld [vmem:[#allocation10 + $0x5b0] sm:$0xff]
      %v1105 = vld [vmem:[#allocation10 + $0x5b8] sm:$0xff]
      %v1106 = vld [vmem:[#allocation10 + $0x5c0] sm:$0xff]
      %v1107 = vld [vmem:[#allocation10 + $0x5c8] sm:$0xff]
      %v1108 = vld [vmem:[#allocation10 + $0x5d0] sm:$0xff]
      %v1109 = vld [vmem:[#allocation10 + $0x5d8] sm:$0xff]
      %v1110 = vld [vmem:[#allocation10 + $0x5e0] sm:$0xff]
      %v1111 = vld [vmem:[#allocation10 + $0x5e8] sm:$0xff]
      %v1112 = vld [vmem:[#allocation10 + $0x5f0] sm:$0xff]
      %v1113 = vld [vmem:[#allocation10 + $0x5f8] sm:$0xff]
      %v1114 = vld [vmem:[#allocation10 + $0x600] sm:$0xff]
      %v1115 = vld [vmem:[#allocation10 + $0x608] sm:$0xff]
      %v1116 = vld [vmem:[#allocation10 + $0x610] sm:$0xff]
      %v1117 = vld [vmem:[#allocation10 + $0x618] sm:$0xff]
      %v1118 = vld [vmem:[#allocation10 + $0x620] sm:$0xff]
      %v1119 = vld [vmem:[#allocation10 + $0x628] sm:$0xff]
      %v1120 = vld [vmem:[#allocation10 + $0x630] sm:$0xff]
      %v1121 = vld [vmem:[#allocation10 + $0x638] sm:$0xff]
      %v1122 = vld [vmem:[#allocation10 + $0x640] sm:$0xff]
      %v1123 = vld [vmem:[#allocation10 + $0x648] sm:$0xff]
      %v1124 = vld [vmem:[#allocation10 + $0x650] sm:$0xff]
      %v1125 = vld [vmem:[#allocation10 + $0x658] sm:$0xff]
      %v1126 = vld [vmem:[#allocation10 + $0x660] sm:$0xff]
      %v1127 = vld [vmem:[#allocation10 + $0x668] sm:$0xff]
      %v1128 = vld [vmem:[#allocation10 + $0x670] sm:$0xff]
      %v1129 = vld [vmem:[#allocation10 + $0x678] sm:$0xff]
      %v1130 = vld [vmem:[#allocation10 + $0x680] sm:$0xff]
      %v1131 = vld [vmem:[#allocation10 + $0x688] sm:$0xff]
      %v1132 = vld [vmem:[#allocation10 + $0x690] sm:$0xff]
      %v1133 = vld [vmem:[#allocation10 + $0x698] sm:$0xff]
      %v1134 = vld [vmem:[#allocation10 + $0x6a0] sm:$0xff]
      %v1135 = vld [vmem:[#allocation10 + $0x6a8] sm:$0xff]
      %v1136 = vld [vmem:[#allocation10 + $0x6b0] sm:$0xff]
      %v1137 = vld [vmem:[#allocation10 + $0x6b8] sm:$0xff]
      %v1138 = vld [vmem:[#allocation10 + $0x6c0] sm:$0xff]
      %v1139 = vld [vmem:[#allocation10 + $0x6c8] sm:$0xff]
      %v1140 = vld [vmem:[#allocation10 + $0x6d0] sm:$0xff]
      %v1141 = vld [vmem:[#allocation10 + $0x6d8] sm:$0xff]
      %v1142 = vld [vmem:[#allocation10 + $0x6e0] sm:$0xff]
      %v1143 = vld [vmem:[#allocation10 + $0x6e8] sm:$0xff]
      %v1144 = vld [vmem:[#allocation10 + $0x6f0] sm:$0xff]
      %v1145 = vld [vmem:[#allocation10 + $0x6f8] sm:$0xff]
      %v1146 = vld [vmem:[#allocation10 + $0x700] sm:$0xff]
      %v1147 = vld [vmem:[#allocation10 + $0x708] sm:$0xff]
      %v1148 = vld [vmem:[#allocation10 + $0x710] sm:$0xff]
      %v1149 = vld [vmem:[#allocation10 + $0x718] sm:$0xff]
      %v1150 = vld [vmem:[#allocation10 + $0x720] sm:$0xff]
      %v1151 = vld [vmem:[#allocation10 + $0x728] sm:$0xff]
      %v1152 = vld [vmem:[#allocation10 + $0x730] sm:$0xff]
      %v1153 = vld [vmem:[#allocation10 + $0x738] sm:$0xff]
      %v1154 = vld [vmem:[#allocation10 + $0x740] sm:$0xff]
      %v1155 = vld [vmem:[#allocation10 + $0x748] sm:$0xff]
      %v1156 = vld [vmem:[#allocation10 + $0x750] sm:$0xff]
      %v1157 = vld [vmem:[#allocation10 + $0x758] sm:$0xff]
      %v1158 = vld [vmem:[#allocation10 + $0x760] sm:$0xff]
      %v1159 = vld [vmem:[#allocation10 + $0x768] sm:$0xff]
      %v1160 = vld [vmem:[#allocation10 + $0x770] sm:$0xff]
      %v1161 = vld [vmem:[#allocation10 + $0x778] sm:$0xff]
      %v1162 = vld [vmem:[#allocation10 + $0x780] sm:$0xff]
      %v1163 = vld [vmem:[#allocation10 + $0x788] sm:$0xff]
      %v1164 = vld [vmem:[#allocation10 + $0x790] sm:$0xff]
      %v1165 = vld [vmem:[#allocation10 + $0x798] sm:$0xff]
      %v1166 = vld [vmem:[#allocation10 + $0x7a0] sm:$0xff]
      %v1167 = vld [vmem:[#allocation10 + $0x7a8] sm:$0xff]
      %v1168 = vld [vmem:[#allocation10 + $0x7b0] sm:$0xff]
      %v1169 = vld [vmem:[#allocation10 + $0x7b8] sm:$0xff]
      %v1170 = vld [vmem:[#allocation10 + $0x7c0] sm:$0xff]
      %v1171 = vld [vmem:[#allocation10 + $0x7c8] sm:$0xff]
      %v1172 = vld [vmem:[#allocation10 + $0x7d0] sm:$0xff]
      %v1173 = vld [vmem:[#allocation10 + $0x7d8] sm:$0xff]
      %v1174 = vld [vmem:[#allocation10 + $0x7e0] sm:$0xff]
      %v1175 = vld [vmem:[#allocation10 + $0x7e8] sm:$0xff]
      %v1176 = vld [vmem:[#allocation10 + $0x7f0] sm:$0xff]
      %v1177 = vld [vmem:[#allocation10 + $0x7f8] sm:$0xff]
      %v1178 = vld [vmem:[#allocation10 + $0x800] sm:$0xff]
      %v1179 = vld [vmem:[#allocation10 + $0x808] sm:$0xff]
      %v1180 = vld [vmem:[#allocation10 + $0x810] sm:$0xff]
      %v1181 = vld [vmem:[#allocation10 + $0x818] sm:$0xff]
      %v1182 = vld [vmem:[#allocation10 + $0x820] sm:$0xff]
      %v1183 = vld [vmem:[#allocation10 + $0x828] sm:$0xff]
      %v1184 = vld [vmem:[#allocation10 + $0x830] sm:$0xff]
      %v1185 = vld [vmem:[#allocation10 + $0x838] sm:$0xff]
      %v1186 = vld [vmem:[#allocation10 + $0x840] sm:$0xff]
      %v1187 = vld [vmem:[#allocation10 + $0x848] sm:$0xff]
      %v1188 = vld [vmem:[#allocation10 + $0x850] sm:$0xff]
      %v1189 = vld [vmem:[#allocation10 + $0x858] sm:$0xff]
      %v1190 = vld [vmem:[#allocation10 + $0x860] sm:$0xff]
      %v1191 = vld [vmem:[#allocation10 + $0x868] sm:$0xff]
      %v1192 = vld [vmem:[#allocation10 + $0x870] sm:$0xff]
      %v1193 = vld [vmem:[#allocation10 + $0x878] sm:$0xff]
      %v1194 = vld [vmem:[#allocation10 + $0x880] sm:$0xff]
      %v1195 = vld [vmem:[#allocation10 + $0x888] sm:$0xff]
      %v1196 = vld [vmem:[#allocation10 + $0x890] sm:$0xff]
      %v1197 = vld [vmem:[#allocation10 + $0x898] sm:$0xff]
      %v1198 = vld [vmem:[#allocation10 + $0x8a0] sm:$0xff]
      %v1199 = vld [vmem:[#allocation10 + $0x8a8] sm:$0xff]
      %v1200 = vld [vmem:[#allocation10 + $0x8b0] sm:$0xff]
      %v1201 = vld [vmem:[#allocation10 + $0x8b8] sm:$0xff]
      %v1202 = vld [vmem:[#allocation10 + $0x8c0] sm:$0xff]
      %v1203 = vld [vmem:[#allocation10 + $0x8c8] sm:$0xff]
      %v1204 = vld [vmem:[#allocation10 + $0x8d0] sm:$0xff]
      %v1205 = vld [vmem:[#allocation10 + $0x8d8] sm:$0xff]
      %v1206 = vld [vmem:[#allocation10 + $0x8e0] sm:$0xff]
      %v1207 = vld [vmem:[#allocation10 + $0x8e8] sm:$0xff]
      %v1208 = vld [vmem:[#allocation10 + $0x8f0] sm:$0xff]
      %v1209 = vld [vmem:[#allocation10 + $0x8f8] sm:$0xff]
      %v1210 = vld [vmem:[#allocation11] sm:$0x3f]
      %v1212 = vlaneseq
      %v1213 = vshrl.u32 %v1212, 7
      %v1214 = vsub.s32 0, %v1213
      %v1215 = vrot.slane %v1210, %v1214
      %v1216 = vlaneseq
      %v1217 = vshrl.u32 %v1216, 7
      %v1218 = vsub.s32 1, %v1217
      %v1219 = vrot.slane %v1210, %v1218
      %v1220 = vlaneseq
      %v1221 = vshrl.u32 %v1220, 7
      %v1222 = vsub.s32 2, %v1221
      %v1223 = vrot.slane %v1210, %v1222
      %v1224 = vlaneseq
      %v1225 = vshrl.u32 %v1224, 7
      %v1226 = vsub.s32 3, %v1225
      %v1227 = vrot.slane %v1210, %v1226
      %v1228 = vlaneseq
      %v1229 = vshrl.u32 %v1228, 7
      %v1230 = vsub.s32 4, %v1229
      %v1231 = vrot.slane %v1210, %v1230
      %v1232 = vlaneseq
      %v1233 = vshrl.u32 %v1232, 7
      %v1234 = vsub.s32 5, %v1233
      %v1235 = vrot.slane %v1210, %v1234
      %v1530 = vunpack.c.l.b16 %v922
      %v1531 = vunpack.c.h.b16 %v922
      %v1532 = vunpack.c.l.b16 %v923
      %v1533 = vunpack.c.h.b16 %v923
      %v1534 = vunpack.c.l.b16 %v924
      %v1535 = vunpack.c.h.b16 %v924
      %v1536 = vunpack.c.l.b16 %v925
      %v1537 = vunpack.c.h.b16 %v925
      %v1538 = vunpack.c.l.b16 %v926
      %v1539 = vunpack.c.h.b16 %v926
      %v1540 = vunpack.c.l.b16 %v927
      %v1541 = vunpack.c.h.b16 %v927
      %v1542 = vunpack.c.l.b16 %v928
      %v1543 = vunpack.c.h.b16 %v928
      %v1544 = vunpack.c.l.b16 %v929
      %v1545 = vunpack.c.h.b16 %v929
      %v1546 = vunpack.c.l.b16 %v930
      %v1547 = vunpack.c.h.b16 %v930
      %v1548 = vunpack.c.l.b16 %v931
      %v1549 = vunpack.c.h.b16 %v931
      %v1550 = vunpack.c.l.b16 %v932
      %v1551 = vunpack.c.h.b16 %v932
      %v1552 = vunpack.c.l.b16 %v933
      %v1553 = vunpack.c.h.b16 %v933
      %v1554 = vunpack.c.l.b16 %v934
      %v1555 = vunpack.c.h.b16 %v934
      %v1556 = vunpack.c.l.b16 %v935
      %v1557 = vunpack.c.h.b16 %v935
      %v1558 = vunpack.c.l.b16 %v936
      %v1559 = vunpack.c.h.b16 %v936
      %v1560 = vunpack.c.l.b16 %v937
      %v1561 = vunpack.c.h.b16 %v937
      %v1562 = vunpack.c.l.b16 %v938
      %v1563 = vunpack.c.h.b16 %v938
      %v1564 = vunpack.c.l.b16 %v939
      %v1565 = vunpack.c.h.b16 %v939
      %v1566 = vunpack.c.l.b16 %v940
      %v1567 = vunpack.c.h.b16 %v940
      %v1568 = vunpack.c.l.b16 %v941
      %v1569 = vunpack.c.h.b16 %v941
      %v1570 = vunpack.c.l.b16 %v942
      %v1571 = vunpack.c.h.b16 %v942
      %v1572 = vunpack.c.l.b16 %v943
      %v1573 = vunpack.c.h.b16 %v943
      %v1574 = vunpack.c.l.b16 %v944
      %v1575 = vunpack.c.h.b16 %v944
      %v1576 = vunpack.c.l.b16 %v945
      %v1577 = vunpack.c.h.b16 %v945
      %v1578 = vunpack.c.l.b16 %v946
      %v1579 = vunpack.c.h.b16 %v946
      %v1580 = vunpack.c.l.b16 %v947
      %v1581 = vunpack.c.h.b16 %v947
      %v1582 = vunpack.c.l.b16 %v948
      %v1583 = vunpack.c.h.b16 %v948
      %v1584 = vunpack.c.l.b16 %v949
      %v1585 = vunpack.c.h.b16 %v949
      %v1586 = vunpack.c.l.b16 %v950
      %v1587 = vunpack.c.h.b16 %v950
      %v1588 = vunpack.c.l.b16 %v951
      %v1589 = vunpack.c.h.b16 %v951
      %v1590 = vunpack.c.l.b16 %v952
      %v1591 = vunpack.c.h.b16 %v952
      %v1592 = vunpack.c.l.b16 %v953
      %v1593 = vunpack.c.h.b16 %v953
      %v1594 = vunpack.c.l.b16 %v954
      %v1595 = vunpack.c.h.b16 %v954
      %v1596 = vunpack.c.l.b16 %v955
      %v1597 = vunpack.c.h.b16 %v955
      %v1598 = vunpack.c.l.b16 %v956
      %v1599 = vunpack.c.h.b16 %v956
      %v1600 = vunpack.c.l.b16 %v957
      %v1601 = vunpack.c.h.b16 %v957
      %v1602 = vunpack.c.l.b16 %v958
      %v1603 = vunpack.c.h.b16 %v958
      %v1604 = vunpack.c.l.b16 %v959
      %v1605 = vunpack.c.h.b16 %v959
      %v1606 = vunpack.c.l.b16 %v960
      %v1607 = vunpack.c.h.b16 %v960
      %v1608 = vunpack.c.l.b16 %v961
      %v1609 = vunpack.c.h.b16 %v961
      %v1610 = vunpack.c.l.b16 %v962
      %v1611 = vunpack.c.h.b16 %v962
      %v1612 = vunpack.c.l.b16 %v963
      %v1613 = vunpack.c.h.b16 %v963
      %v1614 = vunpack.c.l.b16 %v964
      %v1615 = vunpack.c.h.b16 %v964
      %v1616 = vunpack.c.l.b16 %v965
      %v1617 = vunpack.c.h.b16 %v965
      %v1618 = vunpack.c.l.b16 %v966
      %v1619 = vunpack.c.h.b16 %v966
      %v1620 = vunpack.c.l.b16 %v967
      %v1621 = vunpack.c.h.b16 %v967
      %v1622 = vunpack.c.l.b16 %v968
      %v1623 = vunpack.c.h.b16 %v968
      %v1624 = vunpack.c.l.b16 %v969
      %v1625 = vunpack.c.h.b16 %v969
      %v1626 = vunpack.c.l.b16 %v970
      %v1627 = vunpack.c.h.b16 %v970
      %v1628 = vunpack.c.l.b16 %v971
      %v1629 = vunpack.c.h.b16 %v971
      %v1630 = vunpack.c.l.b16 %v972
      %v1631 = vunpack.c.h.b16 %v972
      %v1632 = vunpack.c.l.b16 %v973
      %v1633 = vunpack.c.h.b16 %v973
      %v1634 = vunpack.c.l.b16 %v974
      %v1635 = vunpack.c.h.b16 %v974
      %v1636 = vunpack.c.l.b16 %v975
      %v1637 = vunpack.c.h.b16 %v975
      %v1638 = vunpack.c.l.b16 %v976
      %v1639 = vunpack.c.h.b16 %v976
      %v1640 = vunpack.c.l.b16 %v977
      %v1641 = vunpack.c.h.b16 %v977
      %v1642 = vunpack.c.l.b16 %v978
      %v1643 = vunpack.c.h.b16 %v978
      %v1644 = vunpack.c.l.b16 %v979
      %v1645 = vunpack.c.h.b16 %v979
      %v1646 = vunpack.c.l.b16 %v980
      %v1647 = vunpack.c.h.b16 %v980
      %v1648 = vunpack.c.l.b16 %v981
      %v1649 = vunpack.c.h.b16 %v981
      %v1650 = vunpack.c.l.b16 %v982
      %v1651 = vunpack.c.h.b16 %v982
      %v1652 = vunpack.c.l.b16 %v983
      %v1653 = vunpack.c.h.b16 %v983
      %v1654 = vunpack.c.l.b16 %v984
      %v1655 = vunpack.c.h.b16 %v984
      %v1656 = vunpack.c.l.b16 %v985
      %v1657 = vunpack.c.h.b16 %v985
      %v1658 = vunpack.c.l.b16 %v986
      %v1659 = vunpack.c.h.b16 %v986
      %v1660 = vunpack.c.l.b16 %v987
      %v1661 = vunpack.c.h.b16 %v987
      %v1662 = vunpack.c.l.b16 %v988
      %v1663 = vunpack.c.h.b16 %v988
      %v1664 = vunpack.c.l.b16 %v989
      %v1665 = vunpack.c.h.b16 %v989
      %v1666 = vunpack.c.l.b16 %v990
      %v1667 = vunpack.c.h.b16 %v990
      %v1668 = vunpack.c.l.b16 %v991
      %v1669 = vunpack.c.h.b16 %v991
      %v1670 = vunpack.c.l.b16 %v992
      %v1671 = vunpack.c.h.b16 %v992
      %v1672 = vunpack.c.l.b16 %v993
      %v1673 = vunpack.c.h.b16 %v993
      %v1674 = vunpack.c.l.b16 %v994
      %v1675 = vunpack.c.h.b16 %v994
      %v1676 = vunpack.c.l.b16 %v995
      %v1677 = vunpack.c.h.b16 %v995
      %v1678 = vunpack.c.l.b16 %v996
      %v1679 = vunpack.c.h.b16 %v996
      %v1680 = vunpack.c.l.b16 %v997
      %v1681 = vunpack.c.h.b16 %v997
      %v1682 = vunpack.c.l.b16 %v998
      %v1683 = vunpack.c.h.b16 %v998
      %v1684 = vunpack.c.l.b16 %v999
      %v1685 = vunpack.c.h.b16 %v999
      %v1686 = vunpack.c.l.b16 %v1000
      %v1687 = vunpack.c.h.b16 %v1000
      %v1688 = vunpack.c.l.b16 %v1001
      %v1689 = vunpack.c.h.b16 %v1001
      %v1690 = vunpack.c.l.b16 %v1002
      %v1691 = vunpack.c.h.b16 %v1002
      %v1692 = vunpack.c.l.b16 %v1003
      %v1693 = vunpack.c.h.b16 %v1003
      %v1694 = vunpack.c.l.b16 %v1004
      %v1695 = vunpack.c.h.b16 %v1004
      %v1696 = vunpack.c.l.b16 %v1005
      %v1697 = vunpack.c.h.b16 %v1005
      %v1698 = vunpack.c.l.b16 %v1006
      %v1699 = vunpack.c.h.b16 %v1006
      %v1700 = vunpack.c.l.b16 %v1007
      %v1701 = vunpack.c.h.b16 %v1007
      %v1702 = vunpack.c.l.b16 %v1008
      %v1703 = vunpack.c.h.b16 %v1008
      %v1704 = vunpack.c.l.b16 %v1009
      %v1705 = vunpack.c.h.b16 %v1009
      %v1706 = vunpack.c.l.b16 %v1010
      %v1707 = vunpack.c.h.b16 %v1010
      %v1708 = vunpack.c.l.b16 %v1011
      %v1709 = vunpack.c.h.b16 %v1011
      %v1710 = vunpack.c.l.b16 %v1012
      %v1711 = vunpack.c.h.b16 %v1012
      %v1712 = vunpack.c.l.b16 %v1013
      %v1713 = vunpack.c.h.b16 %v1013
      %v1714 = vunpack.c.l.b16 %v1014
      %v1715 = vunpack.c.h.b16 %v1014
      %v1716 = vunpack.c.l.b16 %v1015
      %v1717 = vunpack.c.h.b16 %v1015
      %v1718 = vunpack.c.l.b16 %v1016
      %v1719 = vunpack.c.h.b16 %v1016
      %v1720 = vunpack.c.l.b16 %v1017
      %v1721 = vunpack.c.h.b16 %v1017
      %v1722 = vunpack.c.l.b16 %v1018
      %v1723 = vunpack.c.h.b16 %v1018
      %v1724 = vunpack.c.l.b16 %v1019
      %v1725 = vunpack.c.h.b16 %v1019
      %v1726 = vunpack.c.l.b16 %v1020
      %v1727 = vunpack.c.h.b16 %v1020
      %v1728 = vunpack.c.l.b16 %v1021
      %v1729 = vunpack.c.h.b16 %v1021
      %v1730 = vunpack.c.l.b16 %v1022
      %v1731 = vunpack.c.h.b16 %v1022
      %v1732 = vunpack.c.l.b16 %v1023
      %v1733 = vunpack.c.h.b16 %v1023
      %v1734 = vunpack.c.l.b16 %v1024
      %v1735 = vunpack.c.h.b16 %v1024
      %v1736 = vunpack.c.l.b16 %v1025
      %v1737 = vunpack.c.h.b16 %v1025
      %v1738 = vunpack.c.l.b16 %v1026
      %v1739 = vunpack.c.h.b16 %v1026
      %v1740 = vunpack.c.l.b16 %v1027
      %v1741 = vunpack.c.h.b16 %v1027
      %v1742 = vunpack.c.l.b16 %v1028
      %v1743 = vunpack.c.h.b16 %v1028
      %v1744 = vunpack.c.l.b16 %v1029
      %v1745 = vunpack.c.h.b16 %v1029
      %v1746 = vunpack.c.l.b16 %v1030
      %v1747 = vunpack.c.h.b16 %v1030
      %v1748 = vunpack.c.l.b16 %v1031
      %v1749 = vunpack.c.h.b16 %v1031
      %v1750 = vunpack.c.l.b16 %v1032
      %v1751 = vunpack.c.h.b16 %v1032
      %v1752 = vunpack.c.l.b16 %v1033
      %v1753 = vunpack.c.h.b16 %v1033
      %v1754 = vunpack.c.l.b16 %v1034
      %v1755 = vunpack.c.h.b16 %v1034
      %v1756 = vunpack.c.l.b16 %v1035
      %v1757 = vunpack.c.h.b16 %v1035
      %v1758 = vunpack.c.l.b16 %v1036
      %v1759 = vunpack.c.h.b16 %v1036
      %v1760 = vunpack.c.l.b16 %v1037
      %v1761 = vunpack.c.h.b16 %v1037
      %v1762 = vunpack.c.l.b16 %v1038
      %v1763 = vunpack.c.h.b16 %v1038
      %v1764 = vunpack.c.l.b16 %v1039
      %v1765 = vunpack.c.h.b16 %v1039
      %v1766 = vunpack.c.l.b16 %v1040
      %v1767 = vunpack.c.h.b16 %v1040
      %v1768 = vunpack.c.l.b16 %v1041
      %v1769 = vunpack.c.h.b16 %v1041
      %v1770 = vunpack.c.l.b16 %v1042
      %v1771 = vunpack.c.h.b16 %v1042
      %v1772 = vunpack.c.l.b16 %v1043
      %v1773 = vunpack.c.h.b16 %v1043
      %v1774 = vunpack.c.l.b16 %v1044
      %v1775 = vunpack.c.h.b16 %v1044
      %v1776 = vunpack.c.l.b16 %v1045
      %v1777 = vunpack.c.h.b16 %v1045
      %v1778 = vunpack.c.l.b16 %v1046
      %v1779 = vunpack.c.h.b16 %v1046
      %v1780 = vunpack.c.l.b16 %v1047
      %v1781 = vunpack.c.h.b16 %v1047
      %v1782 = vunpack.c.l.b16 %v1048
      %v1783 = vunpack.c.h.b16 %v1048
      %v1784 = vunpack.c.l.b16 %v1049
      %v1785 = vunpack.c.h.b16 %v1049
      %v1786 = vunpack.c.l.b16 %v1050
      %v1787 = vunpack.c.h.b16 %v1050
      %v1788 = vunpack.c.l.b16 %v1051
      %v1789 = vunpack.c.h.b16 %v1051
      %v1790 = vunpack.c.l.b16 %v1052
      %v1791 = vunpack.c.h.b16 %v1052
      %v1792 = vunpack.c.l.b16 %v1053
      %v1793 = vunpack.c.h.b16 %v1053
      %v1794 = vunpack.c.l.b16 %v1054
      %v1795 = vunpack.c.h.b16 %v1054
      %v1796 = vunpack.c.l.b16 %v1055
      %v1797 = vunpack.c.h.b16 %v1055
      %v1798 = vunpack.c.l.b16 %v1056
      %v1799 = vunpack.c.h.b16 %v1056
      %v1800 = vunpack.c.l.b16 %v1057
      %v1801 = vunpack.c.h.b16 %v1057
      %v1802 = vunpack.c.l.b16 %v1058
      %v1803 = vunpack.c.h.b16 %v1058
      %v1804 = vunpack.c.l.b16 %v1059
      %v1805 = vunpack.c.h.b16 %v1059
      %v1806 = vunpack.c.l.b16 %v1060
      %v1807 = vunpack.c.h.b16 %v1060
      %v1808 = vunpack.c.l.b16 %v1061
      %v1809 = vunpack.c.h.b16 %v1061
      %v1810 = vunpack.c.l.b16 %v1062
      %v1811 = vunpack.c.h.b16 %v1062
      %v1812 = vunpack.c.l.b16 %v1063
      %v1813 = vunpack.c.h.b16 %v1063
      %v1814 = vunpack.c.l.b16 %v1064
      %v1815 = vunpack.c.h.b16 %v1064
      %v1816 = vunpack.c.l.b16 %v1065
      %v1817 = vunpack.c.h.b16 %v1065
      %v1818 = vunpack.c.l.b16 %v1066
      %v1819 = vunpack.c.h.b16 %v1066
      %v1820 = vunpack.c.l.b16 %v1067
      %v1821 = vunpack.c.h.b16 %v1067
      %v1822 = vunpack.c.l.b16 %v1068
      %v1823 = vunpack.c.h.b16 %v1068
      %v1824 = vunpack.c.l.b16 %v1069
      %v1825 = vunpack.c.h.b16 %v1069
      %v1826 = vunpack.c.l.b16 %v1070
      %v1827 = vunpack.c.h.b16 %v1070
      %v1828 = vunpack.c.l.b16 %v1071
      %v1829 = vunpack.c.h.b16 %v1071
      %v1830 = vunpack.c.l.b16 %v1072
      %v1831 = vunpack.c.h.b16 %v1072
      %v1832 = vunpack.c.l.b16 %v1073
      %v1833 = vunpack.c.h.b16 %v1073
      %v1834 = vunpack.c.l.b16 %v1074
      %v1835 = vunpack.c.h.b16 %v1074
      %v1836 = vunpack.c.l.b16 %v1075
      %v1837 = vunpack.c.h.b16 %v1075
      %v1838 = vunpack.c.l.b16 %v1076
      %v1839 = vunpack.c.h.b16 %v1076
      %v1840 = vunpack.c.l.b16 %v1077
      %v1841 = vunpack.c.h.b16 %v1077
      %v1842 = vunpack.c.l.b16 %v1078
      %v1843 = vunpack.c.h.b16 %v1078
      %v1844 = vunpack.c.l.b16 %v1079
      %v1845 = vunpack.c.h.b16 %v1079
      %v1846 = vunpack.c.l.b16 %v1080
      %v1847 = vunpack.c.h.b16 %v1080
      %v1848 = vunpack.c.l.b16 %v1081
      %v1849 = vunpack.c.h.b16 %v1081
      %v1850 = vunpack.c.l.b16 %v1082
      %v1851 = vunpack.c.h.b16 %v1082
      %v1852 = vunpack.c.l.b16 %v1083
      %v1853 = vunpack.c.h.b16 %v1083
      %v1854 = vunpack.c.l.b16 %v1084
      %v1855 = vunpack.c.h.b16 %v1084
      %v1856 = vunpack.c.l.b16 %v1085
      %v1857 = vunpack.c.h.b16 %v1085
      %v1858 = vunpack.c.l.b16 %v1086
      %v1859 = vunpack.c.h.b16 %v1086
      %v1860 = vunpack.c.l.b16 %v1087
      %v1861 = vunpack.c.h.b16 %v1087
      %v1862 = vunpack.c.l.b16 %v1088
      %v1863 = vunpack.c.h.b16 %v1088
      %v1864 = vunpack.c.l.b16 %v1089
      %v1865 = vunpack.c.h.b16 %v1089
      %v1866 = vunpack.c.l.b16 %v1090
      %v1867 = vunpack.c.h.b16 %v1090
      %v1868 = vunpack.c.l.b16 %v1091
      %v1869 = vunpack.c.h.b16 %v1091
      %v1870 = vunpack.c.l.b16 %v1092
      %v1871 = vunpack.c.h.b16 %v1092
      %v1872 = vunpack.c.l.b16 %v1093
      %v1873 = vunpack.c.h.b16 %v1093
      %v1874 = vunpack.c.l.b16 %v1094
      %v1875 = vunpack.c.h.b16 %v1094
      %v1876 = vunpack.c.l.b16 %v1095
      %v1877 = vunpack.c.h.b16 %v1095
      %v1878 = vunpack.c.l.b16 %v1096
      %v1879 = vunpack.c.h.b16 %v1096
      %v1880 = vunpack.c.l.b16 %v1097
      %v1881 = vunpack.c.h.b16 %v1097
      %v1882 = vunpack.c.l.b16 %v1098
      %v1883 = vunpack.c.h.b16 %v1098
      %v1884 = vunpack.c.l.b16 %v1099
      %v1885 = vunpack.c.h.b16 %v1099
      %v1886 = vunpack.c.l.b16 %v1100
      %v1887 = vunpack.c.h.b16 %v1100
      %v1888 = vunpack.c.l.b16 %v1101
      %v1889 = vunpack.c.h.b16 %v1101
      %v1890 = vunpack.c.l.b16 %v1102
      %v1891 = vunpack.c.h.b16 %v1102
      %v1892 = vunpack.c.l.b16 %v1103
      %v1893 = vunpack.c.h.b16 %v1103
      %v1894 = vunpack.c.l.b16 %v1104
      %v1895 = vunpack.c.h.b16 %v1104
      %v1896 = vunpack.c.l.b16 %v1105
      %v1897 = vunpack.c.h.b16 %v1105
      %v1898 = vunpack.c.l.b16 %v1106
      %v1899 = vunpack.c.h.b16 %v1106
      %v1900 = vunpack.c.l.b16 %v1107
      %v1901 = vunpack.c.h.b16 %v1107
      %v1902 = vunpack.c.l.b16 %v1108
      %v1903 = vunpack.c.h.b16 %v1108
      %v1904 = vunpack.c.l.b16 %v1109
      %v1905 = vunpack.c.h.b16 %v1109
      %v1906 = vunpack.c.l.b16 %v1110
      %v1907 = vunpack.c.h.b16 %v1110
      %v1908 = vunpack.c.l.b16 %v1111
      %v1909 = vunpack.c.h.b16 %v1111
      %v1910 = vunpack.c.l.b16 %v1112
      %v1911 = vunpack.c.h.b16 %v1112
      %v1912 = vunpack.c.l.b16 %v1113
      %v1913 = vunpack.c.h.b16 %v1113
      %v1914 = vunpack.c.l.b16 %v1114
      %v1915 = vunpack.c.h.b16 %v1114
      %v1916 = vunpack.c.l.b16 %v1115
      %v1917 = vunpack.c.h.b16 %v1115
      %v1918 = vunpack.c.l.b16 %v1116
      %v1919 = vunpack.c.h.b16 %v1116
      %v1920 = vunpack.c.l.b16 %v1117
      %v1921 = vunpack.c.h.b16 %v1117
      %v1922 = vunpack.c.l.b16 %v1118
      %v1923 = vunpack.c.h.b16 %v1118
      %v1924 = vunpack.c.l.b16 %v1119
      %v1925 = vunpack.c.h.b16 %v1119
      %v1926 = vunpack.c.l.b16 %v1120
      %v1927 = vunpack.c.h.b16 %v1120
      %v1928 = vunpack.c.l.b16 %v1121
      %v1929 = vunpack.c.h.b16 %v1121
      %v1930 = vunpack.c.l.b16 %v1122
      %v1931 = vunpack.c.h.b16 %v1122
      %v1932 = vunpack.c.l.b16 %v1123
      %v1933 = vunpack.c.h.b16 %v1123
      %v1934 = vunpack.c.l.b16 %v1124
      %v1935 = vunpack.c.h.b16 %v1124
      %v1936 = vunpack.c.l.b16 %v1125
      %v1937 = vunpack.c.h.b16 %v1125
      %v1938 = vunpack.c.l.b16 %v1126
      %v1939 = vunpack.c.h.b16 %v1126
      %v1940 = vunpack.c.l.b16 %v1127
      %v1941 = vunpack.c.h.b16 %v1127
      %v1942 = vunpack.c.l.b16 %v1128
      %v1943 = vunpack.c.h.b16 %v1128
      %v1944 = vunpack.c.l.b16 %v1129
      %v1945 = vunpack.c.h.b16 %v1129
      %v1946 = vunpack.c.l.b16 %v1130
      %v1947 = vunpack.c.h.b16 %v1130
      %v1948 = vunpack.c.l.b16 %v1131
      %v1949 = vunpack.c.h.b16 %v1131
      %v1950 = vunpack.c.l.b16 %v1132
      %v1951 = vunpack.c.h.b16 %v1132
      %v1952 = vunpack.c.l.b16 %v1133
      %v1953 = vunpack.c.h.b16 %v1133
      %v1954 = vunpack.c.l.b16 %v1134
      %v1955 = vunpack.c.h.b16 %v1134
      %v1956 = vunpack.c.l.b16 %v1135
      %v1957 = vunpack.c.h.b16 %v1135
      %v1958 = vunpack.c.l.b16 %v1136
      %v1959 = vunpack.c.h.b16 %v1136
      %v1960 = vunpack.c.l.b16 %v1137
      %v1961 = vunpack.c.h.b16 %v1137
      %v1962 = vunpack.c.l.b16 %v1138
      %v1963 = vunpack.c.h.b16 %v1138
      %v1964 = vunpack.c.l.b16 %v1139
      %v1965 = vunpack.c.h.b16 %v1139
      %v1966 = vunpack.c.l.b16 %v1140
      %v1967 = vunpack.c.h.b16 %v1140
      %v1968 = vunpack.c.l.b16 %v1141
      %v1969 = vunpack.c.h.b16 %v1141
      %v1970 = vunpack.c.l.b16 %v1142
      %v1971 = vunpack.c.h.b16 %v1142
      %v1972 = vunpack.c.l.b16 %v1143
      %v1973 = vunpack.c.h.b16 %v1143
      %v1974 = vunpack.c.l.b16 %v1144
      %v1975 = vunpack.c.h.b16 %v1144
      %v1976 = vunpack.c.l.b16 %v1145
      %v1977 = vunpack.c.h.b16 %v1145
      %v1978 = vunpack.c.l.b16 %v1146
      %v1979 = vunpack.c.h.b16 %v1146
      %v1980 = vunpack.c.l.b16 %v1147
      %v1981 = vunpack.c.h.b16 %v1147
      %v1982 = vunpack.c.l.b16 %v1148
      %v1983 = vunpack.c.h.b16 %v1148
      %v1984 = vunpack.c.l.b16 %v1149
      %v1985 = vunpack.c.h.b16 %v1149
      %v1986 = vunpack.c.l.b16 %v1150
      %v1987 = vunpack.c.h.b16 %v1150
      %v1988 = vunpack.c.l.b16 %v1151
      %v1989 = vunpack.c.h.b16 %v1151
      %v1990 = vunpack.c.l.b16 %v1152
      %v1991 = vunpack.c.h.b16 %v1152
      %v1992 = vunpack.c.l.b16 %v1153
      %v1993 = vunpack.c.h.b16 %v1153
      %v1994 = vunpack.c.l.b16 %v1154
      %v1995 = vunpack.c.h.b16 %v1154
      %v1996 = vunpack.c.l.b16 %v1155
      %v1997 = vunpack.c.h.b16 %v1155
      %v1998 = vunpack.c.l.b16 %v1156
      %v1999 = vunpack.c.h.b16 %v1156
      %v2000 = vunpack.c.l.b16 %v1157
      %v2001 = vunpack.c.h.b16 %v1157
      %v2002 = vunpack.c.l.b16 %v1158
      %v2003 = vunpack.c.h.b16 %v1158
      %v2004 = vunpack.c.l.b16 %v1159
      %v2005 = vunpack.c.h.b16 %v1159
      %v2006 = vunpack.c.l.b16 %v1160
      %v2007 = vunpack.c.h.b16 %v1160
      %v2008 = vunpack.c.l.b16 %v1161
      %v2009 = vunpack.c.h.b16 %v1161
      %v2010 = vunpack.c.l.b16 %v1162
      %v2011 = vunpack.c.h.b16 %v1162
      %v2012 = vunpack.c.l.b16 %v1163
      %v2013 = vunpack.c.h.b16 %v1163
      %v2014 = vunpack.c.l.b16 %v1164
      %v2015 = vunpack.c.h.b16 %v1164
      %v2016 = vunpack.c.l.b16 %v1165
      %v2017 = vunpack.c.h.b16 %v1165
      %v2018 = vunpack.c.l.b16 %v1166
      %v2019 = vunpack.c.h.b16 %v1166
      %v2020 = vunpack.c.l.b16 %v1167
      %v2021 = vunpack.c.h.b16 %v1167
      %v2022 = vunpack.c.l.b16 %v1168
      %v2023 = vunpack.c.h.b16 %v1168
      %v2024 = vunpack.c.l.b16 %v1169
      %v2025 = vunpack.c.h.b16 %v1169
      %v2026 = vunpack.c.l.b16 %v1170
      %v2027 = vunpack.c.h.b16 %v1170
      %v2028 = vunpack.c.l.b16 %v1171
      %v2029 = vunpack.c.h.b16 %v1171
      %v2030 = vunpack.c.l.b16 %v1172
      %v2031 = vunpack.c.h.b16 %v1172
      %v2032 = vunpack.c.l.b16 %v1173
      %v2033 = vunpack.c.h.b16 %v1173
      %v2034 = vunpack.c.l.b16 %v1174
      %v2035 = vunpack.c.h.b16 %v1174
      %v2036 = vunpack.c.l.b16 %v1175
      %v2037 = vunpack.c.h.b16 %v1175
      %v2038 = vunpack.c.l.b16 %v1176
      %v2039 = vunpack.c.h.b16 %v1176
      %v2040 = vunpack.c.l.b16 %v1177
      %v2041 = vunpack.c.h.b16 %v1177
      %v2042 = vunpack.c.l.b16 %v1178
      %v2043 = vunpack.c.h.b16 %v1178
      %v2044 = vunpack.c.l.b16 %v1179
      %v2045 = vunpack.c.h.b16 %v1179
      %v2046 = vunpack.c.l.b16 %v1180
      %v2047 = vunpack.c.h.b16 %v1180
      %v2048 = vunpack.c.l.b16 %v1181
      %v2049 = vunpack.c.h.b16 %v1181
      %v2050 = vunpack.c.l.b16 %v1182
      %v2051 = vunpack.c.h.b16 %v1182
      %v2052 = vunpack.c.l.b16 %v1183
      %v2053 = vunpack.c.h.b16 %v1183
      %v2054 = vunpack.c.l.b16 %v1184
      %v2055 = vunpack.c.h.b16 %v1184
      %v2056 = vunpack.c.l.b16 %v1185
      %v2057 = vunpack.c.h.b16 %v1185
      %v2058 = vunpack.c.l.b16 %v1186
      %v2059 = vunpack.c.h.b16 %v1186
      %v2060 = vunpack.c.l.b16 %v1187
      %v2061 = vunpack.c.h.b16 %v1187
      %v2062 = vunpack.c.l.b16 %v1188
      %v2063 = vunpack.c.h.b16 %v1188
      %v2064 = vunpack.c.l.b16 %v1189
      %v2065 = vunpack.c.h.b16 %v1189
      %v2066 = vunpack.c.l.b16 %v1190
      %v2067 = vunpack.c.h.b16 %v1190
      %v2068 = vunpack.c.l.b16 %v1191
      %v2069 = vunpack.c.h.b16 %v1191
      %v2070 = vunpack.c.l.b16 %v1192
      %v2071 = vunpack.c.h.b16 %v1192
      %v2072 = vunpack.c.l.b16 %v1193
      %v2073 = vunpack.c.h.b16 %v1193
      %v2074 = vunpack.c.l.b16 %v1194
      %v2075 = vunpack.c.h.b16 %v1194
      %v2076 = vunpack.c.l.b16 %v1195
      %v2077 = vunpack.c.h.b16 %v1195
      %v2078 = vunpack.c.l.b16 %v1196
      %v2079 = vunpack.c.h.b16 %v1196
      %v2080 = vunpack.c.l.b16 %v1197
      %v2081 = vunpack.c.h.b16 %v1197
      %v2082 = vunpack.c.l.b16 %v1198
      %v2083 = vunpack.c.h.b16 %v1198
      %v2084 = vunpack.c.l.b16 %v1199
      %v2085 = vunpack.c.h.b16 %v1199
      %v2086 = vunpack.c.l.b16 %v1200
      %v2087 = vunpack.c.h.b16 %v1200
      %v2088 = vunpack.c.l.b16 %v1201
      %v2089 = vunpack.c.h.b16 %v1201
      %v2090 = vunpack.c.l.b16 %v1202
      %v2091 = vunpack.c.h.b16 %v1202
      %v2092 = vunpack.c.l.b16 %v1203
      %v2093 = vunpack.c.h.b16 %v1203
      %v2094 = vunpack.c.l.b16 %v1204
      %v2095 = vunpack.c.h.b16 %v1204
      %v2096 = vunpack.c.l.b16 %v1205
      %v2097 = vunpack.c.h.b16 %v1205
      %v2098 = vunpack.c.l.b16 %v1206
      %v2099 = vunpack.c.h.b16 %v1206
      %v2100 = vunpack.c.l.b16 %v1207
      %v2101 = vunpack.c.h.b16 %v1207
      %v2102 = vunpack.c.l.b16 %v1208
      %v2103 = vunpack.c.h.b16 %v1208
      %v2104 = vunpack.c.l.b16 %v1209
      %v2105 = vunpack.c.h.b16 %v1209
      %v2106 = vpack.c.b16 %v1536, %v1530
      %v2107 = vpack.c.b16 %v1537, %v1531
      %v2108 = vpack.c.b16 %v1538, %v1532
      %v2109 = vpack.c.b16 %v1539, %v1533
      %v2110 = vpack.c.b16 %v1540, %v1534
      %v2111 = vpack.c.b16 %v1541, %v1535
      %v2112 = vpack.c.b16 %v1548, %v1542
      %v2113 = vpack.c.b16 %v1549, %v1543
      %v2114 = vpack.c.b16 %v1550, %v1544
      %v2115 = vpack.c.b16 %v1551, %v1545
      %v2116 = vpack.c.b16 %v1552, %v1546
      %v2117 = vpack.c.b16 %v1553, %v1547
      %v2118 = vpack.c.b16 %v1560, %v1554
      %v2119 = vpack.c.b16 %v1561, %v1555
      %v2120 = vpack.c.b16 %v1562, %v1556
      %v2121 = vpack.c.b16 %v1563, %v1557
      %v2122 = vpack.c.b16 %v1564, %v1558
      %v2123 = vpack.c.b16 %v1565, %v1559
      %v2124 = vpack.c.b16 %v1572, %v1566
      %v2125 = vpack.c.b16 %v1573, %v1567
      %v2126 = vpack.c.b16 %v1574, %v1568
      %v2127 = vpack.c.b16 %v1575, %v1569
      %v2128 = vpack.c.b16 %v1576, %v1570
      %v2129 = vpack.c.b16 %v1577, %v1571
      %v2130 = vpack.c.b16 %v1584, %v1578
      %v2131 = vpack.c.b16 %v1585, %v1579
      %v2132 = vpack.c.b16 %v1586, %v1580
      %v2133 = vpack.c.b16 %v1587, %v1581
      %v2134 = vpack.c.b16 %v1588, %v1582
      %v2135 = vpack.c.b16 %v1589, %v1583
      %v2136 = vpack.c.b16 %v1596, %v1590
      %v2137 = vpack.c.b16 %v1597, %v1591
      %v2138 = vpack.c.b16 %v1598, %v1592
      %v2139 = vpack.c.b16 %v1599, %v1593
      %v2140 = vpack.c.b16 %v1600, %v1594
      %v2141 = vpack.c.b16 %v1601, %v1595
      %v2142 = vpack.c.b16 %v1608, %v1602
      %v2143 = vpack.c.b16 %v1609, %v1603
      %v2144 = vpack.c.b16 %v1610, %v1604
      %v2145 = vpack.c.b16 %v1611, %v1605
      %v2146 = vpack.c.b16 %v1612, %v1606
      %v2147 = vpack.c.b16 %v1613, %v1607
      %v2148 = vpack.c.b16 %v1620, %v1614
      %v2149 = vpack.c.b16 %v1621, %v1615
      %v2150 = vpack.c.b16 %v1622, %v1616
      %v2151 = vpack.c.b16 %v1623, %v1617
      %v2152 = vpack.c.b16 %v1624, %v1618
      %v2153 = vpack.c.b16 %v1625, %v1619
      %v2154 = vpack.c.b16 %v1632, %v1626
      %v2155 = vpack.c.b16 %v1633, %v1627
      %v2156 = vpack.c.b16 %v1634, %v1628
      %v2157 = vpack.c.b16 %v1635, %v1629
      %v2158 = vpack.c.b16 %v1636, %v1630
      %v2159 = vpack.c.b16 %v1637, %v1631
      %v2160 = vpack.c.b16 %v1644, %v1638
      %v2161 = vpack.c.b16 %v1645, %v1639
      %v2162 = vpack.c.b16 %v1646, %v1640
      %v2163 = vpack.c.b16 %v1647, %v1641
      %v2164 = vpack.c.b16 %v1648, %v1642
      %v2165 = vpack.c.b16 %v1649, %v1643
      %v2166 = vpack.c.b16 %v1656, %v1650
      %v2167 = vpack.c.b16 %v1657, %v1651
      %v2168 = vpack.c.b16 %v1658, %v1652
      %v2169 = vpack.c.b16 %v1659, %v1653
      %v2170 = vpack.c.b16 %v1660, %v1654
      %v2171 = vpack.c.b16 %v1661, %v1655
      %v2172 = vpack.c.b16 %v1668, %v1662
      %v2173 = vpack.c.b16 %v1669, %v1663
      %v2174 = vpack.c.b16 %v1670, %v1664
      %v2175 = vpack.c.b16 %v1671, %v1665
      %v2176 = vpack.c.b16 %v1672, %v1666
      %v2177 = vpack.c.b16 %v1673, %v1667
      %v2178 = vpack.c.b16 %v1680, %v1674
      %v2179 = vpack.c.b16 %v1681, %v1675
      %v2180 = vpack.c.b16 %v1682, %v1676
      %v2181 = vpack.c.b16 %v1683, %v1677
      %v2182 = vpack.c.b16 %v1684, %v1678
      %v2183 = vpack.c.b16 %v1685, %v1679
      %v2184 = vpack.c.b16 %v1692, %v1686
      %v2185 = vpack.c.b16 %v1693, %v1687
      %v2186 = vpack.c.b16 %v1694, %v1688
      %v2187 = vpack.c.b16 %v1695, %v1689
      %v2188 = vpack.c.b16 %v1696, %v1690
      %v2189 = vpack.c.b16 %v1697, %v1691
      %v2190 = vpack.c.b16 %v1704, %v1698
      %v2191 = vpack.c.b16 %v1705, %v1699
      %v2192 = vpack.c.b16 %v1706, %v1700
      %v2193 = vpack.c.b16 %v1707, %v1701
      %v2194 = vpack.c.b16 %v1708, %v1702
      %v2195 = vpack.c.b16 %v1709, %v1703
      %v2196 = vpack.c.b16 %v1716, %v1710
      %v2197 = vpack.c.b16 %v1717, %v1711
      %v2198 = vpack.c.b16 %v1718, %v1712
      %v2199 = vpack.c.b16 %v1719, %v1713
      %v2200 = vpack.c.b16 %v1720, %v1714
      %v2201 = vpack.c.b16 %v1721, %v1715
      %v2202 = vpack.c.b16 %v1728, %v1722
      %v2203 = vpack.c.b16 %v1729, %v1723
      %v2204 = vpack.c.b16 %v1730, %v1724
      %v2205 = vpack.c.b16 %v1731, %v1725
      %v2206 = vpack.c.b16 %v1732, %v1726
      %v2207 = vpack.c.b16 %v1733, %v1727
      %v2208 = vpack.c.b16 %v1740, %v1734
      %v2209 = vpack.c.b16 %v1741, %v1735
      %v2210 = vpack.c.b16 %v1742, %v1736
      %v2211 = vpack.c.b16 %v1743, %v1737
      %v2212 = vpack.c.b16 %v1744, %v1738
      %v2213 = vpack.c.b16 %v1745, %v1739
      %v2214 = vpack.c.b16 %v1752, %v1746
      %v2215 = vpack.c.b16 %v1753, %v1747
      %v2216 = vpack.c.b16 %v1754, %v1748
      %v2217 = vpack.c.b16 %v1755, %v1749
      %v2218 = vpack.c.b16 %v1756, %v1750
      %v2219 = vpack.c.b16 %v1757, %v1751
      %v2220 = vpack.c.b16 %v1764, %v1758
      %v2221 = vpack.c.b16 %v1765, %v1759
      %v2222 = vpack.c.b16 %v1766, %v1760
      %v2223 = vpack.c.b16 %v1767, %v1761
      %v2224 = vpack.c.b16 %v1768, %v1762
      %v2225 = vpack.c.b16 %v1769, %v1763
      %v2226 = vpack.c.b16 %v1776, %v1770
      %v2227 = vpack.c.b16 %v1777, %v1771
      %v2228 = vpack.c.b16 %v1778, %v1772
      %v2229 = vpack.c.b16 %v1779, %v1773
      %v2230 = vpack.c.b16 %v1780, %v1774
      %v2231 = vpack.c.b16 %v1781, %v1775
      %v2232 = vpack.c.b16 %v1788, %v1782
      %v2233 = vpack.c.b16 %v1789, %v1783
      %v2234 = vpack.c.b16 %v1790, %v1784
      %v2235 = vpack.c.b16 %v1791, %v1785
      %v2236 = vpack.c.b16 %v1792, %v1786
      %v2237 = vpack.c.b16 %v1793, %v1787
      %v2238 = vpack.c.b16 %v1800, %v1794
      %v2239 = vpack.c.b16 %v1801, %v1795
      %v2240 = vpack.c.b16 %v1802, %v1796
      %v2241 = vpack.c.b16 %v1803, %v1797
      %v2242 = vpack.c.b16 %v1804, %v1798
      %v2243 = vpack.c.b16 %v1805, %v1799
      %v2244 = vpack.c.b16 %v1812, %v1806
      %v2245 = vpack.c.b16 %v1813, %v1807
      %v2246 = vpack.c.b16 %v1814, %v1808
      %v2247 = vpack.c.b16 %v1815, %v1809
      %v2248 = vpack.c.b16 %v1816, %v1810
      %v2249 = vpack.c.b16 %v1817, %v1811
      %v2250 = vpack.c.b16 %v1824, %v1818
      %v2251 = vpack.c.b16 %v1825, %v1819
      %v2252 = vpack.c.b16 %v1826, %v1820
      %v2253 = vpack.c.b16 %v1827, %v1821
      %v2254 = vpack.c.b16 %v1828, %v1822
      %v2255 = vpack.c.b16 %v1829, %v1823
      %v2256 = vpack.c.b16 %v1836, %v1830
      %v2257 = vpack.c.b16 %v1837, %v1831
      %v2258 = vpack.c.b16 %v1838, %v1832
      %v2259 = vpack.c.b16 %v1839, %v1833
      %v2260 = vpack.c.b16 %v1840, %v1834
      %v2261 = vpack.c.b16 %v1841, %v1835
      %v2262 = vpack.c.b16 %v1848, %v1842
      %v2263 = vpack.c.b16 %v1849, %v1843
      %v2264 = vpack.c.b16 %v1850, %v1844
      %v2265 = vpack.c.b16 %v1851, %v1845
      %v2266 = vpack.c.b16 %v1852, %v1846
      %v2267 = vpack.c.b16 %v1853, %v1847
      %v2268 = vpack.c.b16 %v1860, %v1854
      %v2269 = vpack.c.b16 %v1861, %v1855
      %v2270 = vpack.c.b16 %v1862, %v1856
      %v2271 = vpack.c.b16 %v1863, %v1857
      %v2272 = vpack.c.b16 %v1864, %v1858
      %v2273 = vpack.c.b16 %v1865, %v1859
      %v2274 = vpack.c.b16 %v1872, %v1866
      %v2275 = vpack.c.b16 %v1873, %v1867
      %v2276 = vpack.c.b16 %v1874, %v1868
      %v2277 = vpack.c.b16 %v1875, %v1869
      %v2278 = vpack.c.b16 %v1876, %v1870
      %v2279 = vpack.c.b16 %v1877, %v1871
      %v2280 = vpack.c.b16 %v1884, %v1878
      %v2281 = vpack.c.b16 %v1885, %v1879
      %v2282 = vpack.c.b16 %v1886, %v1880
      %v2283 = vpack.c.b16 %v1887, %v1881
      %v2284 = vpack.c.b16 %v1888, %v1882
      %v2285 = vpack.c.b16 %v1889, %v1883
      %v2286 = vpack.c.b16 %v1896, %v1890
      %v2287 = vpack.c.b16 %v1897, %v1891
      %v2288 = vpack.c.b16 %v1898, %v1892
      %v2289 = vpack.c.b16 %v1899, %v1893
      %v2290 = vpack.c.b16 %v1900, %v1894
      %v2291 = vpack.c.b16 %v1901, %v1895
      %v2292 = vpack.c.b16 %v1908, %v1902
      %v2293 = vpack.c.b16 %v1909, %v1903
      %v2294 = vpack.c.b16 %v1910, %v1904
      %v2295 = vpack.c.b16 %v1911, %v1905
      %v2296 = vpack.c.b16 %v1912, %v1906
      %v2297 = vpack.c.b16 %v1913, %v1907
      %v2298 = vpack.c.b16 %v1920, %v1914
      %v2299 = vpack.c.b16 %v1921, %v1915
      %v2300 = vpack.c.b16 %v1922, %v1916
      %v2301 = vpack.c.b16 %v1923, %v1917
      %v2302 = vpack.c.b16 %v1924, %v1918
      %v2303 = vpack.c.b16 %v1925, %v1919
      %v2304 = vpack.c.b16 %v1932, %v1926
      %v2305 = vpack.c.b16 %v1933, %v1927
      %v2306 = vpack.c.b16 %v1934, %v1928
      %v2307 = vpack.c.b16 %v1935, %v1929
      %v2308 = vpack.c.b16 %v1936, %v1930
      %v2309 = vpack.c.b16 %v1937, %v1931
      %v2310 = vpack.c.b16 %v1944, %v1938
      %v2311 = vpack.c.b16 %v1945, %v1939
      %v2312 = vpack.c.b16 %v1946, %v1940
      %v2313 = vpack.c.b16 %v1947, %v1941
      %v2314 = vpack.c.b16 %v1948, %v1942
      %v2315 = vpack.c.b16 %v1949, %v1943
      %v2316 = vpack.c.b16 %v1956, %v1950
      %v2317 = vpack.c.b16 %v1957, %v1951
      %v2318 = vpack.c.b16 %v1958, %v1952
      %v2319 = vpack.c.b16 %v1959, %v1953
      %v2320 = vpack.c.b16 %v1960, %v1954
      %v2321 = vpack.c.b16 %v1961, %v1955
      %v2322 = vpack.c.b16 %v1968, %v1962
      %v2323 = vpack.c.b16 %v1969, %v1963
      %v2324 = vpack.c.b16 %v1970, %v1964
      %v2325 = vpack.c.b16 %v1971, %v1965
      %v2326 = vpack.c.b16 %v1972, %v1966
      %v2327 = vpack.c.b16 %v1973, %v1967
      %v2328 = vpack.c.b16 %v1980, %v1974
      %v2329 = vpack.c.b16 %v1981, %v1975
      %v2330 = vpack.c.b16 %v1982, %v1976
      %v2331 = vpack.c.b16 %v1983, %v1977
      %v2332 = vpack.c.b16 %v1984, %v1978
      %v2333 = vpack.c.b16 %v1985, %v1979
      %v2334 = vpack.c.b16 %v1992, %v1986
      %v2335 = vpack.c.b16 %v1993, %v1987
      %v2336 = vpack.c.b16 %v1994, %v1988
      %v2337 = vpack.c.b16 %v1995, %v1989
      %v2338 = vpack.c.b16 %v1996, %v1990
      %v2339 = vpack.c.b16 %v1997, %v1991
      %v2340 = vpack.c.b16 %v2004, %v1998
      %v2341 = vpack.c.b16 %v2005, %v1999
      %v2342 = vpack.c.b16 %v2006, %v2000
      %v2343 = vpack.c.b16 %v2007, %v2001
      %v2344 = vpack.c.b16 %v2008, %v2002
      %v2345 = vpack.c.b16 %v2009, %v2003
      %v2346 = vpack.c.b16 %v2016, %v2010
      %v2347 = vpack.c.b16 %v2017, %v2011
      %v2348 = vpack.c.b16 %v2018, %v2012
      %v2349 = vpack.c.b16 %v2019, %v2013
      %v2350 = vpack.c.b16 %v2020, %v2014
      %v2351 = vpack.c.b16 %v2021, %v2015
      %v2352 = vpack.c.b16 %v2028, %v2022
      %v2353 = vpack.c.b16 %v2029, %v2023
      %v2354 = vpack.c.b16 %v2030, %v2024
      %v2355 = vpack.c.b16 %v2031, %v2025
      %v2356 = vpack.c.b16 %v2032, %v2026
      %v2357 = vpack.c.b16 %v2033, %v2027
      %v2358 = vpack.c.b16 %v2040, %v2034
      %v2359 = vpack.c.b16 %v2041, %v2035
      %v2360 = vpack.c.b16 %v2042, %v2036
      %v2361 = vpack.c.b16 %v2043, %v2037
      %v2362 = vpack.c.b16 %v2044, %v2038
      %v2363 = vpack.c.b16 %v2045, %v2039
      %v2364 = vpack.c.b16 %v2052, %v2046
      %v2365 = vpack.c.b16 %v2053, %v2047
      %v2366 = vpack.c.b16 %v2054, %v2048
      %v2367 = vpack.c.b16 %v2055, %v2049
      %v2368 = vpack.c.b16 %v2056, %v2050
      %v2369 = vpack.c.b16 %v2057, %v2051
      %v2370 = vpack.c.b16 %v2064, %v2058
      %v2371 = vpack.c.b16 %v2065, %v2059
      %v2372 = vpack.c.b16 %v2066, %v2060
      %v2373 = vpack.c.b16 %v2067, %v2061
      %v2374 = vpack.c.b16 %v2068, %v2062
      %v2375 = vpack.c.b16 %v2069, %v2063
      %v2376 = vpack.c.b16 %v2076, %v2070
      %v2377 = vpack.c.b16 %v2077, %v2071
      %v2378 = vpack.c.b16 %v2078, %v2072
      %v2379 = vpack.c.b16 %v2079, %v2073
      %v2380 = vpack.c.b16 %v2080, %v2074
      %v2381 = vpack.c.b16 %v2081, %v2075
      %v2382 = vpack.c.b16 %v2088, %v2082
      %v2383 = vpack.c.b16 %v2089, %v2083
      %v2384 = vpack.c.b16 %v2090, %v2084
      %v2385 = vpack.c.b16 %v2091, %v2085
      %v2386 = vpack.c.b16 %v2092, %v2086
      %v2387 = vpack.c.b16 %v2093, %v2087
      %v2388 = vpack.c.b16 %v2100, %v2094
      %v2389 = vpack.c.b16 %v2101, %v2095
      %v2390 = vpack.c.b16 %v2102, %v2096
      %v2391 = vpack.c.b16 %v2103, %v2097
      %v2392 = vpack.c.b16 %v2104, %v2098
      %v2393 = vpack.c.b16 %v2105, %v2099
      %2682 = vmatprep.subr.bf16.mxu0 %v2107
      %2683 = vmatpush1.bf16.msra.mxu0 %v2106
      %2684 = vmatprep.subr.bf16.mxu0 %v2113
      %2685 = vmatpush1.bf16.msra.mxu0 %v2112
      %2686 = vmatprep.subr.bf16.mxu0 %v2119
      %2687 = vmatpush1.bf16.msra.mxu0 %v2118
      %2688 = vmatprep.subr.bf16.mxu0 %v2125
      %2689 = vmatpush1.bf16.msra.mxu0 %v2124
      %2690 = vmatprep.subr.bf16.mxu0 %v2131
      %2691 = vmatpush1.bf16.msra.mxu0 %v2130
      %2692 = vmatprep.subr.bf16.mxu0 %v2137
      %2693 = vmatpush1.bf16.msra.mxu0 %v2136
      %2694 = vmatprep.subr.bf16.mxu0 %v2143
      %2695 = vmatpush1.bf16.msra.mxu0 %v2142
      %2696 = vmatprep.subr.bf16.mxu0 %v2149
      %2697 = vmatpush1.bf16.msra.mxu0 %v2148
      %2698 = vmatprep.subr.bf16.mxu0 %v2155
      %2699 = vmatpush1.bf16.msra.mxu0 %v2154
      %2700 = vmatprep.subr.bf16.mxu0 %v2161
      %2701 = vmatpush1.bf16.msra.mxu0 %v2160
      %2702 = vmatprep.subr.bf16.mxu0 %v2167
      %2703 = vmatpush1.bf16.msra.mxu0 %v2166
      %2704 = vmatprep.subr.bf16.mxu0 %v2173
      %2705 = vmatpush1.bf16.msra.mxu0 %v2172
      %2706 = vmatprep.subr.bf16.mxu0 %v2179
      %2707 = vmatpush1.bf16.msra.mxu0 %v2178
      %2708 = vmatprep.subr.bf16.mxu0 %v2185
      %2709 = vmatpush1.bf16.msra.mxu0 %v2184
      %2710 = vmatprep.subr.bf16.mxu0 %v2191
      %2711 = vmatpush1.bf16.msra.mxu0 %v2190
      %2712 = vmatprep.subr.bf16.mxu0 %v2197
      %2713 = vmatpush1.bf16.msra.mxu0 %v2196
      %2714 = vmatprep.mubr.bf16.mxu0 %v917
      %2715 = vmatmul.mubr.bf16.gmra.mrb[0].mxu0 %v916
      %v2716 = vpop.f32.mrb[0].mxu0
      %v2717 = vadd.f32 %v1215, %v2716
      %v2718 = vpop.f32.mrb[0].mxu0
      %v2719 = vadd.f32 %v1219, %v2718
      %v2720 = vpop.f32.mrb[0].mxu0
      %v2721 = vpop.f32.mrb[0].mxu0
      %2722 = vdwg.mxu0
      %2723 = vmatprep.subr.bf16.mxu0 %v2203
      %2724 = vmatpush1.bf16.msra.mxu0 %v2202
      %2725 = vmatprep.subr.bf16.mxu0 %v2209
      %2726 = vmatpush1.bf16.msra.mxu0 %v2208
      %2727 = vmatprep.subr.bf16.mxu0 %v2215
      %2728 = vmatpush1.bf16.msra.mxu0 %v2214
      %2729 = vmatprep.subr.bf16.mxu0 %v2221
      %2730 = vmatpush1.bf16.msra.mxu0 %v2220
      %2731 = vmatprep.subr.bf16.mxu0 %v2227
      %2732 = vmatpush1.bf16.msra.mxu0 %v2226
      %2733 = vmatprep.subr.bf16.mxu0 %v2233
      %2734 = vmatpush1.bf16.msra.mxu0 %v2232
      %2735 = vmatprep.subr.bf16.mxu0 %v2239
      %2736 = vmatpush1.bf16.msra.mxu0 %v2238
      %2737 = vmatprep.subr.bf16.mxu0 %v2245
      %2738 = vmatpush1.bf16.msra.mxu0 %v2244
      %2739 = vmatprep.subr.bf16.mxu0 %v2251
      %2740 = vmatpush1.bf16.msra.mxu0 %v2250
      %2741 = vmatprep.subr.bf16.mxu0 %v2257
      %2742 = vmatpush1.bf16.msra.mxu0 %v2256
      %2743 = vmatprep.subr.bf16.mxu0 %v2263
      %2744 = vmatpush1.bf16.msra.mxu0 %v2262
      %2745 = vmatprep.subr.bf16.mxu0 %v2269
      %2746 = vmatpush1.bf16.msra.mxu0 %v2268
      %2747 = vmatprep.subr.bf16.mxu0 %v2275
      %2748 = vmatpush1.bf16.msra.mxu0 %v2274
      %2749 = vmatprep.subr.bf16.mxu0 %v2281
      %2750 = vmatpush1.bf16.msra.mxu0 %v2280
      %2751 = vmatprep.subr.bf16.mxu0 %v2287
      %2752 = vmatpush1.bf16.msra.mxu0 %v2286
      %2753 = vmatprep.subr.bf16.mxu0 %v2293
      %2754 = vmatpush1.bf16.msra.mxu0 %v2292
      %2755 = vmatprep.mubr.bf16.mxu0 %v919
      %2756 = vmatmul.mubr.bf16.gmra.mrb[0].mxu0 %v918
      %v2757 = vpop.f32.mrb[0].mxu0
      %v2758 = vadd.f32 %v2717, %v2757
      %v2759 = vpop.f32.mrb[0].mxu0
      %v2760 = vadd.f32 %v2719, %v2759
      %v2761 = vpop.f32.mrb[0].mxu0
      %v2762 = vpop.f32.mrb[0].mxu0
      %2763 = vdwg.mxu0
      %2764 = vmatprep.subr.bf16.mxu0 %v2299
      %2765 = vmatpush1.bf16.msra.mxu0 %v2298
      %2766 = vmatprep.subr.bf16.mxu0 %v2305
      %2767 = vmatpush1.bf16.msra.mxu0 %v2304
      %2768 = vmatprep.subr.bf16.mxu0 %v2311
      %2769 = vmatpush1.bf16.msra.mxu0 %v2310
      %2770 = vmatprep.subr.bf16.mxu0 %v2317
      %2771 = vmatpush1.bf16.msra.mxu0 %v2316
      %2772 = vmatprep.subr.bf16.mxu0 %v2323
      %2773 = vmatpush1.bf16.msra.mxu0 %v2322
      %2774 = vmatprep.subr.bf16.mxu0 %v2329
      %2775 = vmatpush1.bf16.msra.mxu0 %v2328
      %2776 = vmatprep.subr.bf16.mxu0 %v2335
      %2777 = vmatpush1.bf16.msra.mxu0 %v2334
      %2778 = vmatprep.subr.bf16.mxu0 %v2341
      %2779 = vmatpush1.bf16.msra.mxu0 %v2340
      %2780 = vmatprep.subr.bf16.mxu0 %v2347
      %2781 = vmatpush1.bf16.msra.mxu0 %v2346
      %2782 = vmatprep.subr.bf16.mxu0 %v2353
      %2783 = vmatpush1.bf16.msra.mxu0 %v2352
      %2784 = vmatprep.subr.bf16.mxu0 %v2359
      %2785 = vmatpush1.bf16.msra.mxu0 %v2358
      %2786 = vmatprep.subr.bf16.mxu0 %v2365
      %2787 = vmatpush1.bf16.msra.mxu0 %v2364
      %2788 = vmatprep.subr.bf16.mxu0 %v2371
      %2789 = vmatpush1.bf16.msra.mxu0 %v2370
      %2790 = vmatprep.subr.bf16.mxu0 %v2377
      %2791 = vmatpush1.bf16.msra.mxu0 %v2376
      %2792 = vmatprep.subr.bf16.mxu0 %v2383
      %2793 = vmatpush1.bf16.msra.mxu0 %v2382
      %2794 = vmatprep.subr.bf16.mxu0 %v2389
      %2795 = vmatpush1.bf16.msra.mxu0 %v2388
      %2796 = vmatprep.mubr.bf16.mxu0 %v921
      %2797 = vmatmul.mubr.bf16.gmra.mrb[0].mxu0 %v920
      %v2798 = vpop.f32.mrb[0].mxu0
      %v2799 = vadd.f32 %v2758, %v2798
      %v2800 = vpop.f32.mrb[0].mxu0
      %v2801 = vadd.f32 %v2760, %v2800
      %v2802 = vpop.f32.mrb[0].mxu0
      %v2803 = vpop.f32.mrb[0].mxu0
      %2804 = vdwg.mxu0
      %2805 = vmatprep.subr.bf16.mxu0 %v2109
      %2806 = vmatpush1.bf16.msra.mxu0 %v2108
      %2807 = vmatprep.subr.bf16.mxu0 %v2115
      %2808 = vmatpush1.bf16.msra.mxu0 %v2114
      %2809 = vmatprep.subr.bf16.mxu0 %v2121
      %2810 = vmatpush1.bf16.msra.mxu0 %v2120
      %2811 = vmatprep.subr.bf16.mxu0 %v2127
      %2812 = vmatpush1.bf16.msra.mxu0 %v2126
      %2813 = vmatprep.subr.bf16.mxu0 %v2133
      %2814 = vmatpush1.bf16.msra.mxu0 %v2132
      %2815 = vmatprep.subr.bf16.mxu0 %v2139
      %2816 = vmatpush1.bf16.msra.mxu0 %v2138
      %2817 = vmatprep.subr.bf16.mxu0 %v2145
      %2818 = vmatpush1.bf16.msra.mxu0 %v2144
      %2819 = vmatprep.subr.bf16.mxu0 %v2151
      %2820 = vmatpush1.bf16.msra.mxu0 %v2150
      %2821 = vmatprep.subr.bf16.mxu0 %v2157
      %2822 = vmatpush1.bf16.msra.mxu0 %v2156
      %2823 = vmatprep.subr.bf16.mxu0 %v2163
      %2824 = vmatpush1.bf16.msra.mxu0 %v2162
      %2825 = vmatprep.subr.bf16.mxu0 %v2169
      %2826 = vmatpush1.bf16.msra.mxu0 %v2168
      %2827 = vmatprep.subr.bf16.mxu0 %v2175
      %2828 = vmatpush1.bf16.msra.mxu0 %v2174
      %2829 = vmatprep.subr.bf16.mxu0 %v2181
      %2830 = vmatpush1.bf16.msra.mxu0 %v2180
      %2831 = vmatprep.subr.bf16.mxu0 %v2187
      %2832 = vmatpush1.bf16.msra.mxu0 %v2186
      %2833 = vmatprep.subr.bf16.mxu0 %v2193
      %2834 = vmatpush1.bf16.msra.mxu0 %v2192
      %2835 = vmatprep.subr.bf16.mxu0 %v2199
      %2836 = vmatpush1.bf16.msra.mxu0 %v2198
      %2837 = vmatprep.mubr.bf16.mxu0 %v917
      %2838 = vmatmul.mubr.bf16.gmra.mrb[0].mxu0 %v916
      %v2839 = vpop.f32.mrb[0].mxu0
      %v2840 = vadd.f32 %v1223, %v2839
      %v2841 = vpop.f32.mrb[0].mxu0
      %v2842 = vadd.f32 %v1227, %v2841
      %v2843 = vpop.f32.mrb[0].mxu0
      %v2844 = vpop.f32.mrb[0].mxu0
      %2845 = vdwg.mxu0
      %2846 = vmatprep.subr.bf16.mxu0 %v2205
      %2847 = vmatpush1.bf16.msra.mxu0 %v2204
      %2848 = vmatprep.subr.bf16.mxu0 %v2211
      %2849 = vmatpush1.bf16.msra.mxu0 %v2210
      %2850 = vmatprep.subr.bf16.mxu0 %v2217
      %2851 = vmatpush1.bf16.msra.mxu0 %v2216
      %2852 = vmatprep.subr.bf16.mxu0 %v2223
      %2853 = vmatpush1.bf16.msra.mxu0 %v2222
      %2854 = vmatprep.subr.bf16.mxu0 %v2229
      %2855 = vmatpush1.bf16.msra.mxu0 %v2228
      %2856 = vmatprep.subr.bf16.mxu0 %v2235
      %2857 = vmatpush1.bf16.msra.mxu0 %v2234
      %2858 = vmatprep.subr.bf16.mxu0 %v2241
      %2859 = vmatpush1.bf16.msra.mxu0 %v2240
      %2860 = vmatprep.subr.bf16.mxu0 %v2247
      %2861 = vmatpush1.bf16.msra.mxu0 %v2246
      %2862 = vmatprep.subr.bf16.mxu0 %v2253
      %2863 = vmatpush1.bf16.msra.mxu0 %v2252
      %2864 = vmatprep.subr.bf16.mxu0 %v2259
      %2865 = vmatpush1.bf16.msra.mxu0 %v2258
      %2866 = vmatprep.subr.bf16.mxu0 %v2265
      %2867 = vmatpush1.bf16.msra.mxu0 %v2264
      %2868 = vmatprep.subr.bf16.mxu0 %v2271
      %2869 = vmatpush1.bf16.msra.mxu0 %v2270
      %2870 = vmatprep.subr.bf16.mxu0 %v2277
      %2871 = vmatpush1.bf16.msra.mxu0 %v2276
      %2872 = vmatprep.subr.bf16.mxu0 %v2283
      %2873 = vmatpush1.bf16.msra.mxu0 %v2282
      %2874 = vmatprep.subr.bf16.mxu0 %v2289
      %2875 = vmatpush1.bf16.msra.mxu0 %v2288
      %2876 = vmatprep.subr.bf16.mxu0 %v2295
      %2877 = vmatpush1.bf16.msra.mxu0 %v2294
      %2878 = vmatprep.mubr.bf16.mxu0 %v919
      %2879 = vmatmul.mubr.bf16.gmra.mrb[0].mxu0 %v918
      %v2880 = vpop.f32.mrb[0].mxu0
      %v2881 = vadd.f32 %v2840, %v2880
      %v2882 = vpop.f32.mrb[0].mxu0
      %v2883 = vadd.f32 %v2842, %v2882
      %v2884 = vpop.f32.mrb[0].mxu0
      %v2885 = vpop.f32.mrb[0].mxu0
      %2886 = vdwg.mxu0
      %2887 = vmatprep.subr.bf16.mxu0 %v2301
      %2888 = vmatpush1.bf16.msra.mxu0 %v2300
      %2889 = vmatprep.subr.bf16.mxu0 %v2307
      %2890 = vmatpush1.bf16.msra.mxu0 %v2306
      %2891 = vmatprep.subr.bf16.mxu0 %v2313
      %2892 = vmatpush1.bf16.msra.mxu0 %v2312
      %2893 = vmatprep.subr.bf16.mxu0 %v2319
      %2894 = vmatpush1.bf16.msra.mxu0 %v2318
      %2895 = vmatprep.subr.bf16.mxu0 %v2325
      %2896 = vmatpush1.bf16.msra.mxu0 %v2324
      %2897 = vmatprep.subr.bf16.mxu0 %v2331
      %2898 = vmatpush1.bf16.msra.mxu0 %v2330
      %2899 = vmatprep.subr.bf16.mxu0 %v2337
      %2900 = vmatpush1.bf16.msra.mxu0 %v2336
      %2901 = vmatprep.subr.bf16.mxu0 %v2343
      %2902 = vmatpush1.bf16.msra.mxu0 %v2342
      %2903 = vmatprep.subr.bf16.mxu0 %v2349
      %2904 = vmatpush1.bf16.msra.mxu0 %v2348
      %2905 = vmatprep.subr.bf16.mxu0 %v2355
      %2906 = vmatpush1.bf16.msra.mxu0 %v2354
      %2907 = vmatprep.subr.bf16.mxu0 %v2361
      %2908 = vmatpush1.bf16.msra.mxu0 %v2360
      %2909 = vmatprep.subr.bf16.mxu0 %v2367
      %2910 = vmatpush1.bf16.msra.mxu0 %v2366
      %2911 = vmatprep.subr.bf16.mxu0 %v2373
      %2912 = vmatpush1.bf16.msra.mxu0 %v2372
      %2913 = vmatprep.subr.bf16.mxu0 %v2379
      %2914 = vmatpush1.bf16.msra.mxu0 %v2378
      %2915 = vmatprep.subr.bf16.mxu0 %v2385
      %2916 = vmatpush1.bf16.msra.mxu0 %v2384
      %2917 = vmatprep.subr.bf16.mxu0 %v2391
      %2918 = vmatpush1.bf16.msra.mxu0 %v2390
      %2919 = vmatprep.mubr.bf16.mxu0 %v921
      %2920 = vmatmul.mubr.bf16.gmra.mrb[0].mxu0 %v920
      %v2921 = vpop.f32.mrb[0].mxu0
      %v2922 = vadd.f32 %v2881, %v2921
      %v2923 = vpop.f32.mrb[0].mxu0
      %v2924 = vadd.f32 %v2883, %v2923
      %v2925 = vpop.f32.mrb[0].mxu0
      %v2926 = vpop.f32.mrb[0].mxu0
      %2927 = vdwg.mxu0
      %2928 = vmatprep.subr.bf16.mxu0 %v2111
      %2929 = vmatpush1.bf16.msra.mxu0 %v2110
      %2930 = vmatprep.subr.bf16.mxu0 %v2117
      %2931 = vmatpush1.bf16.msra.mxu0 %v2116
      %2932 = vmatprep.subr.bf16.mxu0 %v2123
      %2933 = vmatpush1.bf16.msra.mxu0 %v2122
      %2934 = vmatprep.subr.bf16.mxu0 %v2129
      %2935 = vmatpush1.bf16.msra.mxu0 %v2128
      %2936 = vmatprep.subr.bf16.mxu0 %v2135
      %2937 = vmatpush1.bf16.msra.mxu0 %v2134
      %2938 = vmatprep.subr.bf16.mxu0 %v2141
      %2939 = vmatpush1.bf16.msra.mxu0 %v2140
      %2940 = vmatprep.subr.bf16.mxu0 %v2147
      %2941 = vmatpush1.bf16.msra.mxu0 %v2146
      %2942 = vmatprep.subr.bf16.mxu0 %v2153
      %2943 = vmatpush1.bf16.msra.mxu0 %v2152
      %2944 = vmatprep.subr.bf16.mxu0 %v2159
      %2945 = vmatpush1.bf16.msra.mxu0 %v2158
      %2946 = vmatprep.subr.bf16.mxu0 %v2165
      %2947 = vmatpush1.bf16.msra.mxu0 %v2164
      %2948 = vmatprep.subr.bf16.mxu0 %v2171
      %2949 = vmatpush1.bf16.msra.mxu0 %v2170
      %2950 = vmatprep.subr.bf16.mxu0 %v2177
      %2951 = vmatpush1.bf16.msra.mxu0 %v2176
      %2952 = vmatprep.subr.bf16.mxu0 %v2183
      %2953 = vmatpush1.bf16.msra.mxu0 %v2182
      %2954 = vmatprep.subr.bf16.mxu0 %v2189
      %2955 = vmatpush1.bf16.msra.mxu0 %v2188
      %2956 = vmatprep.subr.bf16.mxu0 %v2195
      %2957 = vmatpush1.bf16.msra.mxu0 %v2194
      %2958 = vmatprep.subr.bf16.mxu0 %v2201
      %2959 = vmatpush1.bf16.msra.mxu0 %v2200
      %2960 = vmatprep.mubr.bf16.mxu0 %v917
      %2961 = vmatmul.mubr.bf16.gmra.mrb[0].mxu0 %v916
      %v2962 = vpop.f32.mrb[0].mxu0
      %v2963 = vadd.f32 %v1231, %v2962
      %v2964 = vpop.f32.mrb[0].mxu0
      %v2965 = vadd.f32 %v1235, %v2964
      %v2966 = vpop.f32.mrb[0].mxu0
      %v2967 = vpop.f32.mrb[0].mxu0
      %2968 = vdwg.mxu0
      %2969 = vmatprep.subr.bf16.mxu0 %v2207
      %2970 = vmatpush1.bf16.msra.mxu0 %v2206
      %2971 = vmatprep.subr.bf16.mxu0 %v2213
      %2972 = vmatpush1.bf16.msra.mxu0 %v2212
      %2973 = vmatprep.subr.bf16.mxu0 %v2219
      %2974 = vmatpush1.bf16.msra.mxu0 %v2218
      %2975 = vmatprep.subr.bf16.mxu0 %v2225
      %2976 = vmatpush1.bf16.msra.mxu0 %v2224
      %2977 = vmatprep.subr.bf16.mxu0 %v2231
      %2978 = vmatpush1.bf16.msra.mxu0 %v2230
      %2979 = vmatprep.subr.bf16.mxu0 %v2237
      %2980 = vmatpush1.bf16.msra.mxu0 %v2236
      %2981 = vmatprep.subr.bf16.mxu0 %v2243
      %2982 = vmatpush1.bf16.msra.mxu0 %v2242
      %2983 = vmatprep.subr.bf16.mxu0 %v2249
      %2984 = vmatpush1.bf16.msra.mxu0 %v2248
      %2985 = vmatprep.subr.bf16.mxu0 %v2255
      %2986 = vmatpush1.bf16.msra.mxu0 %v2254
      %2987 = vmatprep.subr.bf16.mxu0 %v2261
      %2988 = vmatpush1.bf16.msra.mxu0 %v2260
      %2989 = vmatprep.subr.bf16.mxu0 %v2267
      %2990 = vmatpush1.bf16.msra.mxu0 %v2266
      %2991 = vmatprep.subr.bf16.mxu0 %v2273
      %2992 = vmatpush1.bf16.msra.mxu0 %v2272
      %2993 = vmatprep.subr.bf16.mxu0 %v2279
      %2994 = vmatpush1.bf16.msra.mxu0 %v2278
      %2995 = vmatprep.subr.bf16.mxu0 %v2285
      %2996 = vmatpush1.bf16.msra.mxu0 %v2284
      %2997 = vmatprep.subr.bf16.mxu0 %v2291
      %2998 = vmatpush1.bf16.msra.mxu0 %v2290
      %2999 = vmatprep.subr.bf16.mxu0 %v2297
      %3000 = vmatpush1.bf16.msra.mxu0 %v2296
      %3001 = vmatprep.mubr.bf16.mxu0 %v919
      %3002 = vmatmul.mubr.bf16.gmra.mrb[0].mxu0 %v918
      %v3003 = vpop.f32.mrb[0].mxu0
      %v3004 = vadd.f32 %v2963, %v3003
      %v3005 = vpop.f32.mrb[0].mxu0
      %v3006 = vadd.f32 %v2965, %v3005
      %v3007 = vpop.f32.mrb[0].mxu0
      %v3008 = vpop.f32.mrb[0].mxu0
      %3009 = vdwg.mxu0
      %3010 = vmatprep.subr.bf16.mxu0 %v2303
      %3011 = vmatpush1.bf16.msra.mxu0 %v2302
      %3012 = vmatprep.subr.bf16.mxu0 %v2309
      %3013 = vmatpush1.bf16.msra.mxu0 %v2308
      %3014 = vmatprep.subr.bf16.mxu0 %v2315
      %3015 = vmatpush1.bf16.msra.mxu0 %v2314
      %3016 = vmatprep.subr.bf16.mxu0 %v2321
      %3017 = vmatpush1.bf16.msra.mxu0 %v2320
      %3018 = vmatprep.subr.bf16.mxu0 %v2327
      %3019 = vmatpush1.bf16.msra.mxu0 %v2326
      %3020 = vmatprep.subr.bf16.mxu0 %v2333
      %3021 = vmatpush1.bf16.msra.mxu0 %v2332
      %3022 = vmatprep.subr.bf16.mxu0 %v2339
      %3023 = vmatpush1.bf16.msra.mxu0 %v2338
      %3024 = vmatprep.subr.bf16.mxu0 %v2345
      %3025 = vmatpush1.bf16.msra.mxu0 %v2344
      %3026 = vmatprep.subr.bf16.mxu0 %v2351
      %3027 = vmatpush1.bf16.msra.mxu0 %v2350
      %3028 = vmatprep.subr.bf16.mxu0 %v2357
      %3029 = vmatpush1.bf16.msra.mxu0 %v2356
      %3030 = vmatprep.subr.bf16.mxu0 %v2363
      %3031 = vmatpush1.bf16.msra.mxu0 %v2362
      %3032 = vmatprep.subr.bf16.mxu0 %v2369
      %3033 = vmatpush1.bf16.msra.mxu0 %v2368
      %3034 = vmatprep.subr.bf16.mxu0 %v2375
      %3035 = vmatpush1.bf16.msra.mxu0 %v2374
      %3036 = vmatprep.subr.bf16.mxu0 %v2381
      %3037 = vmatpush1.bf16.msra.mxu0 %v2380
      %3038 = vmatprep.subr.bf16.mxu0 %v2387
      %3039 = vmatpush1.bf16.msra.mxu0 %v2386
      %3040 = vmatprep.subr.bf16.mxu0 %v2393
      %3041 = vmatpush1.bf16.msra.mxu0 %v2392
      %3042 = vmatprep.mubr.bf16.mxu0 %v921
      %3043 = vmatmul.mubr.bf16.gmra.mrb[0].mxu0 %v920
      %v3044 = vpop.f32.mrb[0].mxu0
      %v3045 = vadd.f32 %v3004, %v3044
      %v3046 = vpop.f32.mrb[0].mxu0
      %v3047 = vadd.f32 %v3006, %v3046
      %v3048 = vpop.f32.mrb[0].mxu0
      %v3049 = vpop.f32.mrb[0].mxu0
      %3050 = vdwg.mxu0
      %v3051 = vtanh.pop %v2799
      %v3052 = vtanh.pop %v2801
      %v3053 = vtanh.pop %v2922
      %v3054 = vtanh.pop %v2924
      %v3055 = vtanh.pop %v3045
      %v3056 = vtanh.pop %v3047
      %v3057 = vpack.c.bf16 %v3051, %v3051
      %v3058 = vpack.c.bf16 %v3052, %v3052
      %v3059 = vpack.c.bf16 %v3053, %v3053
      %v3060 = vpack.c.bf16 %v3054, %v3054
      %v3061 = vpack.c.bf16 %v3055, %v3055
      %v3062 = vpack.c.bf16 %v3056, %v3056
      %v3063 = vld [vmem:[#allocation13] sm:$0xff]
      %v3064 = vld [vmem:[#allocation13 + $0x8] sm:$0xff]
      %v3065 = vld [vmem:[#allocation13 + $0x10] sm:$0xff]
      %v3066 = vld [vmem:[#allocation13 + $0x18] sm:$0xff]
      %v3067 = vld [vmem:[#allocation13 + $0x20] sm:$0xff]
      %v3068 = vld [vmem:[#allocation13 + $0x28] sm:$0xff]
      %v3069 = vld [vmem:[#allocation13 + $0x30] sm:$0xff]
      %v3070 = vld [vmem:[#allocation13 + $0x38] sm:$0xff]
      %v3071 = vld [vmem:[#allocation13 + $0x40] sm:$0xff]
      %v3072 = vld [vmem:[#allocation13 + $0x48] sm:$0xff]
      %v3073 = vld [vmem:[#allocation13 + $0x50] sm:$0xff]
      %v3074 = vld [vmem:[#allocation13 + $0x58] sm:$0xff]
      %v3075 = vld [vmem:[#allocation13 + $0x60] sm:$0xff]
      %v3076 = vld [vmem:[#allocation13 + $0x68] sm:$0xff]
      %v3077 = vld [vmem:[#allocation13 + $0x70] sm:$0xff]
      %v3078 = vld [vmem:[#allocation13 + $0x78] sm:$0xff]
      %v3079 = vld [vmem:[#allocation13 + $0x80] sm:$0xff]
      %v3080 = vld [vmem:[#allocation13 + $0x88] sm:$0xff]
      %v3081 = vld [vmem:[#allocation13 + $0x90] sm:$0xff]
      %v3082 = vld [vmem:[#allocation13 + $0x98] sm:$0xff]
      %v3083 = vld [vmem:[#allocation13 + $0xa0] sm:$0xff]
      %v3084 = vld [vmem:[#allocation13 + $0xa8] sm:$0xff]
      %v3085 = vld [vmem:[#allocation13 + $0xb0] sm:$0xff]
      %v3086 = vld [vmem:[#allocation13 + $0xb8] sm:$0xff]
      %v3087 = vld [vmem:[#allocation13 + $0xc0] sm:$0xff]
      %v3088 = vld [vmem:[#allocation13 + $0xc8] sm:$0xff]
      %v3089 = vld [vmem:[#allocation13 + $0xd0] sm:$0xff]
      %v3090 = vld [vmem:[#allocation13 + $0xd8] sm:$0xff]
      %v3091 = vld [vmem:[#allocation13 + $0xe0] sm:$0xff]
      %v3092 = vld [vmem:[#allocation13 + $0xe8] sm:$0xff]
      %v3093 = vld [vmem:[#allocation13 + $0xf0] sm:$0xff]
      %v3094 = vld [vmem:[#allocation13 + $0xf8] sm:$0xff]
      %v3095 = vld [vmem:[#allocation13 + $0x100] sm:$0xff]
      %v3096 = vld [vmem:[#allocation13 + $0x108] sm:$0xff]
      %v3097 = vld [vmem:[#allocation13 + $0x110] sm:$0xff]
      %v3098 = vld [vmem:[#allocation13 + $0x118] sm:$0xff]
      %v3099 = vld [vmem:[#allocation13 + $0x120] sm:$0xff]
      %v3100 = vld [vmem:[#allocation13 + $0x128] sm:$0xff]
      %v3101 = vld [vmem:[#allocation13 + $0x130] sm:$0xff]
      %v3102 = vld [vmem:[#allocation13 + $0x138] sm:$0xff]
      %v3103 = vld [vmem:[#allocation13 + $0x140] sm:$0xff]
      %v3104 = vld [vmem:[#allocation13 + $0x148] sm:$0xff]
      %v3105 = vld [vmem:[#allocation13 + $0x150] sm:$0xff]
      %v3106 = vld [vmem:[#allocation13 + $0x158] sm:$0xff]
      %v3107 = vld [vmem:[#allocation13 + $0x160] sm:$0xff]
      %v3108 = vld [vmem:[#allocation13 + $0x168] sm:$0xff]
      %v3109 = vld [vmem:[#allocation13 + $0x170] sm:$0xff]
      %v3110 = vld [vmem:[#allocation13 + $0x178] sm:$0xff]
      %v3111 = vld [vmem:[#allocation13 + $0x180] sm:$0xff]
      %v3112 = vld [vmem:[#allocation13 + $0x188] sm:$0xff]
      %v3113 = vld [vmem:[#allocation13 + $0x190] sm:$0xff]
      %v3114 = vld [vmem:[#allocation13 + $0x198] sm:$0xff]
      %v3115 = vld [vmem:[#allocation13 + $0x1a0] sm:$0xff]
      %v3116 = vld [vmem:[#allocation13 + $0x1a8] sm:$0xff]
      %v3117 = vld [vmem:[#allocation13 + $0x1b0] sm:$0xff]
      %v3118 = vld [vmem:[#allocation13 + $0x1b8] sm:$0xff]
      %v3119 = vld [vmem:[#allocation13 + $0x1c0] sm:$0xff]
      %v3120 = vld [vmem:[#allocation13 + $0x1c8] sm:$0xff]
      %v3121 = vld [vmem:[#allocation13 + $0x1d0] sm:$0xff]
      %v3122 = vld [vmem:[#allocation13 + $0x1d8] sm:$0xff]
      %v3123 = vld [vmem:[#allocation13 + $0x1e0] sm:$0xff]
      %v3124 = vld [vmem:[#allocation13 + $0x1e8] sm:$0xff]
      %v3125 = vld [vmem:[#allocation13 + $0x1f0] sm:$0xff]
      %v3126 = vld [vmem:[#allocation13 + $0x1f8] sm:$0xff]
      %v3127 = vld [vmem:[#allocation13 + $0x200] sm:$0xff]
      %v3128 = vld [vmem:[#allocation13 + $0x208] sm:$0xff]
      %v3129 = vld [vmem:[#allocation13 + $0x210] sm:$0xff]
      %v3130 = vld [vmem:[#allocation13 + $0x218] sm:$0xff]
      %v3131 = vld [vmem:[#allocation13 + $0x220] sm:$0xff]
      %v3132 = vld [vmem:[#allocation13 + $0x228] sm:$0xff]
      %v3133 = vld [vmem:[#allocation13 + $0x230] sm:$0xff]
      %v3134 = vld [vmem:[#allocation13 + $0x238] sm:$0xff]
      %v3135 = vld [vmem:[#allocation13 + $0x240] sm:$0xff]
      %v3136 = vld [vmem:[#allocation13 + $0x248] sm:$0xff]
      %v3137 = vld [vmem:[#allocation13 + $0x250] sm:$0xff]
      %v3138 = vld [vmem:[#allocation13 + $0x258] sm:$0xff]
      %v3139 = vld [vmem:[#allocation13 + $0x260] sm:$0xff]
      %v3140 = vld [vmem:[#allocation13 + $0x268] sm:$0xff]
      %v3141 = vld [vmem:[#allocation13 + $0x270] sm:$0xff]
      %v3142 = vld [vmem:[#allocation13 + $0x278] sm:$0xff]
      %v3143 = vld [vmem:[#allocation13 + $0x280] sm:$0xff]
      %v3144 = vld [vmem:[#allocation13 + $0x288] sm:$0xff]
      %v3145 = vld [vmem:[#allocation13 + $0x290] sm:$0xff]
      %v3146 = vld [vmem:[#allocation13 + $0x298] sm:$0xff]
      %v3147 = vld [vmem:[#allocation13 + $0x2a0] sm:$0xff]
      %v3148 = vld [vmem:[#allocation13 + $0x2a8] sm:$0xff]
      %v3149 = vld [vmem:[#allocation13 + $0x2b0] sm:$0xff]
      %v3150 = vld [vmem:[#allocation13 + $0x2b8] sm:$0xff]
      %v3151 = vld [vmem:[#allocation13 + $0x2c0] sm:$0xff]
      %v3152 = vld [vmem:[#allocation13 + $0x2c8] sm:$0xff]
      %v3153 = vld [vmem:[#allocation13 + $0x2d0] sm:$0xff]
      %v3154 = vld [vmem:[#allocation13 + $0x2d8] sm:$0xff]
      %v3155 = vld [vmem:[#allocation13 + $0x2e0] sm:$0xff]
      %v3156 = vld [vmem:[#allocation13 + $0x2e8] sm:$0xff]
      %v3157 = vld [vmem:[#allocation13 + $0x2f0] sm:$0xff]
      %v3158 = vld [vmem:[#allocation13 + $0x2f8] sm:$0xff]
      %v3159 = vld [vmem:[#allocation16] sm:$0x3]
      %v3161 = vlaneseq
      %v3162 = vshrl.u32 %v3161, 7
      %v3163 = vsub.s32 0, %v3162
      %v3164 = vrot.slane %v3159, %v3163
      %v3165 = vlaneseq
      %v3166 = vshrl.u32 %v3165, 7
      %v3167 = vsub.s32 1, %v3166
      %v3168 = vrot.slane %v3159, %v3167
      %v3267 = vunpack.c.l.b16 %v3063
      %v3268 = vunpack.c.h.b16 %v3063
      %v3269 = vunpack.c.l.b16 %v3064
      %v3270 = vunpack.c.h.b16 %v3064
      %v3271 = vunpack.c.l.b16 %v3065
      %v3272 = vunpack.c.h.b16 %v3065
      %v3273 = vunpack.c.l.b16 %v3066
      %v3274 = vunpack.c.h.b16 %v3066
      %v3275 = vunpack.c.l.b16 %v3067
      %v3276 = vunpack.c.h.b16 %v3067
      %v3277 = vunpack.c.l.b16 %v3068
      %v3278 = vunpack.c.h.b16 %v3068
      %v3279 = vunpack.c.l.b16 %v3069
      %v3280 = vunpack.c.h.b16 %v3069
      %v3281 = vunpack.c.l.b16 %v3070
      %v3282 = vunpack.c.h.b16 %v3070
      %v3283 = vunpack.c.l.b16 %v3071
      %v3284 = vunpack.c.h.b16 %v3071
      %v3285 = vunpack.c.l.b16 %v3072
      %v3286 = vunpack.c.h.b16 %v3072
      %v3287 = vunpack.c.l.b16 %v3073
      %v3288 = vunpack.c.h.b16 %v3073
      %v3289 = vunpack.c.l.b16 %v3074
      %v3290 = vunpack.c.h.b16 %v3074
      %v3291 = vunpack.c.l.b16 %v3075
      %v3292 = vunpack.c.h.b16 %v3075
      %v3293 = vunpack.c.l.b16 %v3076
      %v3294 = vunpack.c.h.b16 %v3076
      %v3295 = vunpack.c.l.b16 %v3077
      %v3296 = vunpack.c.h.b16 %v3077
      %v3297 = vunpack.c.l.b16 %v3078
      %v3298 = vunpack.c.h.b16 %v3078
      %v3299 = vunpack.c.l.b16 %v3079
      %v3300 = vunpack.c.h.b16 %v3079
      %v3301 = vunpack.c.l.b16 %v3080
      %v3302 = vunpack.c.h.b16 %v3080
      %v3303 = vunpack.c.l.b16 %v3081
      %v3304 = vunpack.c.h.b16 %v3081
      %v3305 = vunpack.c.l.b16 %v3082
      %v3306 = vunpack.c.h.b16 %v3082
      %v3307 = vunpack.c.l.b16 %v3083
      %v3308 = vunpack.c.h.b16 %v3083
      %v3309 = vunpack.c.l.b16 %v3084
      %v3310 = vunpack.c.h.b16 %v3084
      %v3311 = vunpack.c.l.b16 %v3085
      %v3312 = vunpack.c.h.b16 %v3085
      %v3313 = vunpack.c.l.b16 %v3086
      %v3314 = vunpack.c.h.b16 %v3086
      %v3315 = vunpack.c.l.b16 %v3087
      %v3316 = vunpack.c.h.b16 %v3087
      %v3317 = vunpack.c.l.b16 %v3088
      %v3318 = vunpack.c.h.b16 %v3088
      %v3319 = vunpack.c.l.b16 %v3089
      %v3320 = vunpack.c.h.b16 %v3089
      %v3321 = vunpack.c.l.b16 %v3090
      %v3322 = vunpack.c.h.b16 %v3090
      %v3323 = vunpack.c.l.b16 %v3091
      %v3324 = vunpack.c.h.b16 %v3091
      %v3325 = vunpack.c.l.b16 %v3092
      %v3326 = vunpack.c.h.b16 %v3092
      %v3327 = vunpack.c.l.b16 %v3093
      %v3328 = vunpack.c.h.b16 %v3093
      %v3329 = vunpack.c.l.b16 %v3094
      %v3330 = vunpack.c.h.b16 %v3094
      %v3331 = vunpack.c.l.b16 %v3095
      %v3332 = vunpack.c.h.b16 %v3095
      %v3333 = vunpack.c.l.b16 %v3096
      %v3334 = vunpack.c.h.b16 %v3096
      %v3335 = vunpack.c.l.b16 %v3097
      %v3336 = vunpack.c.h.b16 %v3097
      %v3337 = vunpack.c.l.b16 %v3098
      %v3338 = vunpack.c.h.b16 %v3098
      %v3339 = vunpack.c.l.b16 %v3099
      %v3340 = vunpack.c.h.b16 %v3099
      %v3341 = vunpack.c.l.b16 %v3100
      %v3342 = vunpack.c.h.b16 %v3100
      %v3343 = vunpack.c.l.b16 %v3101
      %v3344 = vunpack.c.h.b16 %v3101
      %v3345 = vunpack.c.l.b16 %v3102
      %v3346 = vunpack.c.h.b16 %v3102
      %v3347 = vunpack.c.l.b16 %v3103
      %v3348 = vunpack.c.h.b16 %v3103
      %v3349 = vunpack.c.l.b16 %v3104
      %v3350 = vunpack.c.h.b16 %v3104
      %v3351 = vunpack.c.l.b16 %v3105
      %v3352 = vunpack.c.h.b16 %v3105
      %v3353 = vunpack.c.l.b16 %v3106
      %v3354 = vunpack.c.h.b16 %v3106
      %v3355 = vunpack.c.l.b16 %v3107
      %v3356 = vunpack.c.h.b16 %v3107
      %v3357 = vunpack.c.l.b16 %v3108
      %v3358 = vunpack.c.h.b16 %v3108
      %v3359 = vunpack.c.l.b16 %v3109
      %v3360 = vunpack.c.h.b16 %v3109
      %v3361 = vunpack.c.l.b16 %v3110
      %v3362 = vunpack.c.h.b16 %v3110
      %v3363 = vunpack.c.l.b16 %v3111
      %v3364 = vunpack.c.h.b16 %v3111
      %v3365 = vunpack.c.l.b16 %v3112
      %v3366 = vunpack.c.h.b16 %v3112
      %v3367 = vunpack.c.l.b16 %v3113
      %v3368 = vunpack.c.h.b16 %v3113
      %v3369 = vunpack.c.l.b16 %v3114
      %v3370 = vunpack.c.h.b16 %v3114
      %v3371 = vunpack.c.l.b16 %v3115
      %v3372 = vunpack.c.h.b16 %v3115
      %v3373 = vunpack.c.l.b16 %v3116
      %v3374 = vunpack.c.h.b16 %v3116
      %v3375 = vunpack.c.l.b16 %v3117
      %v3376 = vunpack.c.h.b16 %v3117
      %v3377 = vunpack.c.l.b16 %v3118
      %v3378 = vunpack.c.h.b16 %v3118
      %v3379 = vunpack.c.l.b16 %v3119
      %v3380 = vunpack.c.h.b16 %v3119
      %v3381 = vunpack.c.l.b16 %v3120
      %v3382 = vunpack.c.h.b16 %v3120
      %v3383 = vunpack.c.l.b16 %v3121
      %v3384 = vunpack.c.h.b16 %v3121
      %v3385 = vunpack.c.l.b16 %v3122
      %v3386 = vunpack.c.h.b16 %v3122
      %v3387 = vunpack.c.l.b16 %v3123
      %v3388 = vunpack.c.h.b16 %v3123
      %v3389 = vunpack.c.l.b16 %v3124
      %v3390 = vunpack.c.h.b16 %v3124
      %v3391 = vunpack.c.l.b16 %v3125
      %v3392 = vunpack.c.h.b16 %v3125
      %v3393 = vunpack.c.l.b16 %v3126
      %v3394 = vunpack.c.h.b16 %v3126
      %v3395 = vunpack.c.l.b16 %v3127
      %v3396 = vunpack.c.h.b16 %v3127
      %v3397 = vunpack.c.l.b16 %v3128
      %v3398 = vunpack.c.h.b16 %v3128
      %v3399 = vunpack.c.l.b16 %v3129
      %v3400 = vunpack.c.h.b16 %v3129
      %v3401 = vunpack.c.l.b16 %v3130
      %v3402 = vunpack.c.h.b16 %v3130
      %v3403 = vunpack.c.l.b16 %v3131
      %v3404 = vunpack.c.h.b16 %v3131
      %v3405 = vunpack.c.l.b16 %v3132
      %v3406 = vunpack.c.h.b16 %v3132
      %v3407 = vunpack.c.l.b16 %v3133
      %v3408 = vunpack.c.h.b16 %v3133
      %v3409 = vunpack.c.l.b16 %v3134
      %v3410 = vunpack.c.h.b16 %v3134
      %v3411 = vunpack.c.l.b16 %v3135
      %v3412 = vunpack.c.h.b16 %v3135
      %v3413 = vunpack.c.l.b16 %v3136
      %v3414 = vunpack.c.h.b16 %v3136
      %v3415 = vunpack.c.l.b16 %v3137
      %v3416 = vunpack.c.h.b16 %v3137
      %v3417 = vunpack.c.l.b16 %v3138
      %v3418 = vunpack.c.h.b16 %v3138
      %v3419 = vunpack.c.l.b16 %v3139
      %v3420 = vunpack.c.h.b16 %v3139
      %v3421 = vunpack.c.l.b16 %v3140
      %v3422 = vunpack.c.h.b16 %v3140
      %v3423 = vunpack.c.l.b16 %v3141
      %v3424 = vunpack.c.h.b16 %v3141
      %v3425 = vunpack.c.l.b16 %v3142
      %v3426 = vunpack.c.h.b16 %v3142
      %v3427 = vunpack.c.l.b16 %v3143
      %v3428 = vunpack.c.h.b16 %v3143
      %v3429 = vunpack.c.l.b16 %v3144
      %v3430 = vunpack.c.h.b16 %v3144
      %v3431 = vunpack.c.l.b16 %v3145
      %v3432 = vunpack.c.h.b16 %v3145
      %v3433 = vunpack.c.l.b16 %v3146
      %v3434 = vunpack.c.h.b16 %v3146
      %v3435 = vunpack.c.l.b16 %v3147
      %v3436 = vunpack.c.h.b16 %v3147
      %v3437 = vunpack.c.l.b16 %v3148
      %v3438 = vunpack.c.h.b16 %v3148
      %v3439 = vunpack.c.l.b16 %v3149
      %v3440 = vunpack.c.h.b16 %v3149
      %v3441 = vunpack.c.l.b16 %v3150
      %v3442 = vunpack.c.h.b16 %v3150
      %v3443 = vunpack.c.l.b16 %v3151
      %v3444 = vunpack.c.h.b16 %v3151
      %v3445 = vunpack.c.l.b16 %v3152
      %v3446 = vunpack.c.h.b16 %v3152
      %v3447 = vunpack.c.l.b16 %v3153
      %v3448 = vunpack.c.h.b16 %v3153
      %v3449 = vunpack.c.l.b16 %v3154
      %v3450 = vunpack.c.h.b16 %v3154
      %v3451 = vunpack.c.l.b16 %v3155
      %v3452 = vunpack.c.h.b16 %v3155
      %v3453 = vunpack.c.l.b16 %v3156
      %v3454 = vunpack.c.h.b16 %v3156
      %v3455 = vunpack.c.l.b16 %v3157
      %v3456 = vunpack.c.h.b16 %v3157
      %v3457 = vunpack.c.l.b16 %v3158
      %v3458 = vunpack.c.h.b16 %v3158
      %v3459 = vpack.c.b16 %v3269, %v3267
      %v3460 = vpack.c.b16 %v3270, %v3268
      %v3461 = vpack.c.b16 %v3273, %v3271
      %v3462 = vpack.c.b16 %v3274, %v3272
      %v3463 = vpack.c.b16 %v3277, %v3275
      %v3464 = vpack.c.b16 %v3278, %v3276
      %v3465 = vpack.c.b16 %v3281, %v3279
      %v3466 = vpack.c.b16 %v3282, %v3280
      %v3467 = vpack.c.b16 %v3285, %v3283
      %v3468 = vpack.c.b16 %v3286, %v3284
      %v3469 = vpack.c.b16 %v3289, %v3287
      %v3470 = vpack.c.b16 %v3290, %v3288
      %v3471 = vpack.c.b16 %v3293, %v3291
      %v3472 = vpack.c.b16 %v3294, %v3292
      %v3473 = vpack.c.b16 %v3297, %v3295
      %v3474 = vpack.c.b16 %v3298, %v3296
      %v3475 = vpack.c.b16 %v3301, %v3299
      %v3476 = vpack.c.b16 %v3302, %v3300
      %v3477 = vpack.c.b16 %v3305, %v3303
      %v3478 = vpack.c.b16 %v3306, %v3304
      %v3479 = vpack.c.b16 %v3309, %v3307
      %v3480 = vpack.c.b16 %v3310, %v3308
      %v3481 = vpack.c.b16 %v3313, %v3311
      %v3482 = vpack.c.b16 %v3314, %v3312
      %v3483 = vpack.c.b16 %v3317, %v3315
      %v3484 = vpack.c.b16 %v3318, %v3316
      %v3485 = vpack.c.b16 %v3321, %v3319
      %v3486 = vpack.c.b16 %v3322, %v3320
      %v3487 = vpack.c.b16 %v3325, %v3323
      %v3488 = vpack.c.b16 %v3326, %v3324
      %v3489 = vpack.c.b16 %v3329, %v3327
      %v3490 = vpack.c.b16 %v3330, %v3328
      %v3491 = vpack.c.b16 %v3333, %v3331
      %v3492 = vpack.c.b16 %v3334, %v3332
      %v3493 = vpack.c.b16 %v3337, %v3335
      %v3494 = vpack.c.b16 %v3338, %v3336
      %v3495 = vpack.c.b16 %v3341, %v3339
      %v3496 = vpack.c.b16 %v3342, %v3340
      %v3497 = vpack.c.b16 %v3345, %v3343
      %v3498 = vpack.c.b16 %v3346, %v3344
      %v3499 = vpack.c.b16 %v3349, %v3347
      %v3500 = vpack.c.b16 %v3350, %v3348
      %v3501 = vpack.c.b16 %v3353, %v3351
      %v3502 = vpack.c.b16 %v3354, %v3352
      %v3503 = vpack.c.b16 %v3357, %v3355
      %v3504 = vpack.c.b16 %v3358, %v3356
      %v3505 = vpack.c.b16 %v3361, %v3359
      %v3506 = vpack.c.b16 %v3362, %v3360
      %v3507 = vpack.c.b16 %v3365, %v3363
      %v3508 = vpack.c.b16 %v3366, %v3364
      %v3509 = vpack.c.b16 %v3369, %v3367
      %v3510 = vpack.c.b16 %v3370, %v3368
      %v3511 = vpack.c.b16 %v3373, %v3371
      %v3512 = vpack.c.b16 %v3374, %v3372
      %v3513 = vpack.c.b16 %v3377, %v3375
      %v3514 = vpack.c.b16 %v3378, %v3376
      %v3515 = vpack.c.b16 %v3381, %v3379
      %v3516 = vpack.c.b16 %v3382, %v3380
      %v3517 = vpack.c.b16 %v3385, %v3383
      %v3518 = vpack.c.b16 %v3386, %v3384
      %v3519 = vpack.c.b16 %v3389, %v3387
      %v3520 = vpack.c.b16 %v3390, %v3388
      %v3521 = vpack.c.b16 %v3393, %v3391
      %v3522 = vpack.c.b16 %v3394, %v3392
      %v3523 = vpack.c.b16 %v3397, %v3395
      %v3524 = vpack.c.b16 %v3398, %v3396
      %v3525 = vpack.c.b16 %v3401, %v3399
      %v3526 = vpack.c.b16 %v3402, %v3400
      %v3527 = vpack.c.b16 %v3405, %v3403
      %v3528 = vpack.c.b16 %v3406, %v3404
      %v3529 = vpack.c.b16 %v3409, %v3407
      %v3530 = vpack.c.b16 %v3410, %v3408
      %v3531 = vpack.c.b16 %v3413, %v3411
      %v3532 = vpack.c.b16 %v3414, %v3412
      %v3533 = vpack.c.b16 %v3417, %v3415
      %v3534 = vpack.c.b16 %v3418, %v3416
      %v3535 = vpack.c.b16 %v3421, %v3419
      %v3536 = vpack.c.b16 %v3422, %v3420
      %v3537 = vpack.c.b16 %v3425, %v3423
      %v3538 = vpack.c.b16 %v3426, %v3424
      %v3539 = vpack.c.b16 %v3429, %v3427
      %v3540 = vpack.c.b16 %v3430, %v3428
      %v3541 = vpack.c.b16 %v3433, %v3431
      %v3542 = vpack.c.b16 %v3434, %v3432
      %v3543 = vpack.c.b16 %v3437, %v3435
      %v3544 = vpack.c.b16 %v3438, %v3436
      %v3545 = vpack.c.b16 %v3441, %v3439
      %v3546 = vpack.c.b16 %v3442, %v3440
      %v3547 = vpack.c.b16 %v3445, %v3443
      %v3548 = vpack.c.b16 %v3446, %v3444
      %v3549 = vpack.c.b16 %v3449, %v3447
      %v3550 = vpack.c.b16 %v3450, %v3448
      %v3551 = vpack.c.b16 %v3453, %v3451
      %v3552 = vpack.c.b16 %v3454, %v3452
      %v3553 = vpack.c.b16 %v3457, %v3455
      %v3554 = vpack.c.b16 %v3458, %v3456
      %3651 = vmatprep.subr.bf16.mxu0 %v3460
      %3652 = vmatpush1.bf16.msra.mxu0 %v3459
      %3653 = vmatprep.subr.bf16.mxu0 %v3462
      %3654 = vmatpush1.bf16.msra.mxu0 %v3461
      %3655 = vmatprep.subr.bf16.mxu0 %v3464
      %3656 = vmatpush1.bf16.msra.mxu0 %v3463
      %3657 = vmatprep.subr.bf16.mxu0 %v3466
      %3658 = vmatpush1.bf16.msra.mxu0 %v3465
      %3659 = vmatprep.subr.bf16.mxu0 %v3468
      %3660 = vmatpush1.bf16.msra.mxu0 %v3467
      %3661 = vmatprep.subr.bf16.mxu0 %v3470
      %3662 = vmatpush1.bf16.msra.mxu0 %v3469
      %3663 = vmatprep.subr.bf16.mxu0 %v3472
      %3664 = vmatpush1.bf16.msra.mxu0 %v3471
      %3665 = vmatprep.subr.bf16.mxu0 %v3474
      %3666 = vmatpush1.bf16.msra.mxu0 %v3473
      %3667 = vmatprep.subr.bf16.mxu0 %v3476
      %3668 = vmatpush1.bf16.msra.mxu0 %v3475
      %3669 = vmatprep.subr.bf16.mxu0 %v3478
      %3670 = vmatpush1.bf16.msra.mxu0 %v3477
      %3671 = vmatprep.subr.bf16.mxu0 %v3480
      %3672 = vmatpush1.bf16.msra.mxu0 %v3479
      %3673 = vmatprep.subr.bf16.mxu0 %v3482
      %3674 = vmatpush1.bf16.msra.mxu0 %v3481
      %3675 = vmatprep.subr.bf16.mxu0 %v3484
      %3676 = vmatpush1.bf16.msra.mxu0 %v3483
      %3677 = vmatprep.subr.bf16.mxu0 %v3486
      %3678 = vmatpush1.bf16.msra.mxu0 %v3485
      %3679 = vmatprep.subr.bf16.mxu0 %v3488
      %3680 = vmatpush1.bf16.msra.mxu0 %v3487
      %3681 = vmatprep.subr.bf16.mxu0 %v3490
      %3682 = vmatpush1.bf16.msra.mxu0 %v3489
      %3683 = vmatprep.mubr.bf16.mxu0 %v3058
      %3684 = vmatmul.mubr.bf16.gmra.mrb[0].mxu0 %v3057
      %v3685 = vpop.f32.mrb[0].mxu0
      %v3686 = vadd.f32 %v3164, %v3685
      %v3687 = vpop.f32.mrb[0].mxu0
      %v3688 = vadd.f32 %v3168, %v3687
      %v3689 = vpop.f32.mrb[0].mxu0
      %v3690 = vpop.f32.mrb[0].mxu0
      %3691 = vdwg.mxu0
      %3692 = vmatprep.subr.bf16.mxu0 %v3492
      %3693 = vmatpush1.bf16.msra.mxu0 %v3491
      %3694 = vmatprep.subr.bf16.mxu0 %v3494
      %3695 = vmatpush1.bf16.msra.mxu0 %v3493
      %3696 = vmatprep.subr.bf16.mxu0 %v3496
      %3697 = vmatpush1.bf16.msra.mxu0 %v3495
      %3698 = vmatprep.subr.bf16.mxu0 %v3498
      %3699 = vmatpush1.bf16.msra.mxu0 %v3497
      %3700 = vmatprep.subr.bf16.mxu0 %v3500
      %3701 = vmatpush1.bf16.msra.mxu0 %v3499
      %3702 = vmatprep.subr.bf16.mxu0 %v3502
      %3703 = vmatpush1.bf16.msra.mxu0 %v3501
      %3704 = vmatprep.subr.bf16.mxu0 %v3504
      %3705 = vmatpush1.bf16.msra.mxu0 %v3503
      %3706 = vmatprep.subr.bf16.mxu0 %v3506
      %3707 = vmatpush1.bf16.msra.mxu0 %v3505
      %3708 = vmatprep.subr.bf16.mxu0 %v3508
      %3709 = vmatpush1.bf16.msra.mxu0 %v3507
      %3710 = vmatprep.subr.bf16.mxu0 %v3510
      %3711 = vmatpush1.bf16.msra.mxu0 %v3509
      %3712 = vmatprep.subr.bf16.mxu0 %v3512
      %3713 = vmatpush1.bf16.msra.mxu0 %v3511
      %3714 = vmatprep.subr.bf16.mxu0 %v3514
      %3715 = vmatpush1.bf16.msra.mxu0 %v3513
      %3716 = vmatprep.subr.bf16.mxu0 %v3516
      %3717 = vmatpush1.bf16.msra.mxu0 %v3515
      %3718 = vmatprep.subr.bf16.mxu0 %v3518
      %3719 = vmatpush1.bf16.msra.mxu0 %v3517
      %3720 = vmatprep.subr.bf16.mxu0 %v3520
      %3721 = vmatpush1.bf16.msra.mxu0 %v3519
      %3722 = vmatprep.subr.bf16.mxu0 %v3522
      %3723 = vmatpush1.bf16.msra.mxu0 %v3521
      %3724 = vmatprep.mubr.bf16.mxu0 %v3060
      %3725 = vmatmul.mubr.bf16.gmra.mrb[0].mxu0 %v3059
      %v3726 = vpop.f32.mrb[0].mxu0
      %v3727 = vadd.f32 %v3686, %v3726
      %v3728 = vpop.f32.mrb[0].mxu0
      %v3729 = vadd.f32 %v3688, %v3728
      %v3730 = vpop.f32.mrb[0].mxu0
      %v3731 = vpop.f32.mrb[0].mxu0
      %3732 = vdwg.mxu0
      %3733 = vmatprep.subr.bf16.mxu0 %v3524
      %3734 = vmatpush1.bf16.msra.mxu0 %v3523
      %3735 = vmatprep.subr.bf16.mxu0 %v3526
      %3736 = vmatpush1.bf16.msra.mxu0 %v3525
      %3737 = vmatprep.subr.bf16.mxu0 %v3528
      %3738 = vmatpush1.bf16.msra.mxu0 %v3527
      %3739 = vmatprep.subr.bf16.mxu0 %v3530
      %3740 = vmatpush1.bf16.msra.mxu0 %v3529
      %3741 = vmatprep.subr.bf16.mxu0 %v3532
      %3742 = vmatpush1.bf16.msra.mxu0 %v3531
      %3743 = vmatprep.subr.bf16.mxu0 %v3534
      %3744 = vmatpush1.bf16.msra.mxu0 %v3533
      %3745 = vmatprep.subr.bf16.mxu0 %v3536
      %3746 = vmatpush1.bf16.msra.mxu0 %v3535
      %3747 = vmatprep.subr.bf16.mxu0 %v3538
      %3748 = vmatpush1.bf16.msra.mxu0 %v3537
      %3749 = vmatprep.subr.bf16.mxu0 %v3540
      %3750 = vmatpush1.bf16.msra.mxu0 %v3539
      %3751 = vmatprep.subr.bf16.mxu0 %v3542
      %3752 = vmatpush1.bf16.msra.mxu0 %v3541
      %3753 = vmatprep.subr.bf16.mxu0 %v3544
      %3754 = vmatpush1.bf16.msra.mxu0 %v3543
      %3755 = vmatprep.subr.bf16.mxu0 %v3546
      %3756 = vmatpush1.bf16.msra.mxu0 %v3545
      %3757 = vmatprep.subr.bf16.mxu0 %v3548
      %3758 = vmatpush1.bf16.msra.mxu0 %v3547
      %3759 = vmatprep.subr.bf16.mxu0 %v3550
      %3760 = vmatpush1.bf16.msra.mxu0 %v3549
      %3761 = vmatprep.subr.bf16.mxu0 %v3552
      %3762 = vmatpush1.bf16.msra.mxu0 %v3551
      %3763 = vmatprep.subr.bf16.mxu0 %v3554
      %3764 = vmatpush1.bf16.msra.mxu0 %v3553
      %3765 = vmatprep.mubr.bf16.mxu0 %v3062
      %3766 = vmatmul.mubr.bf16.gmra.mrb[0].mxu0 %v3061
      %v3767 = vpop.f32.mrb[0].mxu0
      %v3768 = vadd.f32 %v3727, %v3767
      %v3769 = vpop.f32.mrb[0].mxu0
      %v3770 = vadd.f32 %v3729, %v3769
      %v3771 = vpop.f32.mrb[0].mxu0
      %v3772 = vpop.f32.mrb[0].mxu0
      %3773 = vdwg.mxu0
      %v3774 = vld [vmem:[#allocation8] sm:$0xff]
      %v3775 = vld [vmem:[#allocation14] sm:$0x3f]
      %v3776 = vld [vmem:[#allocation14 + $0x8] sm:$0x3f]
      %3778 = vset.pattern.permute.xlu0 0
      %3779 = vperm.xlu0 %3778, %v3774
      %v3780 = vpop.permute.xlu0 %3779
      %v3782 = vlaneseq
      %v3783 = vshrl.u32 %v3782, 7
      %v3784 = vsub.s32 0, %v3783
      %v3785 = vrot.slane %v3775, %v3784
      %v3786 = vlaneseq
      %v3787 = vshrl.u32 %v3786, 7
      %v3788 = vsub.s32 0, %v3787
      %v3789 = vrot.slane %v3776, %v3788
      %v3790 = vmul.f32 %v3780, %v3785
      %v3791 = vmul.f32 %v3780, %v3789
      %v3792 = vadd.f32 %v3768, %v3790
      %v3793 = vadd.f32 %v3770, %v3791
      %3794 = vset.pattern.permute.xlu0 1
      %3795 = vperm.xlu0 %3794, %v3774
      %v3796 = vpop.permute.xlu0 %3795
      %v3798 = vlaneseq
      %v3799 = vshrl.u32 %v3798, 7
      %v3800 = vsub.s32 1, %v3799
      %v3801 = vrot.slane %v3775, %v3800
      %v3802 = vlaneseq
      %v3803 = vshrl.u32 %v3802, 7
      %v3804 = vsub.s32 1, %v3803
      %v3805 = vrot.slane %v3776, %v3804
      %v3806 = vmul.f32 %v3796, %v3801
      %v3807 = vmul.f32 %v3796, %v3805
      %v3808 = vadd.f32 %v3792, %v3806
      %v3809 = vadd.f32 %v3793, %v3807
      %3810 = vset.pattern.permute.xlu0 2
      %3811 = vperm.xlu0 %3810, %v3774
      %v3812 = vpop.permute.xlu0 %3811
      %v3814 = vlaneseq
      %v3815 = vshrl.u32 %v3814, 7
      %v3816 = vsub.s32 2, %v3815
      %v3817 = vrot.slane %v3775, %v3816
      %v3818 = vlaneseq
      %v3819 = vshrl.u32 %v3818, 7
      %v3820 = vsub.s32 2, %v3819
      %v3821 = vrot.slane %v3776, %v3820
      %v3822 = vmul.f32 %v3812, %v3817
      %v3823 = vmul.f32 %v3812, %v3821
      %v3824 = vadd.f32 %v3808, %v3822
      %v3825 = vadd.f32 %v3809, %v3823
      %3826 = vset.pattern.permute.xlu0 3
      %3827 = vperm.xlu0 %3826, %v3774
      %v3828 = vpop.permute.xlu0 %3827
      %v3830 = vlaneseq
      %v3831 = vshrl.u32 %v3830, 7
      %v3832 = vsub.s32 3, %v3831
      %v3833 = vrot.slane %v3775, %v3832
      %v3834 = vlaneseq
      %v3835 = vshrl.u32 %v3834, 7
      %v3836 = vsub.s32 3, %v3835
      %v3837 = vrot.slane %v3776, %v3836
      %v3838 = vmul.f32 %v3828, %v3833
      %v3839 = vmul.f32 %v3828, %v3837
      %v3840 = vadd.f32 %v3824, %v3838
      %v3841 = vadd.f32 %v3825, %v3839
      %3842 = vset.pattern.permute.xlu0 4
      %3843 = vperm.xlu0 %3842, %v3774
      %v3844 = vpop.permute.xlu0 %3843
      %v3846 = vlaneseq
      %v3847 = vshrl.u32 %v3846, 7
      %v3848 = vsub.s32 4, %v3847
      %v3849 = vrot.slane %v3775, %v3848
      %v3850 = vlaneseq
      %v3851 = vshrl.u32 %v3850, 7
      %v3852 = vsub.s32 4, %v3851
      %v3853 = vrot.slane %v3776, %v3852
      %v3854 = vmul.f32 %v3844, %v3849
      %v3855 = vmul.f32 %v3844, %v3853
      %v3856 = vadd.f32 %v3840, %v3854
      %v3857 = vadd.f32 %v3841, %v3855
      %3858 = vset.pattern.permute.xlu0 5
      %3859 = vperm.xlu0 %3858, %v3774
      %v3860 = vpop.permute.xlu0 %3859
      %v3862 = vlaneseq
      %v3863 = vshrl.u32 %v3862, 7
      %v3864 = vsub.s32 5, %v3863
      %v3865 = vrot.slane %v3775, %v3864
      %v3866 = vlaneseq
      %v3867 = vshrl.u32 %v3866, 7
      %v3868 = vsub.s32 5, %v3867
      %v3869 = vrot.slane %v3776, %v3868
      %v3870 = vmul.f32 %v3860, %v3865
      %v3871 = vmul.f32 %v3860, %v3869
      %v3872 = vadd.f32 %v3856, %v3870
      %v3873 = vadd.f32 %v3857, %v3871
      %v3874 = vmax.f32 %v3872, 0.0
      %v3875 = vmax.f32 %v3873, 0.0
      %v3876 = vpack.c.bf16 %v3874, %v3874
      %v3877 = vpack.c.bf16 %v3875, %v3875
      %v3878 = vld [vmem:[#allocation17] sm:$0xf]
      %v3879 = vld [vmem:[#allocation17 + $0x4] sm:$0xf]
      %v3880 = vld [vmem:[#allocation17 + $0x8] sm:$0xf]
      %v3881 = vld [vmem:[#allocation17 + $0xc] sm:$0xf]
      %v3882 = vld [vmem:[#allocation17 + $0x10] sm:$0xf]
      %v3883 = vld [vmem:[#allocation17 + $0x14] sm:$0xf]
      %v3884 = vld [vmem:[#allocation17 + $0x18] sm:$0xf]
      %v3885 = vld [vmem:[#allocation17 + $0x1c] sm:$0xf]
      %v3886 = vld [vmem:[#allocation17 + $0x20] sm:$0xf]
      %v3887 = vld [vmem:[#allocation17 + $0x24] sm:$0xf]
      %v3888 = vld [vmem:[#allocation17 + $0x28] sm:$0xf]
      %v3889 = vld [vmem:[#allocation17 + $0x2c] sm:$0xf]
      %v3890 = vld [vmem:[#allocation17 + $0x30] sm:$0xf]
      %v3891 = vld [vmem:[#allocation17 + $0x34] sm:$0xf]
      %v3892 = vld [vmem:[#allocation17 + $0x38] sm:$0xf]
      %v3893 = vld [vmem:[#allocation17 + $0x3c] sm:$0xf]
      %v3894 = vld [vmem:[#allocation17 + $0x40] sm:$0xf]
      %v3895 = vld [vmem:[#allocation17 + $0x44] sm:$0xf]
      %v3896 = vld [vmem:[#allocation17 + $0x48] sm:$0xf]
      %v3897 = vld [vmem:[#allocation17 + $0x4c] sm:$0xf]
      %v3898 = vld [vmem:[#allocation17 + $0x50] sm:$0xf]
      %v3899 = vld [vmem:[#allocation17 + $0x54] sm:$0xf]
      %v3900 = vld [vmem:[#allocation17 + $0x58] sm:$0xf]
      %v3901 = vld [vmem:[#allocation17 + $0x5c] sm:$0xf]
      %v3902 = vld [vmem:[#allocation17 + $0x60] sm:$0xf]
      %v3903 = vld [vmem:[#allocation17 + $0x64] sm:$0xf]
      %v3904 = vld [vmem:[#allocation17 + $0x68] sm:$0xf]
      %v3905 = vld [vmem:[#allocation17 + $0x6c] sm:$0xf]
      %v3906 = vld [vmem:[#allocation17 + $0x70] sm:$0xf]
      %v3907 = vld [vmem:[#allocation17 + $0x74] sm:$0xf]
      %v3908 = vld [vmem:[#allocation17 + $0x78] sm:$0xf]
      %v3909 = vld [vmem:[#allocation17 + $0x7c] sm:$0xf]
      %v3910 = vld [vmem:[#allocation19] sm:$0x1]
      %v3912 = vlaneseq
      %v3913 = vshrl.u32 %v3912, 7
      %v3914 = vsub.s32 0, %v3913
      %v3915 = vrot.slane %v3910, %v3914
      %v3949 = vunpack.c.l.b16 %v3878
      %v3950 = vunpack.c.l.b16 %v3879
      %v3951 = vunpack.c.l.b16 %v3880
      %v3952 = vunpack.c.l.b16 %v3881
      %v3953 = vunpack.c.l.b16 %v3882
      %v3954 = vunpack.c.l.b16 %v3883
      %v3955 = vunpack.c.l.b16 %v3884
      %v3956 = vunpack.c.l.b16 %v3885
      %v3957 = vunpack.c.l.b16 %v3886
      %v3958 = vunpack.c.l.b16 %v3887
      %v3959 = vunpack.c.l.b16 %v3888
      %v3960 = vunpack.c.l.b16 %v3889
      %v3961 = vunpack.c.l.b16 %v3890
      %v3962 = vunpack.c.l.b16 %v3891
      %v3963 = vunpack.c.l.b16 %v3892
      %v3964 = vunpack.c.l.b16 %v3893
      %v3965 = vunpack.c.l.b16 %v3894
      %v3966 = vunpack.c.l.b16 %v3895
      %v3967 = vunpack.c.l.b16 %v3896
      %v3968 = vunpack.c.l.b16 %v3897
      %v3969 = vunpack.c.l.b16 %v3898
      %v3970 = vunpack.c.l.b16 %v3899
      %v3971 = vunpack.c.l.b16 %v3900
      %v3972 = vunpack.c.l.b16 %v3901
      %v3973 = vunpack.c.l.b16 %v3902
      %v3974 = vunpack.c.l.b16 %v3903
      %v3975 = vunpack.c.l.b16 %v3904
      %v3976 = vunpack.c.l.b16 %v3905
      %v3977 = vunpack.c.l.b16 %v3906
      %v3978 = vunpack.c.l.b16 %v3907
      %v3979 = vunpack.c.l.b16 %v3908
      %v3980 = vunpack.c.l.b16 %v3909
      %v3981 = vpack.c.b16 %v3950, %v3949
      %v3982 = vpack.c.b16 %v3952, %v3951
      %v3983 = vpack.c.b16 %v3954, %v3953
      %v3984 = vpack.c.b16 %v3956, %v3955
      %v3985 = vpack.c.b16 %v3958, %v3957
      %v3986 = vpack.c.b16 %v3960, %v3959
      %v3987 = vpack.c.b16 %v3962, %v3961
      %v3988 = vpack.c.b16 %v3964, %v3963
      %v3989 = vpack.c.b16 %v3966, %v3965
      %v3990 = vpack.c.b16 %v3968, %v3967
      %v3991 = vpack.c.b16 %v3970, %v3969
      %v3992 = vpack.c.b16 %v3972, %v3971
      %v3993 = vpack.c.b16 %v3974, %v3973
      %v3994 = vpack.c.b16 %v3976, %v3975
      %v3995 = vpack.c.b16 %v3978, %v3977
      %v3996 = vpack.c.b16 %v3980, %v3979
      %4013 = vmatprep.subr.bf16.mxu0 0
      %4014 = vmatpush1.bf16.msra.mxu0 %v3981
      %4015 = vmatprep.subr.bf16.mxu0 0
      %4016 = vmatpush1.bf16.msra.mxu0 %v3982
      %4017 = vmatprep.subr.bf16.mxu0 0
      %4018 = vmatpush1.bf16.msra.mxu0 %v3983
      %4019 = vmatprep.subr.bf16.mxu0 0
      %4020 = vmatpush1.bf16.msra.mxu0 %v3984
      %4021 = vmatprep.subr.bf16.mxu0 0
      %4022 = vmatpush1.bf16.msra.mxu0 %v3985
      %4023 = vmatprep.subr.bf16.mxu0 0
      %4024 = vmatpush1.bf16.msra.mxu0 %v3986
      %4025 = vmatprep.subr.bf16.mxu0 0
      %4026 = vmatpush1.bf16.msra.mxu0 %v3987
      %4027 = vmatprep.subr.bf16.mxu0 0
      %4028 = vmatpush1.bf16.msra.mxu0 %v3988
      %4029 = vmatprep.subr.bf16.mxu0 0
      %4030 = vmatpush1.bf16.msra.mxu0 %v3989
      %4031 = vmatprep.subr.bf16.mxu0 0
      %4032 = vmatpush1.bf16.msra.mxu0 %v3990
      %4033 = vmatprep.subr.bf16.mxu0 0
      %4034 = vmatpush1.bf16.msra.mxu0 %v3991
      %4035 = vmatprep.subr.bf16.mxu0 0
      %4036 = vmatpush1.bf16.msra.mxu0 %v3992
      %4037 = vmatprep.subr.bf16.mxu0 0
      %4038 = vmatpush1.bf16.msra.mxu0 %v3993
      %4039 = vmatprep.subr.bf16.mxu0 0
      %4040 = vmatpush1.bf16.msra.mxu0 %v3994
      %4041 = vmatprep.subr.bf16.mxu0 0
      %4042 = vmatpush1.bf16.msra.mxu0 %v3995
      %4043 = vmatprep.subr.bf16.mxu0 0
      %4044 = vmatpush1.bf16.msra.mxu0 %v3996
      %4045 = vmatprep.mubr.bf16.mxu0 %v3877
      %4046 = vmatmul.mubr.bf16.gmra.mrb[0].mxu0 %v3876
      %v4047 = vpop.f32.mrb[0].mxu0
      %v4048 = vadd.f32 %v3915, %v4047
      %v4049 = vpop.f32.mrb[0].mxu0
      %v4050 = vpop.f32.mrb[0].mxu0
      %v4051 = vpop.f32.mrb[0].mxu0
      %4052 = vdwg.mxu0
      %v4053 = vmax.f32 %v4048, 0.0
      %v4054 = vld [vmem:[#allocation20] sm:$0x1]
      %v4056 = vlaneseq
      %v4057 = vshrl.u32 %v4056, 7
      %v4058 = vsub.s32 0, %v4057
      %v4059 = vrot.slane %v4054, %v4058
      %v4061 = vmul.f32 %v4053, %v4059
      %4062 = vadd.xlane.f32.xlu0 %v4061
      %v4063 = vpop.xlane.xlu0 %4062
      %v4064 = vld [vmem:[#allocation4] sm:$0x1]
      %v4066 = vlaneseq
      %v4067 = vshrl.u32 %v4066, 7
      %v4068 = vsub.s32 0, %v4067
      %v4069 = vrot.slane %v4064, %v4068
      %v4071 = vadd.f32 %v4063, %v4069
      %v4072 = vxor.u32 %v4071, 2147483648
      %v4073 = vmul.f32 %v4072, 1.442695
      %v4074 = vpow.pop %v4073
      %v4075 = vadd.f32 %v4074, 1.0
      %v4076 = vrcp.pop %v4075
      %v4077 = vmul.f32 1.0, %v4076
      %4079 = vset.pattern.permute.xlu0 0
      %4080 = vperm.xlu0 %4079, %v4077
      %v4081 = vpop.permute.xlu0 %4080
      %4083 = vst [vmem:[#allocation22] sm:$0xff] %v4081
    $region97: #{tpu_custom_call.1} parent=1 // pred_fallthru
      _
    // Predicated region
    $region98: #{tpu_custom_call.1} parent=1 // pred_check
      _
    $region99: #{tpu_custom_call.1} parent=1 // pred_check_branch
      %4085 = sbr.rel (0) target = $region101
    $region100: #{tpu_custom_call.1} parent=1 // pred_region
      %s4087 = ssub.s32 128, 128
      %4088 = vsyncadd [#allocation7], %s4087
      %s4090 = sshll.u32 [#allocation22], 4
      %s4091 = int_to_ptr.vmem [resolvable:$true] %s4090
      %4093 = dma.vmem_to_hbm [thread:$0]  %s4091, 128, %s12, [#allocation7]
    $region101: #{tpu_custom_call.1} parent=1 // pred_fallthru
      _
    // Predicated region
    $region102: #{tpu_custom_call.1} parent=1 // pred_check
      _
    $region103: #{tpu_custom_call.1} parent=1 // pred_check_branch
      %4095 = sbr.rel (0) target = $region105
    $region104: #{tpu_custom_call.1} parent=1 // pred_region
      %4096 = dma.done [#allocation7], 128
    $region105: #{tpu_custom_call.1} parent=1 // pred_fallthru
      _
    %4097 = vsyncpa [#allocation6], 1
    %4098 = vsyncpa [#allocation9], 1
    %4099 = vsyncpa [#allocation12], 1
    %4100 = vsyncpa [#allocation15], 1
    %4101 = vsyncpa [#allocation18], 1
    %4102 = vsyncpa [#allocation21], 1
    %4103 = vsyncpa [#allocation7], 1

</llo_original>
